<compile_context>
chip_gen: v6e
topology: v6e:2x2x1
jax: 0.10.0
libtpu: 0.0.40
codegen_flags: <defaults>
</compile_context>

<pallas_src>
import jax
import jax.numpy as jnp
from jax import lax
from jax.experimental import pallas as pl
from jax.experimental.pallas import tpu as pltpu

LANE = 128   # TPU vreg lane width
CHUNK = 8    # time steps per grid step (sublane-aligned output blocks)


# --------------------------------------------------------------------------
# Kernel: one grid step == CHUNK GRU time steps.
#   tok_ref : SMEM scalar-prefetch token ids (seq_pad,)
#   emb_hbm : (vocab, 1, HP) embedding table, left in HBM (pl.ANY)
#   h0_ref  : (1, HP) initial hidden
#   wi_ref  : (HP, 3HP) fused input weights  [W_ir | W_iz | W_in] (transposed)
#   wh_ref  : (HP, 3HP) fused hidden weights [W_hr | W_hz | W_hn] (transposed)
#   bi_ref  : (1, 3HP)  [b_ir | b_iz | b_in]
#   bh_ref  : (1, 3HP)  [b_hr | b_hz | b_hn]
#   out_ref : (CHUNK, HP) output rows for this chunk
#   h_scr   : (1, HP) carried hidden state (persists across grid steps)
#   ebuf    : (2, CHUNK, HP) double-buffered gathered embedding rows
#   xg_scr  : (CHUNK, 3HP) chunk input projections
#   sems    : (2, CHUNK) DMA semaphores
# --------------------------------------------------------------------------
def encoder_gru_kernel(tok_ref, emb_hbm, h0_ref, wi_ref, wh_ref, bi_ref,
                       bh_ref, out_ref, h_scr, ebuf, xg_scr, sems):
    c = pl.program_id(0)
    nc = pl.num_programs(0)
    chunk = ebuf.shape[1]
    HP = ebuf.shape[2]

    def start_gather(chunk_idx, slot):
        base = chunk_idx * chunk
        for i in range(chunk):                       # static unroll
            tok = tok_ref[base + i]
            pltpu.make_async_copy(
                emb_hbm.at[tok],                     # (1, HP) row in HBM
                ebuf.at[slot, pl.ds(i, 1), :],       # (1, HP) row in VMEM
                sems.at[slot, i]).start()

    # Prologue: seed hidden state and kick off the first chunk's gather.
    @pl.when(c == 0)
    def _():
        h_scr[...] = h0_ref[...]
        start_gather(0, 0)

    slot = c % 2

    # Prefetch the NEXT chunk's embedding rows while we compute this one.
    @pl.when(c + 1 < nc)
    def _():
        start_gather(c + 1, 1 - slot)

    # Wait for this chunk's rows (issued one chunk earlier, or in prologue).
    for i in range(chunk):
        pltpu.make_async_copy(
            emb_hbm.at[0],
            ebuf.at[slot, pl.ds(i, 1), :],
            sems.at[slot, i]).wait()

    # Batched input projections for the whole chunk: one MXU matmul (M=CHUNK).
    xg_scr[...] = jnp.dot(ebuf[slot], wi_ref[...],
                          preferred_element_type=jnp.float32) + bi_ref[...]

    wh = wh_ref[...]
    bh = bh_ref[...]

    # Sequential recurrence over the chunk (carried in vregs, unrolled).
    def step(i, h):
        gi = xg_scr[pl.ds(i, 1), :]                                  # (1, 3HP)
        gh = jnp.dot(h, wh, preferred_element_type=jnp.float32) + bh
        r = jax.nn.sigmoid(gi[:, 0:HP] + gh[:, 0:HP])                # reset
        z = jax.nn.sigmoid(gi[:, HP:2 * HP] + gh[:, HP:2 * HP])      # update
        n = jnp.tanh(gi[:, 2 * HP:3 * HP] + r * gh[:, 2 * HP:3 * HP])
        hy = (1.0 - z) * n + z * h
        out_ref[pl.ds(i, 1), :] = hy
        return hy

    h_scr[...] = lax.fori_loop(0, chunk, step, h_scr[...], unroll=True)


# --------------------------------------------------------------------------
# Parameter construction (matches torch.nn.Embedding / torch.nn.GRU shapes).
# --------------------------------------------------------------------------
def init_params(key, input_size, hidden_size):
    k_emb, k_wih, k_whh, k_bih, k_bhh = jax.random.split(key, 5)
    scale = 1.0 / jnp.sqrt(hidden_size)
    return {
        "embedding": jax.random.normal(k_emb, (input_size, hidden_size), jnp.float32),
        "w_ih": jax.random.uniform(k_wih, (3 * hidden_size, hidden_size),
                                   jnp.float32, -scale, scale),
        "w_hh": jax.random.uniform(k_whh, (3 * hidden_size, hidden_size),
                                   jnp.float32, -scale, scale),
        "b_ih": jax.random.uniform(k_bih, (3 * hidden_size,),
                                   jnp.float32, -scale, scale),
        "b_hh": jax.random.uniform(k_bhh, (3 * hidden_size,),
                                   jnp.float32, -scale, scale),
    }


def prepare_kernel_params(params):
    """One-time fusion / lane-padding of parameters into the kernel layout."""
    vocab, H = params["embedding"].shape
    HP = max(LANE, ((H + LANE - 1) // LANE) * LANE)

    # Lane-padded embedding table, (vocab, 1, HP): one (1, HP) row per token.
    emb_p = jnp.zeros((vocab, 1, HP), jnp.float32)
    emb_p = emb_p.at[:, 0, :H].set(params["embedding"])

    w_ih, w_hh = params["w_ih"], params["w_hh"]          # (3H, H), gate order r,z,n
    b_ih, b_hh = params["b_ih"], params["b_hh"]
    W_ir, W_iz, W_in = w_ih[0:H], w_ih[H:2 * H], w_ih[2 * H:3 * H]
    W_hr, W_hz, W_hn = w_hh[0:H], w_hh[H:2 * H], w_hh[2 * H:3 * H]
    b_ir, b_iz, b_in = b_ih[0:H], b_ih[H:2 * H], b_ih[2 * H:3 * H]
    b_hr, b_hz, b_hn = b_hh[0:H], b_hh[H:2 * H], b_hh[2 * H:3 * H]

    wi = jnp.zeros((HP, 3 * HP), jnp.float32)
    wi = wi.at[0:H, 0:H].set(W_ir.T)
    wi = wi.at[0:H, HP:HP + H].set(W_iz.T)
    wi = wi.at[0:H, 2 * HP:2 * HP + H].set(W_in.T)

    wh = jnp.zeros((HP, 3 * HP), jnp.float32)
    wh = wh.at[0:H, 0:H].set(W_hr.T)
    wh = wh.at[0:H, HP:HP + H].set(W_hz.T)
    wh = wh.at[0:H, 2 * HP:2 * HP + H].set(W_hn.T)

    bi = jnp.zeros((1, 3 * HP), jnp.float32)
    bi = bi.at[0, 0:H].set(b_ir)
    bi = bi.at[0, HP:HP + H].set(b_iz)
    bi = bi.at[0, 2 * HP:2 * HP + H].set(b_in)

    bh = jnp.zeros((1, 3 * HP), jnp.float32)
    bh = bh.at[0, 0:H].set(b_hr)
    bh = bh.at[0, HP:HP + H].set(b_hz)
    bh = bh.at[0, 2 * HP:2 * HP + H].set(b_hn)

    return {"emb": emb_p, "wi": wi, "wh": wh, "bi": bi, "bh": bh, "H": H, "HP": HP}


# --------------------------------------------------------------------------
# Forward wrappers.
# --------------------------------------------------------------------------
def encoder_gru_sequence(prepared, tokens, hidden0, *, chunk=CHUNK):
    """Encode a whole token sequence in ONE pallas_call.

    tokens:  (seq_len,) int32
    hidden0: (1, 1, H) float32
    returns (outputs (seq_len, 1, H), hidden (1, 1, H))  -- nn.GRU layout.
    """
    H, HP = prepared["H"], prepared["HP"]
    seq_len = int(tokens.shape[0])
    num_chunks = (seq_len + chunk - 1) // chunk
    seq_pad = num_chunks * chunk

    tok_p = jnp.zeros((seq_pad,), jnp.int32).at[:seq_len].set(tokens.astype(jnp.int32))
    h0_p = jnp.zeros((1, HP), jnp.float32).at[:, :H].set(hidden0.reshape(1, H))

    grid_spec = pltpu.PrefetchScalarGridSpec(
        num_scalar_prefetch=1,                 # token ids -> SMEM
        grid=(num_chunks,),
        in_specs=[
            pl.BlockSpec(memory_space=pl.ANY),                    # embedding (HBM)
            pl.BlockSpec((1, HP), lambda c, tok: (0, 0)),         # h0 (fetched once)
            pl.BlockSpec((HP, 3 * HP), lambda c, tok: (0, 0)),    # wi (resident)
            pl.BlockSpec((HP, 3 * HP), lambda c, tok: (0, 0)),    # wh (resident)
            pl.BlockSpec((1, 3 * HP), lambda c, tok: (0, 0)),     # bi
            pl.BlockSpec((1, 3 * HP), lambda c, tok: (0, 0)),     # bh
        ],
        out_specs=pl.BlockSpec((chunk, HP), lambda c, tok: (c, 0)),
        scratch_shapes=[
            pltpu.VMEM((1, HP), jnp.float32),            # carried hidden
            pltpu.VMEM((2, chunk, HP), jnp.float32),     # double-buffered emb rows
            pltpu.VMEM((chunk, 3 * HP), jnp.float32),    # chunk input projections
            pltpu.SemaphoreType.DMA((2, chunk)),         # gather semaphores
        ],
    )

    outs_p = pl.pallas_call(
        encoder_gru_kernel,
        out_shape=jax.ShapeDtypeStruct((seq_pad, HP), jnp.float32),
        grid_spec=grid_spec,
        compiler_params=pltpu.CompilerParams(
            dimension_semantics=("arbitrary",)),   # sequential recurrence
    )(tok_p, prepared["emb"], h0_p, prepared["wi"], prepared["wh"],
      prepared["bi"], prepared["bh"])

    outs = outs_p[:seq_len, :H].reshape(seq_len, 1, H)     # strip padding
    hidden_out = outs[seq_len - 1].reshape(1, 1, H)        # GRU: last output == hidden
    return outs, hidden_out


def encoder_rnn_forward(prepared, token, hidden):
    """Mirrors EncoderRNN.forward(input, hidden): one token, one step."""
    tokens = jnp.reshape(token, (1,)).astype(jnp.int32)
    outs, hidden_out = encoder_gru_sequence(prepared, tokens, hidden)
    return outs.reshape(1, 1, -1), hidden_out


# --------------------------------------------------------------------------
# Pure-JAX reference (torch.nn.GRU semantics) for verification.
# --------------------------------------------------------------------------
def _gru_step_reference(params, x, h):
    H = h.shape[-1]
    gi = x @ params["w_ih"].T + params["b_ih"]
    gh = h @ params["w_hh"].T + params["b_hh"]
    i_r, i_z, i_n = gi[:, :H], gi[:, H:2 * H], gi[:, 2 * H:]
    h_r, h_z, h_n = gh[:, :H], gh[:, H:2 * H], gh[:, 2 * H:]
    r = jax.nn.sigmoid(i_r + h_r)
    z = jax.nn.sigmoid(i_z + h_z)
    n = jnp.tanh(i_n + r * h_n)
    return (1.0 - z) * n + z * h


def encoder_rnn_reference_seq(params, tokens, hidden):
    H = params["embedding"].shape[1]
    h = hidden.reshape(1, H)
    outs = []
    for t in range(tokens.shape[0]):
        x = params["embedding"][tokens[t]].reshape(1, H)
        h = _gru_step_reference(params, x, h)
        outs.append(h)
    return jnp.stack(outs, axis=0), h.reshape(1, 1, H)


# --------------------------------------------------------------------------
if __name__ == "__main__":
    INPUT_SIZE = 16      # vocab size
    HIDDEN_SIZE = 32
    SEQ_LEN = 8

    key = jax.random.PRNGKey(0)
    k_params, k_tok = jax.random.split(key)
    params = init_params(k_params, INPUT_SIZE, HIDDEN_SIZE)
    prepared = prepare_kernel_params(params)        # one-time fuse/pad

    tokens = jax.random.randint(k_tok, (SEQ_LEN,), 0, INPUT_SIZE, dtype=jnp.int32)
    hidden0 = jnp.zeros((1, 1, HIDDEN_SIZE), jnp.float32)   # initHidden()

    # Whole sequence in a single kernel launch.
    out_seq, hidden_seq = encoder_gru_sequence(prepared, tokens, hidden0)
    out_seq = jax.block_until_ready(out_seq)
    hidden_seq = jax.block_until_ready(hidden_seq)

    ref_out, ref_hid = encoder_rnn_reference_seq(params, tokens, hidden0)
    assert out_seq.shape == (SEQ_LEN, 1, HIDDEN_SIZE)
    assert hidden_seq.shape == (1, 1, HIDDEN_SIZE)
    assert jnp.allclose(out_seq, ref_out, atol=1e-5), "sequence output mismatch"
    assert jnp.allclose(hidden_seq, ref_hid, atol=1e-5), "final hidden mismatch"

    # Single-step call with the original module's forward signature.
    out1, hid1 = encoder_rnn_forward(prepared, tokens[0], hidden0)
    out1 = jax.block_until_ready(out1)
    hid1 = jax.block_until_ready(hid1)
    r_out1, r_hid1 = encoder_rnn_reference_seq(params, tokens[:1], hidden0)
    assert out1.shape == (1, 1, HIDDEN_SIZE) and hid1.shape == (1, 1, HIDDEN_SIZE)
    assert jnp.allclose(out1, r_out1.reshape(1, 1, HIDDEN_SIZE), atol=1e-5)
    assert jnp.allclose(hid1, r_hid1, atol=1e-5)

    print("KERNEL_OK")
</pallas_src>

<mosaic_0001>
module attributes {stable_mosaic.version = 11 : i64} {
  func.func @encoder_gru_kernel(%arg0: i32, %arg1: memref<8xi32, #tpu.memory_space<smem>>, %arg2: memref<16x1x128xf32, #tpu.memory_space<any>>, %arg3: memref<1x128xf32, #tpu.memory_space<vmem>>, %arg4: memref<128x384xf32, #tpu.memory_space<vmem>>, %arg5: memref<128x384xf32, #tpu.memory_space<vmem>>, %arg6: memref<1x384xf32, #tpu.memory_space<vmem>>, %arg7: memref<1x384xf32, #tpu.memory_space<vmem>>, %arg8: memref<8x128xf32, #tpu.memory_space<vmem>>, %arg9: memref<1x128xf32, #tpu.memory_space<vmem>>, %arg10: memref<2x8x128xf32, #tpu.memory_space<vmem>>, %arg11: memref<8x384xf32, #tpu.memory_space<vmem>>, %arg12: memref<2x8x!tpu.dma_semaphore, #tpu.memory_space<semaphore_mem>>) attributes {dimension_semantics = [#tpu.dimension_semantics<arbitrary>], iteration_bounds = array<i64: 1>, scalar_prefetch = 1 : i64, scratch_operands = 4 : i64, tpu.core_type = #tpu.core_type<tc>, window_params = [{}, {pipeline_mode = #tpu.pipeline_mode<synchronous>, transform_indices = @transform_1, window_bounds = array<i64: 1, 128>}, {pipeline_mode = #tpu.pipeline_mode<synchronous>, transform_indices = @transform_2, window_bounds = array<i64: 128, 384>}, {pipeline_mode = #tpu.pipeline_mode<synchronous>, transform_indices = @transform_3, window_bounds = array<i64: 128, 384>}, {pipeline_mode = #tpu.pipeline_mode<synchronous>, transform_indices = @transform_4, window_bounds = array<i64: 1, 384>}, {pipeline_mode = #tpu.pipeline_mode<synchronous>, transform_indices = @transform_5, window_bounds = array<i64: 1, 384>}, {transform_indices = @transform_6, window_bounds = array<i64: 8, 128>}]} {
    %c0_i32 = arith.constant 0 : i32
    %0 = arith.cmpi eq, %arg0, %c0_i32 : i32
    %1 = arith.extui %0 : i1 to i32
    %c0_i32_0 = arith.constant 0 : i32
    %2 = arith.cmpi ne, %1, %c0_i32_0 : i32
    scf.if %2 {
      %c0_122 = arith.constant 0 : index
      %c0_123 = arith.constant 0 : index
      %334 = vector.load %arg3[%c0_122, %c0_123] : memref<1x128xf32, #tpu.memory_space<vmem>>, vector<1x128xf32>
      %c0_124 = arith.constant 0 : index
      %c0_125 = arith.constant 0 : index
      %335 = vector.load %arg9[%c0_124, %c0_125] : memref<1x128xf32, #tpu.memory_space<vmem>>, vector<1x128xf32>
      tpu.vector_store %arg9[%c0_124, %c0_125], %334 {strides = array<i32>} : memref<1x128xf32, #tpu.memory_space<vmem>>, vector<1x128xf32>,
      %c0_126 = arith.constant 0 : index
      %336 = memref.load %arg1[%c0_126] : memref<8xi32, #tpu.memory_space<smem>>
      %c0_i32_127 = arith.constant 0 : i32
      %c0_i32_128 = arith.constant 0 : i32
      %c0_i32_129 = arith.constant 0 : i32
      %c0_i32_130 = arith.constant 0 : i32
      %c0_i32_131 = arith.constant 0 : i32
      %337 = tpu.memref_slice %arg2[%336, %c0_i32_130, %c0_i32_131] : memref<16x1x128xf32, #tpu.memory_space<any>> -> memref<1x1x128xf32, #tpu.memory_space<any>>
      %338 = tpu.memref_squeeze %337 : memref<1x1x128xf32, #tpu.memory_space<any>> -> memref<1x128xf32, #tpu.memory_space<any>>
      %c0_i32_132 = arith.constant 0 : i32
      %c0_i32_133 = arith.constant 0 : i32
      %339 = tpu.memref_slice %arg10[%c0_i32_127, %c0_i32_132, %c0_i32_133] : memref<2x8x128xf32, #tpu.memory_space<vmem>> -> memref<1x1x128xf32, #tpu.memory_space<vmem>>
      %340 = tpu.memref_squeeze %339 : memref<1x1x128xf32, #tpu.memory_space<vmem>> -> memref<1x128xf32, #tpu.memory_space<vmem>>
      %341 = tpu.memref_slice %arg12[%c0_i32_128, %c0_i32_129] : memref<2x8x!tpu.dma_semaphore, #tpu.memory_space<semaphore_mem>> -> memref<1x1x!tpu.dma_semaphore, #tpu.memory_space<semaphore_mem>>
      %342 = tpu.memref_squeeze %341 : memref<1x1x!tpu.dma_semaphore, #tpu.memory_space<semaphore_mem>> -> memref<!tpu.dma_semaphore, #tpu.memory_space<semaphore_mem>>
      tpu.enqueue_dma source(%338 : memref<1x128xf32, #tpu.memory_space<any>>) target(%340 : memref<1x128xf32, #tpu.memory_space<vmem>>) target_semaphore(%342 : memref<!tpu.dma_semaphore, #tpu.memory_space<semaphore_mem>>)
      %c1 = arith.constant 1 : index
      %343 = memref.load %arg1[%c1] : memref<8xi32, #tpu.memory_space<smem>>
      %c0_i32_134 = arith.constant 0 : i32
      %c0_i32_135 = arith.constant 0 : i32
      %c1_i32_136 = arith.constant 1 : i32
      %c0_i32_137 = arith.constant 0 : i32
      %c0_i32_138 = arith.constant 0 : i32
      %344 = tpu.memref_slice %arg2[%343, %c0_i32_137, %c0_i32_138] : memref<16x1x128xf32, #tpu.memory_space<any>> -> memref<1x1x128xf32, #tpu.memory_space<any>>
      %345 = tpu.memref_squeeze %344 : memref<1x1x128xf32, #tpu.memory_space<any>> -> memref<1x128xf32, #tpu.memory_space<any>>
      %c1_i32_139 = arith.constant 1 : i32
      %c0_i32_140 = arith.constant 0 : i32
      %346 = tpu.memref_slice %arg10[%c0_i32_134, %c1_i32_139, %c0_i32_140] : memref<2x8x128xf32, #tpu.memory_space<vmem>> -> memref<1x1x128xf32, #tpu.memory_space<vmem>>
      %347 = tpu.memref_squeeze %346 : memref<1x1x128xf32, #tpu.memory_space<vmem>> -> memref<1x128xf32, #tpu.memory_space<vmem>>
      %348 = tpu.memref_slice %arg12[%c0_i32_135, %c1_i32_136] : memref<2x8x!tpu.dma_semaphore, #tpu.memory_space<semaphore_mem>> -> memref<1x1x!tpu.dma_semaphore, #tpu.memory_space<semaphore_mem>>
      %349 = tpu.memref_squeeze %348 : memref<1x1x!tpu.dma_semaphore, #tpu.memory_space<semaphore_mem>> -> memref<!tpu.dma_semaphore, #tpu.memory_space<semaphore_mem>>
      tpu.enqueue_dma source(%345 : memref<1x128xf32, #tpu.memory_space<any>>) target(%347 : memref<1x128xf32, #tpu.memory_space<vmem>>) target_semaphore(%349 : memref<!tpu.dma_semaphore, #tpu.memory_space<semaphore_mem>>)
      %c2 = arith.constant 2 : index
      %350 = memref.load %arg1[%c2] : memref<8xi32, #tpu.memory_space<smem>>
      %c0_i32_141 = arith.constant 0 : i32
      %c0_i32_142 = arith.constant 0 : i32
      %c2_i32_143 = arith.constant 2 : i32
      %c0_i32_144 = arith.constant 0 : i32
      %c0_i32_145 = arith.constant 0 : i32
      %351 = tpu.memref_slice %arg2[%350, %c0_i32_144, %c0_i32_145] : memref<16x1x128xf32, #tpu.memory_space<any>> -> memref<1x1x128xf32, #tpu.memory_space<any>>
      %352 = tpu.memref_squeeze %351 : memref<1x1x128xf32, #tpu.memory_space<any>> -> memref<1x128xf32, #tpu.memory_space<any>>
      %c2_i32_146 = arith.constant 2 : i32
      %c0_i32_147 = arith.constant 0 : i32
      %353 = tpu.memref_slice %arg10[%c0_i32_141, %c2_i32_146, %c0_i32_147] : memref<2x8x128xf32, #tpu.memory_space<vmem>> -> memref<1x1x128xf32, #tpu.memory_space<vmem>>
      %354 = tpu.memref_squeeze %353 : memref<1x1x128xf32, #tpu.memory_space<vmem>> -> memref<1x128xf32, #tpu.memory_space<vmem>>
      %355 = tpu.memref_slice %arg12[%c0_i32_142, %c2_i32_143] : memref<2x8x!tpu.dma_semaphore, #tpu.memory_space<semaphore_mem>> -> memref<1x1x!tpu.dma_semaphore, #tpu.memory_space<semaphore_mem>>
      %356 = tpu.memref_squeeze %355 : memref<1x1x!tpu.dma_semaphore, #tpu.memory_space<semaphore_mem>> -> memref<!tpu.dma_semaphore, #tpu.memory_space<semaphore_mem>>
      tpu.enqueue_dma source(%352 : memref<1x128xf32, #tpu.memory_space<any>>) target(%354 : memref<1x128xf32, #tpu.memory_space<vmem>>) target_semaphore(%356 : memref<!tpu.dma_semaphore, #tpu.memory_space<semaphore_mem>>)
      %c3 = arith.constant 3 : index
      %357 = memref.load %arg1[%c3] : memref<8xi32, #tpu.memory_space<smem>>
      %c0_i32_148 = arith.constant 0 : i32
      %c0_i32_149 = arith.constant 0 : i32
      %c3_i32_150 = arith.constant 3 : i32
      %c0_i32_151 = arith.constant 0 : i32
      %c0_i32_152 = arith.constant 0 : i32
      %358 = tpu.memref_slice %arg2[%357, %c0_i32_151, %c0_i32_152] : memref<16x1x128xf32, #tpu.memory_space<any>> -> memref<1x1x128xf32, #tpu.memory_space<any>>
      %359 = tpu.memref_squeeze %358 : memref<1x1x128xf32, #tpu.memory_space<any>> -> memref<1x128xf32, #tpu.memory_space<any>>
      %c3_i32_153 = arith.constant 3 : i32
      %c0_i32_154 = arith.constant 0 : i32
      %360 = tpu.memref_slice %arg10[%c0_i32_148, %c3_i32_153, %c0_i32_154] : memref<2x8x128xf32, #tpu.memory_space<vmem>> -> memref<1x1x128xf32, #tpu.memory_space<vmem>>
      %361 = tpu.memref_squeeze %360 : memref<1x1x128xf32, #tpu.memory_space<vmem>> -> memref<1x128xf32, #tpu.memory_space<vmem>>
      %362 = tpu.memref_slice %arg12[%c0_i32_149, %c3_i32_150] : memref<2x8x!tpu.dma_semaphore, #tpu.memory_space<semaphore_mem>> -> memref<1x1x!tpu.dma_semaphore, #tpu.memory_space<semaphore_mem>>
      %363 = tpu.memref_squeeze %362 : memref<1x1x!tpu.dma_semaphore, #tpu.memory_space<semaphore_mem>> -> memref<!tpu.dma_semaphore, #tpu.memory_space<semaphore_mem>>
      tpu.enqueue_dma source(%359 : memref<1x128xf32, #tpu.memory_space<any>>) target(%361 : memref<1x128xf32, #tpu.memory_space<vmem>>) target_semaphore(%363 : memref<!tpu.dma_semaphore, #tpu.memory_space<semaphore_mem>>)
      %c4 = arith.constant 4 : index
      %364 = memref.load %arg1[%c4] : memref<8xi32, #tpu.memory_space<smem>>
      %c0_i32_155 = arith.constant 0 : i32
      %c0_i32_156 = arith.constant 0 : i32
      %c4_i32_157 = arith.constant 4 : i32
      %c0_i32_158 = arith.constant 0 : i32
      %c0_i32_159 = arith.constant 0 : i32
      %365 = tpu.memref_slice %arg2[%364, %c0_i32_158, %c0_i32_159] : memref<16x1x128xf32, #tpu.memory_space<any>> -> memref<1x1x128xf32, #tpu.memory_space<any>>
      %366 = tpu.memref_squeeze %365 : memref<1x1x128xf32, #tpu.memory_space<any>> -> memref<1x128xf32, #tpu.memory_space<any>>
      %c4_i32_160 = arith.constant 4 : i32
      %c0_i32_161 = arith.constant 0 : i32
      %367 = tpu.memref_slice %arg10[%c0_i32_155, %c4_i32_160, %c0_i32_161] : memref<2x8x128xf32, #tpu.memory_space<vmem>> -> memref<1x1x128xf32, #tpu.memory_space<vmem>>
      %368 = tpu.memref_squeeze %367 : memref<1x1x128xf32, #tpu.memory_space<vmem>> -> memref<1x128xf32, #tpu.memory_space<vmem>>
      %369 = tpu.memref_slice %arg12[%c0_i32_156, %c4_i32_157] : memref<2x8x!tpu.dma_semaphore, #tpu.memory_space<semaphore_mem>> -> memref<1x1x!tpu.dma_semaphore, #tpu.memory_space<semaphore_mem>>
      %370 = tpu.memref_squeeze %369 : memref<1x1x!tpu.dma_semaphore, #tpu.memory_space<semaphore_mem>> -> memref<!tpu.dma_semaphore, #tpu.memory_space<semaphore_mem>>
      tpu.enqueue_dma source(%366 : memref<1x128xf32, #tpu.memory_space<any>>) target(%368 : memref<1x128xf32, #tpu.memory_space<vmem>>) target_semaphore(%370 : memref<!tpu.dma_semaphore, #tpu.memory_space<semaphore_mem>>)
      %c5 = arith.constant 5 : index
      %371 = memref.load %arg1[%c5] : memref<8xi32, #tpu.memory_space<smem>>
      %c0_i32_162 = arith.constant 0 : i32
      %c0_i32_163 = arith.constant 0 : i32
      %c5_i32_164 = arith.constant 5 : i32
      %c0_i32_165 = arith.constant 0 : i32
      %c0_i32_166 = arith.constant 0 : i32
      %372 = tpu.memref_slice %arg2[%371, %c0_i32_165, %c0_i32_166] : memref<16x1x128xf32, #tpu.memory_space<any>> -> memref<1x1x128xf32, #tpu.memory_space<any>>
      %373 = tpu.memref_squeeze %372 : memref<1x1x128xf32, #tpu.memory_space<any>> -> memref<1x128xf32, #tpu.memory_space<any>>
      %c5_i32_167 = arith.constant 5 : i32
      %c0_i32_168 = arith.constant 0 : i32
      %374 = tpu.memref_slice %arg10[%c0_i32_162, %c5_i32_167, %c0_i32_168] : memref<2x8x128xf32, #tpu.memory_space<vmem>> -> memref<1x1x128xf32, #tpu.memory_space<vmem>>
      %375 = tpu.memref_squeeze %374 : memref<1x1x128xf32, #tpu.memory_space<vmem>> -> memref<1x128xf32, #tpu.memory_space<vmem>>
      %376 = tpu.memref_slice %arg12[%c0_i32_163, %c5_i32_164] : memref<2x8x!tpu.dma_semaphore, #tpu.memory_space<semaphore_mem>> -> memref<1x1x!tpu.dma_semaphore, #tpu.memory_space<semaphore_mem>>
      %377 = tpu.memref_squeeze %376 : memref<1x1x!tpu.dma_semaphore, #tpu.memory_space<semaphore_mem>> -> memref<!tpu.dma_semaphore, #tpu.memory_space<semaphore_mem>>
      tpu.enqueue_dma source(%373 : memref<1x128xf32, #tpu.memory_space<any>>) target(%375 : memref<1x128xf32, #tpu.memory_space<vmem>>) target_semaphore(%377 : memref<!tpu.dma_semaphore, #tpu.memory_space<semaphore_mem>>)
      %c6 = arith.constant 6 : index
      %378 = memref.load %arg1[%c6] : memref<8xi32, #tpu.memory_space<smem>>
      %c0_i32_169 = arith.constant 0 : i32
      %c0_i32_170 = arith.constant 0 : i32
      %c6_i32_171 = arith.constant 6 : i32
      %c0_i32_172 = arith.constant 0 : i32
      %c0_i32_173 = arith.constant 0 : i32
      %379 = tpu.memref_slice %arg2[%378, %c0_i32_172, %c0_i32_173] : memref<16x1x128xf32, #tpu.memory_space<any>> -> memref<1x1x128xf32, #tpu.memory_space<any>>
      %380 = tpu.memref_squeeze %379 : memref<1x1x128xf32, #tpu.memory_space<any>> -> memref<1x128xf32, #tpu.memory_space<any>>
      %c6_i32_174 = arith.constant 6 : i32
      %c0_i32_175 = arith.constant 0 : i32
      %381 = tpu.memref_slice %arg10[%c0_i32_169, %c6_i32_174, %c0_i32_175] : memref<2x8x128xf32, #tpu.memory_space<vmem>> -> memref<1x1x128xf32, #tpu.memory_space<vmem>>
      %382 = tpu.memref_squeeze %381 : memref<1x1x128xf32, #tpu.memory_space<vmem>> -> memref<1x128xf32, #tpu.memory_space<vmem>>
      %383 = tpu.memref_slice %arg12[%c0_i32_170, %c6_i32_171] : memref<2x8x!tpu.dma_semaphore, #tpu.memory_space<semaphore_mem>> -> memref<1x1x!tpu.dma_semaphore, #tpu.memory_space<semaphore_mem>>
      %384 = tpu.memref_squeeze %383 : memref<1x1x!tpu.dma_semaphore, #tpu.memory_space<semaphore_mem>> -> memref<!tpu.dma_semaphore, #tpu.memory_space<semaphore_mem>>
      tpu.enqueue_dma source(%380 : memref<1x128xf32, #tpu.memory_space<any>>) target(%382 : memref<1x128xf32, #tpu.memory_space<vmem>>) target_semaphore(%384 : memref<!tpu.dma_semaphore, #tpu.memory_space<semaphore_mem>>)
      %c7 = arith.constant 7 : index
      %385 = memref.load %arg1[%c7] : memref<8xi32, #tpu.memory_space<smem>>
      %c0_i32_176 = arith.constant 0 : i32
      %c0_i32_177 = arith.constant 0 : i32
      %c7_i32_178 = arith.constant 7 : i32
      %c0_i32_179 = arith.constant 0 : i32
      %c0_i32_180 = arith.constant 0 : i32
      %386 = tpu.memref_slice %arg2[%385, %c0_i32_179, %c0_i32_180] : memref<16x1x128xf32, #tpu.memory_space<any>> -> memref<1x1x128xf32, #tpu.memory_space<any>>
      %387 = tpu.memref_squeeze %386 : memref<1x1x128xf32, #tpu.memory_space<any>> -> memref<1x128xf32, #tpu.memory_space<any>>
      %c7_i32_181 = arith.constant 7 : i32
      %c0_i32_182 = arith.constant 0 : i32
      %388 = tpu.memref_slice %arg10[%c0_i32_176, %c7_i32_181, %c0_i32_182] : memref<2x8x128xf32, #tpu.memory_space<vmem>> -> memref<1x1x128xf32, #tpu.memory_space<vmem>>
      %389 = tpu.memref_squeeze %388 : memref<1x1x128xf32, #tpu.memory_space<vmem>> -> memref<1x128xf32, #tpu.memory_space<vmem>>
      %390 = tpu.memref_slice %arg12[%c0_i32_177, %c7_i32_178] : memref<2x8x!tpu.dma_semaphore, #tpu.memory_space<semaphore_mem>> -> memref<1x1x!tpu.dma_semaphore, #tpu.memory_space<semaphore_mem>>
      %391 = tpu.memref_squeeze %390 : memref<1x1x!tpu.dma_semaphore, #tpu.memory_space<semaphore_mem>> -> memref<!tpu.dma_semaphore, #tpu.memory_space<semaphore_mem>>
      tpu.enqueue_dma source(%387 : memref<1x128xf32, #tpu.memory_space<any>>) target(%389 : memref<1x128xf32, #tpu.memory_space<vmem>>) target_semaphore(%391 : memref<!tpu.dma_semaphore, #tpu.memory_space<semaphore_mem>>)
    } else {
    }
    %c2_i32 = arith.constant 2 : i32
    %c0_i32_1 = arith.constant 0 : i32
    %3 = arith.cmpi eq, %c2_i32, %c0_i32_1 : i32
    %c1_i32 = arith.constant 1 : i32
    %4 = arith.select %3, %c1_i32, %c2_i32 : i32
    %5 = arith.remsi %arg0, %4 : i32
    %c0_i32_2 = arith.constant 0 : i32
    %6 = arith.cmpi ne, %5, %c0_i32_2 : i32
    %c0_i32_3 = arith.constant 0 : i32
    %7 = arith.cmpi slt, %5, %c0_i32_3 : i32
    %c0_i32_4 = arith.constant 0 : i32
    %8 = arith.cmpi slt, %4, %c0_i32_4 : i32
    %9 = arith.xori %7, %8 : i1
    %10 = arith.andi %9, %6 : i1
    %11 = arith.addi %5, %4 : i32
    %12 = arith.select %10, %11, %5 : i32
    %c1_i32_5 = arith.constant 1 : i32
    %13 = arith.addi %arg0, %c1_i32_5 : i32
    %c1_i32_6 = arith.constant 1 : i32
    %14 = arith.cmpi slt, %13, %c1_i32_6 : i32
    %15 = arith.extui %14 : i1 to i32
    %c0_i32_7 = arith.constant 0 : i32
    %16 = arith.cmpi ne, %15, %c0_i32_7 : i32
    scf.if %16 {
      %c1_i32_122 = arith.constant 1 : i32
      %334 = arith.addi %arg0, %c1_i32_122 : i32
      %c1_i32_123 = arith.constant 1 : i32
      %335 = arith.subi %c1_i32_123, %12 : i32
      %c8_i32_124 = arith.constant 8 : i32
      %336 = arith.muli %334, %c8_i32_124 : i32
      %c0_i32_125 = arith.constant 0 : i32
      %337 = arith.addi %336, %c0_i32_125 : i32
      %338 = arith.index_cast %337 : i32 to index
      %339 = memref.load %arg1[%338] : memref<8xi32, #tpu.memory_space<smem>>
      %c0_i32_126 = arith.constant 0 : i32
      %c0_i32_127 = arith.constant 0 : i32
      %c0_i32_128 = arith.constant 0 : i32
      %340 = tpu.memref_slice %arg2[%339, %c0_i32_127, %c0_i32_128] : memref<16x1x128xf32, #tpu.memory_space<any>> -> memref<1x1x128xf32, #tpu.memory_space<any>>
      %341 = tpu.memref_squeeze %340 : memref<1x1x128xf32, #tpu.memory_space<any>> -> memref<1x128xf32, #tpu.memory_space<any>>
      %c0_i32_129 = arith.constant 0 : i32
      %c0_i32_130 = arith.constant 0 : i32
      %342 = tpu.memref_slice %arg10[%335, %c0_i32_129, %c0_i32_130] : memref<2x8x128xf32, #tpu.memory_space<vmem>> -> memref<1x1x128xf32, #tpu.memory_space<vmem>>
      %343 = tpu.memref_squeeze %342 : memref<1x1x128xf32, #tpu.memory_space<vmem>> -> memref<1x128xf32, #tpu.memory_space<vmem>>
      %344 = tpu.memref_slice %arg12[%335, %c0_i32_126] : memref<2x8x!tpu.dma_semaphore, #tpu.memory_space<semaphore_mem>> -> memref<1x1x!tpu.dma_semaphore, #tpu.memory_space<semaphore_mem>>
      %345 = tpu.memref_squeeze %344 : memref<1x1x!tpu.dma_semaphore, #tpu.memory_space<semaphore_mem>> -> memref<!tpu.dma_semaphore, #tpu.memory_space<semaphore_mem>>
      tpu.enqueue_dma source(%341 : memref<1x128xf32, #tpu.memory_space<any>>) target(%343 : memref<1x128xf32, #tpu.memory_space<vmem>>) target_semaphore(%345 : memref<!tpu.dma_semaphore, #tpu.memory_space<semaphore_mem>>)
      %c1_i32_131 = arith.constant 1 : i32
      %346 = arith.addi %336, %c1_i32_131 : i32
      %347 = arith.index_cast %346 : i32 to index
      %348 = memref.load %arg1[%347] : memref<8xi32, #tpu.memory_space<smem>>
      %c1_i32_132 = arith.constant 1 : i32
      %c0_i32_133 = arith.constant 0 : i32
      %c0_i32_134 = arith.constant 0 : i32
      %349 = tpu.memref_slice %arg2[%348, %c0_i32_133, %c0_i32_134] : memref<16x1x128xf32, #tpu.memory_space<any>> -> memref<1x1x128xf32, #tpu.memory_space<any>>
      %350 = tpu.memref_squeeze %349 : memref<1x1x128xf32, #tpu.memory_space<any>> -> memref<1x128xf32, #tpu.memory_space<any>>
      %c1_i32_135 = arith.constant 1 : i32
      %c0_i32_136 = arith.constant 0 : i32
      %351 = tpu.memref_slice %arg10[%335, %c1_i32_135, %c0_i32_136] : memref<2x8x128xf32, #tpu.memory_space<vmem>> -> memref<1x1x128xf32, #tpu.memory_space<vmem>>
      %352 = tpu.memref_squeeze %351 : memref<1x1x128xf32, #tpu.memory_space<vmem>> -> memref<1x128xf32, #tpu.memory_space<vmem>>
      %353 = tpu.memref_slice %arg12[%335, %c1_i32_132] : memref<2x8x!tpu.dma_semaphore, #tpu.memory_space<semaphore_mem>> -> memref<1x1x!tpu.dma_semaphore, #tpu.memory_space<semaphore_mem>>
      %354 = tpu.memref_squeeze %353 : memref<1x1x!tpu.dma_semaphore, #tpu.memory_space<semaphore_mem>> -> memref<!tpu.dma_semaphore, #tpu.memory_space<semaphore_mem>>
      tpu.enqueue_dma source(%350 : memref<1x128xf32, #tpu.memory_space<any>>) target(%352 : memref<1x128xf32, #tpu.memory_space<vmem>>) target_semaphore(%354 : memref<!tpu.dma_semaphore, #tpu.memory_space<semaphore_mem>>)
      %c2_i32_137 = arith.constant 2 : i32
      %355 = arith.addi %336, %c2_i32_137 : i32
      %356 = arith.index_cast %355 : i32 to index
      %357 = memref.load %arg1[%356] : memref<8xi32, #tpu.memory_space<smem>>
      %c2_i32_138 = arith.constant 2 : i32
      %c0_i32_139 = arith.constant 0 : i32
      %c0_i32_140 = arith.constant 0 : i32
      %358 = tpu.memref_slice %arg2[%357, %c0_i32_139, %c0_i32_140] : memref<16x1x128xf32, #tpu.memory_space<any>> -> memref<1x1x128xf32, #tpu.memory_space<any>>
      %359 = tpu.memref_squeeze %358 : memref<1x1x128xf32, #tpu.memory_space<any>> -> memref<1x128xf32, #tpu.memory_space<any>>
      %c2_i32_141 = arith.constant 2 : i32
      %c0_i32_142 = arith.constant 0 : i32
      %360 = tpu.memref_slice %arg10[%335, %c2_i32_141, %c0_i32_142] : memref<2x8x128xf32, #tpu.memory_space<vmem>> -> memref<1x1x128xf32, #tpu.memory_space<vmem>>
      %361 = tpu.memref_squeeze %360 : memref<1x1x128xf32, #tpu.memory_space<vmem>> -> memref<1x128xf32, #tpu.memory_space<vmem>>
      %362 = tpu.memref_slice %arg12[%335, %c2_i32_138] : memref<2x8x!tpu.dma_semaphore, #tpu.memory_space<semaphore_mem>> -> memref<1x1x!tpu.dma_semaphore, #tpu.memory_space<semaphore_mem>>
      %363 = tpu.memref_squeeze %362 : memref<1x1x!tpu.dma_semaphore, #tpu.memory_space<semaphore_mem>> -> memref<!tpu.dma_semaphore, #tpu.memory_space<semaphore_mem>>
      tpu.enqueue_dma source(%359 : memref<1x128xf32, #tpu.memory_space<any>>) target(%361 : memref<1x128xf32, #tpu.memory_space<vmem>>) target_semaphore(%363 : memref<!tpu.dma_semaphore, #tpu.memory_space<semaphore_mem>>)
      %c3_i32_143 = arith.constant 3 : i32
      %364 = arith.addi %336, %c3_i32_143 : i32
      %365 = arith.index_cast %364 : i32 to index
      %366 = memref.load %arg1[%365] : memref<8xi32, #tpu.memory_space<smem>>
      %c3_i32_144 = arith.constant 3 : i32
      %c0_i32_145 = arith.constant 0 : i32
      %c0_i32_146 = arith.constant 0 : i32
      %367 = tpu.memref_slice %arg2[%366, %c0_i32_145, %c0_i32_146] : memref<16x1x128xf32, #tpu.memory_space<any>> -> memref<1x1x128xf32, #tpu.memory_space<any>>
      %368 = tpu.memref_squeeze %367 : memref<1x1x128xf32, #tpu.memory_space<any>> -> memref<1x128xf32, #tpu.memory_space<any>>
      %c3_i32_147 = arith.constant 3 : i32
      %c0_i32_148 = arith.constant 0 : i32
      %369 = tpu.memref_slice %arg10[%335, %c3_i32_147, %c0_i32_148] : memref<2x8x128xf32, #tpu.memory_space<vmem>> -> memref<1x1x128xf32, #tpu.memory_space<vmem>>
      %370 = tpu.memref_squeeze %369 : memref<1x1x128xf32, #tpu.memory_space<vmem>> -> memref<1x128xf32, #tpu.memory_space<vmem>>
      %371 = tpu.memref_slice %arg12[%335, %c3_i32_144] : memref<2x8x!tpu.dma_semaphore, #tpu.memory_space<semaphore_mem>> -> memref<1x1x!tpu.dma_semaphore, #tpu.memory_space<semaphore_mem>>
      %372 = tpu.memref_squeeze %371 : memref<1x1x!tpu.dma_semaphore, #tpu.memory_space<semaphore_mem>> -> memref<!tpu.dma_semaphore, #tpu.memory_space<semaphore_mem>>
      tpu.enqueue_dma source(%368 : memref<1x128xf32, #tpu.memory_space<any>>) target(%370 : memref<1x128xf32, #tpu.memory_space<vmem>>) target_semaphore(%372 : memref<!tpu.dma_semaphore, #tpu.memory_space<semaphore_mem>>)
      %c4_i32_149 = arith.constant 4 : i32
      %373 = arith.addi %336, %c4_i32_149 : i32
      %374 = arith.index_cast %373 : i32 to index
      %375 = memref.load %arg1[%374] : memref<8xi32, #tpu.memory_space<smem>>
      %c4_i32_150 = arith.constant 4 : i32
      %c0_i32_151 = arith.constant 0 : i32
      %c0_i32_152 = arith.constant 0 : i32
      %376 = tpu.memref_slice %arg2[%375, %c0_i32_151, %c0_i32_152] : memref<16x1x128xf32, #tpu.memory_space<any>> -> memref<1x1x128xf32, #tpu.memory_space<any>>
      %377 = tpu.memref_squeeze %376 : memref<1x1x128xf32, #tpu.memory_space<any>> -> memref<1x128xf32, #tpu.memory_space<any>>
      %c4_i32_153 = arith.constant 4 : i32
      %c0_i32_154 = arith.constant 0 : i32
      %378 = tpu.memref_slice %arg10[%335, %c4_i32_153, %c0_i32_154] : memref<2x8x128xf32, #tpu.memory_space<vmem>> -> memref<1x1x128xf32, #tpu.memory_space<vmem>>
      %379 = tpu.memref_squeeze %378 : memref<1x1x128xf32, #tpu.memory_space<vmem>> -> memref<1x128xf32, #tpu.memory_space<vmem>>
      %380 = tpu.memref_slice %arg12[%335, %c4_i32_150] : memref<2x8x!tpu.dma_semaphore, #tpu.memory_space<semaphore_mem>> -> memref<1x1x!tpu.dma_semaphore, #tpu.memory_space<semaphore_mem>>
      %381 = tpu.memref_squeeze %380 : memref<1x1x!tpu.dma_semaphore, #tpu.memory_space<semaphore_mem>> -> memref<!tpu.dma_semaphore, #tpu.memory_space<semaphore_mem>>
      tpu.enqueue_dma source(%377 : memref<1x128xf32, #tpu.memory_space<any>>) target(%379 : memref<1x128xf32, #tpu.memory_space<vmem>>) target_semaphore(%381 : memref<!tpu.dma_semaphore, #tpu.memory_space<semaphore_mem>>)
      %c5_i32_155 = arith.constant 5 : i32
      %382 = arith.addi %336, %c5_i32_155 : i32
      %383 = arith.index_cast %382 : i32 to index
      %384 = memref.load %arg1[%383] : memref<8xi32, #tpu.memory_space<smem>>
      %c5_i32_156 = arith.constant 5 : i32
      %c0_i32_157 = arith.constant 0 : i32
      %c0_i32_158 = arith.constant 0 : i32
      %385 = tpu.memref_slice %arg2[%384, %c0_i32_157, %c0_i32_158] : memref<16x1x128xf32, #tpu.memory_space<any>> -> memref<1x1x128xf32, #tpu.memory_space<any>>
      %386 = tpu.memref_squeeze %385 : memref<1x1x128xf32, #tpu.memory_space<any>> -> memref<1x128xf32, #tpu.memory_space<any>>
      %c5_i32_159 = arith.constant 5 : i32
      %c0_i32_160 = arith.constant 0 : i32
      %387 = tpu.memref_slice %arg10[%335, %c5_i32_159, %c0_i32_160] : memref<2x8x128xf32, #tpu.memory_space<vmem>> -> memref<1x1x128xf32, #tpu.memory_space<vmem>>
      %388 = tpu.memref_squeeze %387 : memref<1x1x128xf32, #tpu.memory_space<vmem>> -> memref<1x128xf32, #tpu.memory_space<vmem>>
      %389 = tpu.memref_slice %arg12[%335, %c5_i32_156] : memref<2x8x!tpu.dma_semaphore, #tpu.memory_space<semaphore_mem>> -> memref<1x1x!tpu.dma_semaphore, #tpu.memory_space<semaphore_mem>>
      %390 = tpu.memref_squeeze %389 : memref<1x1x!tpu.dma_semaphore, #tpu.memory_space<semaphore_mem>> -> memref<!tpu.dma_semaphore, #tpu.memory_space<semaphore_mem>>
      tpu.enqueue_dma source(%386 : memref<1x128xf32, #tpu.memory_space<any>>) target(%388 : memref<1x128xf32, #tpu.memory_space<vmem>>) target_semaphore(%390 : memref<!tpu.dma_semaphore, #tpu.memory_space<semaphore_mem>>)
      %c6_i32_161 = arith.constant 6 : i32
      %391 = arith.addi %336, %c6_i32_161 : i32
      %392 = arith.index_cast %391 : i32 to index
      %393 = memref.load %arg1[%392] : memref<8xi32, #tpu.memory_space<smem>>
      %c6_i32_162 = arith.constant 6 : i32
      %c0_i32_163 = arith.constant 0 : i32
      %c0_i32_164 = arith.constant 0 : i32
      %394 = tpu.memref_slice %arg2[%393, %c0_i32_163, %c0_i32_164] : memref<16x1x128xf32, #tpu.memory_space<any>> -> memref<1x1x128xf32, #tpu.memory_space<any>>
      %395 = tpu.memref_squeeze %394 : memref<1x1x128xf32, #tpu.memory_space<any>> -> memref<1x128xf32, #tpu.memory_space<any>>
      %c6_i32_165 = arith.constant 6 : i32
      %c0_i32_166 = arith.constant 0 : i32
      %396 = tpu.memref_slice %arg10[%335, %c6_i32_165, %c0_i32_166] : memref<2x8x128xf32, #tpu.memory_space<vmem>> -> memref<1x1x128xf32, #tpu.memory_space<vmem>>
      %397 = tpu.memref_squeeze %396 : memref<1x1x128xf32, #tpu.memory_space<vmem>> -> memref<1x128xf32, #tpu.memory_space<vmem>>
      %398 = tpu.memref_slice %arg12[%335, %c6_i32_162] : memref<2x8x!tpu.dma_semaphore, #tpu.memory_space<semaphore_mem>> -> memref<1x1x!tpu.dma_semaphore, #tpu.memory_space<semaphore_mem>>
      %399 = tpu.memref_squeeze %398 : memref<1x1x!tpu.dma_semaphore, #tpu.memory_space<semaphore_mem>> -> memref<!tpu.dma_semaphore, #tpu.memory_space<semaphore_mem>>
      tpu.enqueue_dma source(%395 : memref<1x128xf32, #tpu.memory_space<any>>) target(%397 : memref<1x128xf32, #tpu.memory_space<vmem>>) target_semaphore(%399 : memref<!tpu.dma_semaphore, #tpu.memory_space<semaphore_mem>>)
      %c7_i32_167 = arith.constant 7 : i32
      %400 = arith.addi %336, %c7_i32_167 : i32
      %401 = arith.index_cast %400 : i32 to index
      %402 = memref.load %arg1[%401] : memref<8xi32, #tpu.memory_space<smem>>
      %c7_i32_168 = arith.constant 7 : i32
      %c0_i32_169 = arith.constant 0 : i32
      %c0_i32_170 = arith.constant 0 : i32
      %403 = tpu.memref_slice %arg2[%402, %c0_i32_169, %c0_i32_170] : memref<16x1x128xf32, #tpu.memory_space<any>> -> memref<1x1x128xf32, #tpu.memory_space<any>>
      %404 = tpu.memref_squeeze %403 : memref<1x1x128xf32, #tpu.memory_space<any>> -> memref<1x128xf32, #tpu.memory_space<any>>
      %c7_i32_171 = arith.constant 7 : i32
      %c0_i32_172 = arith.constant 0 : i32
      %405 = tpu.memref_slice %arg10[%335, %c7_i32_171, %c0_i32_172] : memref<2x8x128xf32, #tpu.memory_space<vmem>> -> memref<1x1x128xf32, #tpu.memory_space<vmem>>
      %406 = tpu.memref_squeeze %405 : memref<1x1x128xf32, #tpu.memory_space<vmem>> -> memref<1x128xf32, #tpu.memory_space<vmem>>
      %407 = tpu.memref_slice %arg12[%335, %c7_i32_168] : memref<2x8x!tpu.dma_semaphore, #tpu.memory_space<semaphore_mem>> -> memref<1x1x!tpu.dma_semaphore, #tpu.memory_space<semaphore_mem>>
      %408 = tpu.memref_squeeze %407 : memref<1x1x!tpu.dma_semaphore, #tpu.memory_space<semaphore_mem>> -> memref<!tpu.dma_semaphore, #tpu.memory_space<semaphore_mem>>
      tpu.enqueue_dma source(%404 : memref<1x128xf32, #tpu.memory_space<any>>) target(%406 : memref<1x128xf32, #tpu.memory_space<vmem>>) target_semaphore(%408 : memref<!tpu.dma_semaphore, #tpu.memory_space<semaphore_mem>>)
    } else {
    }
    %c0_i32_8 = arith.constant 0 : i32
    %c0_i32_9 = arith.constant 0 : i32
    %c0_i32_10 = arith.constant 0 : i32
    %c0_i32_11 = arith.constant 0 : i32
    %17 = tpu.memref_slice %arg2[%c0_i32_8, %c0_i32_10, %c0_i32_11] : memref<16x1x128xf32, #tpu.memory_space<any>> -> memref<1x1x128xf32, #tpu.memory_space<any>>
    %18 = tpu.memref_squeeze %17 : memref<1x1x128xf32, #tpu.memory_space<any>> -> memref<1x128xf32, #tpu.memory_space<any>>
    %c0_i32_12 = arith.constant 0 : i32
    %c0_i32_13 = arith.constant 0 : i32
    %19 = tpu.memref_slice %arg10[%12, %c0_i32_12, %c0_i32_13] : memref<2x8x128xf32, #tpu.memory_space<vmem>> -> memref<1x1x128xf32, #tpu.memory_space<vmem>>
    %20 = tpu.memref_squeeze %19 : memref<1x1x128xf32, #tpu.memory_space<vmem>> -> memref<1x128xf32, #tpu.memory_space<vmem>>
    %21 = tpu.memref_slice %arg12[%12, %c0_i32_9] : memref<2x8x!tpu.dma_semaphore, #tpu.memory_space<semaphore_mem>> -> memref<1x1x!tpu.dma_semaphore, #tpu.memory_space<semaphore_mem>>
    %22 = tpu.memref_squeeze %21 : memref<1x1x!tpu.dma_semaphore, #tpu.memory_space<semaphore_mem>> -> memref<!tpu.dma_semaphore, #tpu.memory_space<semaphore_mem>>
    tpu.wait_dma2 semaphore(%22 : memref<!tpu.dma_semaphore, #tpu.memory_space<semaphore_mem>>) src(%18 : memref<1x128xf32, #tpu.memory_space<any>>) dst(%20 : memref<1x128xf32, #tpu.memory_space<vmem>>)
    %c0_i32_14 = arith.constant 0 : i32
    %c1_i32_15 = arith.constant 1 : i32
    %c0_i32_16 = arith.constant 0 : i32
    %c0_i32_17 = arith.constant 0 : i32
    %23 = tpu.memref_slice %arg2[%c0_i32_14, %c0_i32_16, %c0_i32_17] : memref<16x1x128xf32, #tpu.memory_space<any>> -> memref<1x1x128xf32, #tpu.memory_space<any>>
    %24 = tpu.memref_squeeze %23 : memref<1x1x128xf32, #tpu.memory_space<any>> -> memref<1x128xf32, #tpu.memory_space<any>>
    %c1_i32_18 = arith.constant 1 : i32
    %c0_i32_19 = arith.constant 0 : i32
    %25 = tpu.memref_slice %arg10[%12, %c1_i32_18, %c0_i32_19] : memref<2x8x128xf32, #tpu.memory_space<vmem>> -> memref<1x1x128xf32, #tpu.memory_space<vmem>>
    %26 = tpu.memref_squeeze %25 : memref<1x1x128xf32, #tpu.memory_space<vmem>> -> memref<1x128xf32, #tpu.memory_space<vmem>>
    %27 = tpu.memref_slice %arg12[%12, %c1_i32_15] : memref<2x8x!tpu.dma_semaphore, #tpu.memory_space<semaphore_mem>> -> memref<1x1x!tpu.dma_semaphore, #tpu.memory_space<semaphore_mem>>
    %28 = tpu.memref_squeeze %27 : memref<1x1x!tpu.dma_semaphore, #tpu.memory_space<semaphore_mem>> -> memref<!tpu.dma_semaphore, #tpu.memory_space<semaphore_mem>>
    tpu.wait_dma2 semaphore(%28 : memref<!tpu.dma_semaphore, #tpu.memory_space<semaphore_mem>>) src(%24 : memref<1x128xf32, #tpu.memory_space<any>>) dst(%26 : memref<1x128xf32, #tpu.memory_space<vmem>>)
    %c0_i32_20 = arith.constant 0 : i32
    %c2_i32_21 = arith.constant 2 : i32
    %c0_i32_22 = arith.constant 0 : i32
    %c0_i32_23 = arith.constant 0 : i32
    %29 = tpu.memref_slice %arg2[%c0_i32_20, %c0_i32_22, %c0_i32_23] : memref<16x1x128xf32, #tpu.memory_space<any>> -> memref<1x1x128xf32, #tpu.memory_space<any>>
    %30 = tpu.memref_squeeze %29 : memref<1x1x128xf32, #tpu.memory_space<any>> -> memref<1x128xf32, #tpu.memory_space<any>>
    %c2_i32_24 = arith.constant 2 : i32
    %c0_i32_25 = arith.constant 0 : i32
    %31 = tpu.memref_slice %arg10[%12, %c2_i32_24, %c0_i32_25] : memref<2x8x128xf32, #tpu.memory_space<vmem>> -> memref<1x1x128xf32, #tpu.memory_space<vmem>>
    %32 = tpu.memref_squeeze %31 : memref<1x1x128xf32, #tpu.memory_space<vmem>> -> memref<1x128xf32, #tpu.memory_space<vmem>>
    %33 = tpu.memref_slice %arg12[%12, %c2_i32_21] : memref<2x8x!tpu.dma_semaphore, #tpu.memory_space<semaphore_mem>> -> memref<1x1x!tpu.dma_semaphore, #tpu.memory_space<semaphore_mem>>
    %34 = tpu.memref_squeeze %33 : memref<1x1x!tpu.dma_semaphore, #tpu.memory_space<semaphore_mem>> -> memref<!tpu.dma_semaphore, #tpu.memory_space<semaphore_mem>>
    tpu.wait_dma2 semaphore(%34 : memref<!tpu.dma_semaphore, #tpu.memory_space<semaphore_mem>>) src(%30 : memref<1x128xf32, #tpu.memory_space<any>>) dst(%32 : memref<1x128xf32, #tpu.memory_space<vmem>>)
    %c0_i32_26 = arith.constant 0 : i32
    %c3_i32 = arith.constant 3 : i32
    %c0_i32_27 = arith.constant 0 : i32
    %c0_i32_28 = arith.constant 0 : i32
    %35 = tpu.memref_slice %arg2[%c0_i32_26, %c0_i32_27, %c0_i32_28] : memref<16x1x128xf32, #tpu.memory_space<any>> -> memref<1x1x128xf32, #tpu.memory_space<any>>
    %36 = tpu.memref_squeeze %35 : memref<1x1x128xf32, #tpu.memory_space<any>> -> memref<1x128xf32, #tpu.memory_space<any>>
    %c3_i32_29 = arith.constant 3 : i32
    %c0_i32_30 = arith.constant 0 : i32
    %37 = tpu.memref_slice %arg10[%12, %c3_i32_29, %c0_i32_30] : memref<2x8x128xf32, #tpu.memory_space<vmem>> -> memref<1x1x128xf32, #tpu.memory_space<vmem>>
    %38 = tpu.memref_squeeze %37 : memref<1x1x128xf32, #tpu.memory_space<vmem>> -> memref<1x128xf32, #tpu.memory_space<vmem>>
    %39 = tpu.memref_slice %arg12[%12, %c3_i32] : memref<2x8x!tpu.dma_semaphore, #tpu.memory_space<semaphore_mem>> -> memref<1x1x!tpu.dma_semaphore, #tpu.memory_space<semaphore_mem>>
    %40 = tpu.memref_squeeze %39 : memref<1x1x!tpu.dma_semaphore, #tpu.memory_space<semaphore_mem>> -> memref<!tpu.dma_semaphore, #tpu.memory_space<semaphore_mem>>
    tpu.wait_dma2 semaphore(%40 : memref<!tpu.dma_semaphore, #tpu.memory_space<semaphore_mem>>) src(%36 : memref<1x128xf32, #tpu.memory_space<any>>) dst(%38 : memref<1x128xf32, #tpu.memory_space<vmem>>)
    %c0_i32_31 = arith.constant 0 : i32
    %c4_i32 = arith.constant 4 : i32
    %c0_i32_32 = arith.constant 0 : i32
    %c0_i32_33 = arith.constant 0 : i32
    %41 = tpu.memref_slice %arg2[%c0_i32_31, %c0_i32_32, %c0_i32_33] : memref<16x1x128xf32, #tpu.memory_space<any>> -> memref<1x1x128xf32, #tpu.memory_space<any>>
    %42 = tpu.memref_squeeze %41 : memref<1x1x128xf32, #tpu.memory_space<any>> -> memref<1x128xf32, #tpu.memory_space<any>>
    %c4_i32_34 = arith.constant 4 : i32
    %c0_i32_35 = arith.constant 0 : i32
    %43 = tpu.memref_slice %arg10[%12, %c4_i32_34, %c0_i32_35] : memref<2x8x128xf32, #tpu.memory_space<vmem>> -> memref<1x1x128xf32, #tpu.memory_space<vmem>>
    %44 = tpu.memref_squeeze %43 : memref<1x1x128xf32, #tpu.memory_space<vmem>> -> memref<1x128xf32, #tpu.memory_space<vmem>>
    %45 = tpu.memref_slice %arg12[%12, %c4_i32] : memref<2x8x!tpu.dma_semaphore, #tpu.memory_space<semaphore_mem>> -> memref<1x1x!tpu.dma_semaphore, #tpu.memory_space<semaphore_mem>>
    %46 = tpu.memref_squeeze %45 : memref<1x1x!tpu.dma_semaphore, #tpu.memory_space<semaphore_mem>> -> memref<!tpu.dma_semaphore, #tpu.memory_space<semaphore_mem>>
    tpu.wait_dma2 semaphore(%46 : memref<!tpu.dma_semaphore, #tpu.memory_space<semaphore_mem>>) src(%42 : memref<1x128xf32, #tpu.memory_space<any>>) dst(%44 : memref<1x128xf32, #tpu.memory_space<vmem>>)
    %c0_i32_36 = arith.constant 0 : i32
    %c5_i32 = arith.constant 5 : i32
    %c0_i32_37 = arith.constant 0 : i32
    %c0_i32_38 = arith.constant 0 : i32
    %47 = tpu.memref_slice %arg2[%c0_i32_36, %c0_i32_37, %c0_i32_38] : memref<16x1x128xf32, #tpu.memory_space<any>> -> memref<1x1x128xf32, #tpu.memory_space<any>>
    %48 = tpu.memref_squeeze %47 : memref<1x1x128xf32, #tpu.memory_space<any>> -> memref<1x128xf32, #tpu.memory_space<any>>
    %c5_i32_39 = arith.constant 5 : i32
    %c0_i32_40 = arith.constant 0 : i32
    %49 = tpu.memref_slice %arg10[%12, %c5_i32_39, %c0_i32_40] : memref<2x8x128xf32, #tpu.memory_space<vmem>> -> memref<1x1x128xf32, #tpu.memory_space<vmem>>
    %50 = tpu.memref_squeeze %49 : memref<1x1x128xf32, #tpu.memory_space<vmem>> -> memref<1x128xf32, #tpu.memory_space<vmem>>
    %51 = tpu.memref_slice %arg12[%12, %c5_i32] : memref<2x8x!tpu.dma_semaphore, #tpu.memory_space<semaphore_mem>> -> memref<1x1x!tpu.dma_semaphore, #tpu.memory_space<semaphore_mem>>
    %52 = tpu.memref_squeeze %51 : memref<1x1x!tpu.dma_semaphore, #tpu.memory_space<semaphore_mem>> -> memref<!tpu.dma_semaphore, #tpu.memory_space<semaphore_mem>>
    tpu.wait_dma2 semaphore(%52 : memref<!tpu.dma_semaphore, #tpu.memory_space<semaphore_mem>>) src(%48 : memref<1x128xf32, #tpu.memory_space<any>>) dst(%50 : memref<1x128xf32, #tpu.memory_space<vmem>>)
    %c0_i32_41 = arith.constant 0 : i32
    %c6_i32 = arith.constant 6 : i32
    %c0_i32_42 = arith.constant 0 : i32
    %c0_i32_43 = arith.constant 0 : i32
    %53 = tpu.memref_slice %arg2[%c0_i32_41, %c0_i32_42, %c0_i32_43] : memref<16x1x128xf32, #tpu.memory_space<any>> -> memref<1x1x128xf32, #tpu.memory_space<any>>
    %54 = tpu.memref_squeeze %53 : memref<1x1x128xf32, #tpu.memory_space<any>> -> memref<1x128xf32, #tpu.memory_space<any>>
    %c6_i32_44 = arith.constant 6 : i32
    %c0_i32_45 = arith.constant 0 : i32
    %55 = tpu.memref_slice %arg10[%12, %c6_i32_44, %c0_i32_45] : memref<2x8x128xf32, #tpu.memory_space<vmem>> -> memref<1x1x128xf32, #tpu.memory_space<vmem>>
    %56 = tpu.memref_squeeze %55 : memref<1x1x128xf32, #tpu.memory_space<vmem>> -> memref<1x128xf32, #tpu.memory_space<vmem>>
    %57 = tpu.memref_slice %arg12[%12, %c6_i32] : memref<2x8x!tpu.dma_semaphore, #tpu.memory_space<semaphore_mem>> -> memref<1x1x!tpu.dma_semaphore, #tpu.memory_space<semaphore_mem>>
    %58 = tpu.memref_squeeze %57 : memref<1x1x!tpu.dma_semaphore, #tpu.memory_space<semaphore_mem>> -> memref<!tpu.dma_semaphore, #tpu.memory_space<semaphore_mem>>
    tpu.wait_dma2 semaphore(%58 : memref<!tpu.dma_semaphore, #tpu.memory_space<semaphore_mem>>) src(%54 : memref<1x128xf32, #tpu.memory_space<any>>) dst(%56 : memref<1x128xf32, #tpu.memory_space<vmem>>)
    %c0_i32_46 = arith.constant 0 : i32
    %c7_i32 = arith.constant 7 : i32
    %c0_i32_47 = arith.constant 0 : i32
    %c0_i32_48 = arith.constant 0 : i32
    %59 = tpu.memref_slice %arg2[%c0_i32_46, %c0_i32_47, %c0_i32_48] : memref<16x1x128xf32, #tpu.memory_space<any>> -> memref<1x1x128xf32, #tpu.memory_space<any>>
    %60 = tpu.memref_squeeze %59 : memref<1x1x128xf32, #tpu.memory_space<any>> -> memref<1x128xf32, #tpu.memory_space<any>>
    %c7_i32_49 = arith.constant 7 : i32
    %c0_i32_50 = arith.constant 0 : i32
    %61 = tpu.memref_slice %arg10[%12, %c7_i32_49, %c0_i32_50] : memref<2x8x128xf32, #tpu.memory_space<vmem>> -> memref<1x1x128xf32, #tpu.memory_space<vmem>>
    %62 = tpu.memref_squeeze %61 : memref<1x1x128xf32, #tpu.memory_space<vmem>> -> memref<1x128xf32, #tpu.memory_space<vmem>>
    %63 = tpu.memref_slice %arg12[%12, %c7_i32] : memref<2x8x!tpu.dma_semaphore, #tpu.memory_space<semaphore_mem>> -> memref<1x1x!tpu.dma_semaphore, #tpu.memory_space<semaphore_mem>>
    %64 = tpu.memref_squeeze %63 : memref<1x1x!tpu.dma_semaphore, #tpu.memory_space<semaphore_mem>> -> memref<!tpu.dma_semaphore, #tpu.memory_space<semaphore_mem>>
    tpu.wait_dma2 semaphore(%64 : memref<!tpu.dma_semaphore, #tpu.memory_space<semaphore_mem>>) src(%60 : memref<1x128xf32, #tpu.memory_space<any>>) dst(%62 : memref<1x128xf32, #tpu.memory_space<vmem>>)
    %65 = arith.index_cast %12 : i32 to index
    %c0 = arith.constant 0 : index
    %c0_51 = arith.constant 0 : index
    %66 = vector.load %arg10[%65, %c0, %c0_51] : memref<2x8x128xf32, #tpu.memory_space<vmem>>, vector<1x8x128xf32>
    %67 = vector.shape_cast %66 : vector<1x8x128xf32> to vector<8x128xf32>
    %c0_52 = arith.constant 0 : index
    %c0_53 = arith.constant 0 : index
    %68 = vector.load %arg4[%c0_52, %c0_53] : memref<128x384xf32, #tpu.memory_space<vmem>>, vector<128x384xf32>
    %cst = arith.constant dense<0.000000e+00> : vector<8x384xf32>
    %69 = tpu.matmul %67, %68, %cst {dimension_numbers = #tpu.dot_dimension_numbers<[1], [0], [0], [1], [0, 0, 1, 1], [], []>} : vector<8x128xf32>, vector<128x384xf32>, vector<8x384xf32> -> vector<8x384xf32>
    %c0_54 = arith.constant 0 : index
    %c0_55 = arith.constant 0 : index
    %70 = vector.load %arg6[%c0_54, %c0_55] : memref<1x384xf32, #tpu.memory_space<vmem>>, vector<1x384xf32>
    %71 = vector.broadcast %70 : vector<1x384xf32> to vector<8x384xf32>
    %72 = arith.addf %69, %71 : vector<8x384xf32>
    %c0_56 = arith.constant 0 : index
    %c0_57 = arith.constant 0 : index
    %73 = vector.load %arg11[%c0_56, %c0_57] : memref<8x384xf32, #tpu.memory_space<vmem>>, vector<8x384xf32>
    tpu.vector_store %arg11[%c0_56, %c0_57], %72 {strides = array<i32>} : memref<8x384xf32, #tpu.memory_space<vmem>>, vector<8x384xf32>,
    %c0_58 = arith.constant 0 : index
    %c0_59 = arith.constant 0 : index
    %74 = vector.load %arg5[%c0_58, %c0_59] : memref<128x384xf32, #tpu.memory_space<vmem>>, vector<128x384xf32>
    %c0_60 = arith.constant 0 : index
    %c0_61 = arith.constant 0 : index
    %75 = vector.load %arg7[%c0_60, %c0_61] : memref<1x384xf32, #tpu.memory_space<vmem>>, vector<1x384xf32>
    %c0_62 = arith.constant 0 : index
    %c0_63 = arith.constant 0 : index
    %76 = vector.load %arg9[%c0_62, %c0_63] : memref<1x128xf32, #tpu.memory_space<vmem>>, vector<1x128xf32>
    %c0_i32_64 = arith.constant 0 : i32
    %77 = arith.index_cast %c0_i32_64 : i32 to index
    %c0_65 = arith.constant 0 : index
    %78 = vector.load %arg11[%77, %c0_65] : memref<8x384xf32, #tpu.memory_space<vmem>>, vector<1x384xf32>
    %cst_66 = arith.constant dense<0.000000e+00> : vector<1x384xf32>
    %79 = tpu.matmul %76, %74, %cst_66 {dimension_numbers = #tpu.dot_dimension_numbers<[1], [0], [0], [1], [0, 0, 1, 1], [], []>} : vector<1x128xf32>, vector<128x384xf32>, vector<1x384xf32> -> vector<1x384xf32>
    %80 = arith.addf %79, %75 : vector<1x384xf32>
    %81 = vector.extract_strided_slice %78 {offsets = [0, 0], sizes = [1, 128], strides = [1, 1]} : vector<1x384xf32> to vector<1x128xf32>
    %82 = vector.extract_strided_slice %80 {offsets = [0, 0], sizes = [1, 128], strides = [1, 1]} : vector<1x384xf32> to vector<1x128xf32>
    %83 = arith.addf %81, %82 : vector<1x128xf32>
    %84 = arith.negf %83 : vector<1x128xf32>
    %85 = math.exp %84 : vector<1x128xf32>
    %cst_67 = arith.constant 1.000000e+00 : f32
    %86 = vector.broadcast %cst_67 : f32 to vector<1x128xf32>
    %87 = arith.addf %86, %85 : vector<1x128xf32>
    %88 = arith.divf %86, %87 : vector<1x128xf32>
    %89 = vector.extract_strided_slice %78 {offsets = [0, 128], sizes = [1, 128], strides = [1, 1]} : vector<1x384xf32> to vector<1x128xf32>
    %90 = vector.extract_strided_slice %80 {offsets = [0, 128], sizes = [1, 128], strides = [1, 1]} : vector<1x384xf32> to vector<1x128xf32>
    %91 = arith.addf %89, %90 : vector<1x128xf32>
    %92 = arith.negf %91 : vector<1x128xf32>
    %93 = math.exp %92 : vector<1x128xf32>
    %cst_68 = arith.constant 1.000000e+00 : f32
    %94 = vector.broadcast %cst_68 : f32 to vector<1x128xf32>
    %95 = arith.addf %94, %93 : vector<1x128xf32>
    %96 = arith.divf %94, %95 : vector<1x128xf32>
    %97 = vector.extract_strided_slice %78 {offsets = [0, 256], sizes = [1, 128], strides = [1, 1]} : vector<1x384xf32> to vector<1x128xf32>
    %98 = vector.extract_strided_slice %80 {offsets = [0, 256], sizes = [1, 128], strides = [1, 1]} : vector<1x384xf32> to vector<1x128xf32>
    %99 = arith.mulf %88, %98 : vector<1x128xf32>
    %100 = arith.addf %97, %99 : vector<1x128xf32>
    %101 = math.tanh %100 : vector<1x128xf32>
    %cst_69 = arith.constant 1.000000e+00 : f32
    %102 = vector.broadcast %cst_69 : f32 to vector<1x128xf32>
    %103 = arith.subf %102, %96 : vector<1x128xf32>
    %104 = arith.mulf %103, %101 : vector<1x128xf32>
    %105 = arith.mulf %96, %76 : vector<1x128xf32>
    %106 = arith.addf %104, %105 : vector<1x128xf32>
    %107 = arith.index_cast %c0_i32_64 : i32 to index
    %c0_70 = arith.constant 0 : index
    %108 = vector.load %arg8[%107, %c0_70] : memref<8x128xf32, #tpu.memory_space<vmem>>, vector<1x128xf32>
    tpu.vector_store %arg8[%107, %c0_70], %106 {strides = array<i32>} : memref<8x128xf32, #tpu.memory_space<vmem>>, vector<1x128xf32>,
    %c1_i32_71 = arith.constant 1 : i32
    %109 = arith.index_cast %c1_i32_71 : i32 to index
    %c0_72 = arith.constant 0 : index
    %110 = vector.load %arg11[%109, %c0_72] : memref<8x384xf32, #tpu.memory_space<vmem>>, vector<1x384xf32>
    %cst_73 = arith.constant dense<0.000000e+00> : vector<1x384xf32>
    %111 = tpu.matmul %106, %74, %cst_73 {dimension_numbers = #tpu.dot_dimension_numbers<[1], [0], [0], [1], [0, 0, 1, 1], [], []>} : vector<1x128xf32>, vector<128x384xf32>, vector<1x384xf32> -> vector<1x384xf32>
    %112 = arith.addf %111, %75 : vector<1x384xf32>
    %113 = vector.extract_strided_slice %110 {offsets = [0, 0], sizes = [1, 128], strides = [1, 1]} : vector<1x384xf32> to vector<1x128xf32>
    %114 = vector.extract_strided_slice %112 {offsets = [0, 0], sizes = [1, 128], strides = [1, 1]} : vector<1x384xf32> to vector<1x128xf32>
    %115 = arith.addf %113, %114 : vector<1x128xf32>
    %116 = arith.negf %115 : vector<1x128xf32>
    %117 = math.exp %116 : vector<1x128xf32>
    %cst_74 = arith.constant 1.000000e+00 : f32
    %118 = vector.broadcast %cst_74 : f32 to vector<1x128xf32>
    %119 = arith.addf %118, %117 : vector<1x128xf32>
    %120 = arith.divf %118, %119 : vector<1x128xf32>
    %121 = vector.extract_strided_slice %110 {offsets = [0, 128], sizes = [1, 128], strides = [1, 1]} : vector<1x384xf32> to vector<1x128xf32>
    %122 = vector.extract_strided_slice %112 {offsets = [0, 128], sizes = [1, 128], strides = [1, 1]} : vector<1x384xf32> to vector<1x128xf32>
    %123 = arith.addf %121, %122 : vector<1x128xf32>
    %124 = arith.negf %123 : vector<1x128xf32>
    %125 = math.exp %124 : vector<1x128xf32>
    %cst_75 = arith.constant 1.000000e+00 : f32
    %126 = vector.broadcast %cst_75 : f32 to vector<1x128xf32>
    %127 = arith.addf %126, %125 : vector<1x128xf32>
    %128 = arith.divf %126, %127 : vector<1x128xf32>
    %129 = vector.extract_strided_slice %110 {offsets = [0, 256], sizes = [1, 128], strides = [1, 1]} : vector<1x384xf32> to vector<1x128xf32>
    %130 = vector.extract_strided_slice %112 {offsets = [0, 256], sizes = [1, 128], strides = [1, 1]} : vector<1x384xf32> to vector<1x128xf32>
    %131 = arith.mulf %120, %130 : vector<1x128xf32>
    %132 = arith.addf %129, %131 : vector<1x128xf32>
    %133 = math.tanh %132 : vector<1x128xf32>
    %cst_76 = arith.constant 1.000000e+00 : f32
    %134 = vector.broadcast %cst_76 : f32 to vector<1x128xf32>
    %135 = arith.subf %134, %128 : vector<1x128xf32>
    %136 = arith.mulf %135, %133 : vector<1x128xf32>
    %137 = arith.mulf %128, %106 : vector<1x128xf32>
    %138 = arith.addf %136, %137 : vector<1x128xf32>
    %139 = arith.index_cast %c1_i32_71 : i32 to index
    %c0_77 = arith.constant 0 : index
    %140 = vector.load %arg8[%139, %c0_77] : memref<8x128xf32, #tpu.memory_space<vmem>>, vector<1x128xf32>
    tpu.vector_store %arg8[%139, %c0_77], %138 {strides = array<i32>} : memref<8x128xf32, #tpu.memory_space<vmem>>, vector<1x128xf32>,
    %c2_i32_78 = arith.constant 2 : i32
    %141 = arith.index_cast %c2_i32_78 : i32 to index
    %c0_79 = arith.constant 0 : index
    %142 = vector.load %arg11[%141, %c0_79] : memref<8x384xf32, #tpu.memory_space<vmem>>, vector<1x384xf32>
    %cst_80 = arith.constant dense<0.000000e+00> : vector<1x384xf32>
    %143 = tpu.matmul %138, %74, %cst_80 {dimension_numbers = #tpu.dot_dimension_numbers<[1], [0], [0], [1], [0, 0, 1, 1], [], []>} : vector<1x128xf32>, vector<128x384xf32>, vector<1x384xf32> -> vector<1x384xf32>
    %144 = arith.addf %143, %75 : vector<1x384xf32>
    %145 = vector.extract_strided_slice %142 {offsets = [0, 0], sizes = [1, 128], strides = [1, 1]} : vector<1x384xf32> to vector<1x128xf32>
    %146 = vector.extract_strided_slice %144 {offsets = [0, 0], sizes = [1, 128], strides = [1, 1]} : vector<1x384xf32> to vector<1x128xf32>
    %147 = arith.addf %145, %146 : vector<1x128xf32>
    %148 = arith.negf %147 : vector<1x128xf32>
    %149 = math.exp %148 : vector<1x128xf32>
    %cst_81 = arith.constant 1.000000e+00 : f32
    %150 = vector.broadcast %cst_81 : f32 to vector<1x128xf32>
    %151 = arith.addf %150, %149 : vector<1x128xf32>
    %152 = arith.divf %150, %151 : vector<1x128xf32>
    %153 = vector.extract_strided_slice %142 {offsets = [0, 128], sizes = [1, 128], strides = [1, 1]} : vector<1x384xf32> to vector<1x128xf32>
    %154 = vector.extract_strided_slice %144 {offsets = [0, 128], sizes = [1, 128], strides = [1, 1]} : vector<1x384xf32> to vector<1x128xf32>
    %155 = arith.addf %153, %154 : vector<1x128xf32>
    %156 = arith.negf %155 : vector<1x128xf32>
    %157 = math.exp %156 : vector<1x128xf32>
    %cst_82 = arith.constant 1.000000e+00 : f32
    %158 = vector.broadcast %cst_82 : f32 to vector<1x128xf32>
    %159 = arith.addf %158, %157 : vector<1x128xf32>
    %160 = arith.divf %158, %159 : vector<1x128xf32>
    %161 = vector.extract_strided_slice %142 {offsets = [0, 256], sizes = [1, 128], strides = [1, 1]} : vector<1x384xf32> to vector<1x128xf32>
    %162 = vector.extract_strided_slice %144 {offsets = [0, 256], sizes = [1, 128], strides = [1, 1]} : vector<1x384xf32> to vector<1x128xf32>
    %163 = arith.mulf %152, %162 : vector<1x128xf32>
    %164 = arith.addf %161, %163 : vector<1x128xf32>
    %165 = math.tanh %164 : vector<1x128xf32>
    %cst_83 = arith.constant 1.000000e+00 : f32
    %166 = vector.broadcast %cst_83 : f32 to vector<1x128xf32>
    %167 = arith.subf %166, %160 : vector<1x128xf32>
    %168 = arith.mulf %167, %165 : vector<1x128xf32>
    %169 = arith.mulf %160, %138 : vector<1x128xf32>
    %170 = arith.addf %168, %169 : vector<1x128xf32>
    %171 = arith.index_cast %c2_i32_78 : i32 to index
    %c0_84 = arith.constant 0 : index
    %172 = vector.load %arg8[%171, %c0_84] : memref<8x128xf32, #tpu.memory_space<vmem>>, vector<1x128xf32>
    tpu.vector_store %arg8[%171, %c0_84], %170 {strides = array<i32>} : memref<8x128xf32, #tpu.memory_space<vmem>>, vector<1x128xf32>,
    %c3_i32_85 = arith.constant 3 : i32
    %173 = arith.index_cast %c3_i32_85 : i32 to index
    %c0_86 = arith.constant 0 : index
    %174 = vector.load %arg11[%173, %c0_86] : memref<8x384xf32, #tpu.memory_space<vmem>>, vector<1x384xf32>
    %cst_87 = arith.constant dense<0.000000e+00> : vector<1x384xf32>
    %175 = tpu.matmul %170, %74, %cst_87 {dimension_numbers = #tpu.dot_dimension_numbers<[1], [0], [0], [1], [0, 0, 1, 1], [], []>} : vector<1x128xf32>, vector<128x384xf32>, vector<1x384xf32> -> vector<1x384xf32>
    %176 = arith.addf %175, %75 : vector<1x384xf32>
    %177 = vector.extract_strided_slice %174 {offsets = [0, 0], sizes = [1, 128], strides = [1, 1]} : vector<1x384xf32> to vector<1x128xf32>
    %178 = vector.extract_strided_slice %176 {offsets = [0, 0], sizes = [1, 128], strides = [1, 1]} : vector<1x384xf32> to vector<1x128xf32>
    %179 = arith.addf %177, %178 : vector<1x128xf32>
    %180 = arith.negf %179 : vector<1x128xf32>
    %181 = math.exp %180 : vector<1x128xf32>
    %cst_88 = arith.constant 1.000000e+00 : f32
    %182 = vector.broadcast %cst_88 : f32 to vector<1x128xf32>
    %183 = arith.addf %182, %181 : vector<1x128xf32>
    %184 = arith.divf %182, %183 : vector<1x128xf32>
    %185 = vector.extract_strided_slice %174 {offsets = [0, 128], sizes = [1, 128], strides = [1, 1]} : vector<1x384xf32> to vector<1x128xf32>
    %186 = vector.extract_strided_slice %176 {offsets = [0, 128], sizes = [1, 128], strides = [1, 1]} : vector<1x384xf32> to vector<1x128xf32>
    %187 = arith.addf %185, %186 : vector<1x128xf32>
    %188 = arith.negf %187 : vector<1x128xf32>
    %189 = math.exp %188 : vector<1x128xf32>
    %cst_89 = arith.constant 1.000000e+00 : f32
    %190 = vector.broadcast %cst_89 : f32 to vector<1x128xf32>
    %191 = arith.addf %190, %189 : vector<1x128xf32>
    %192 = arith.divf %190, %191 : vector<1x128xf32>
    %193 = vector.extract_strided_slice %174 {offsets = [0, 256], sizes = [1, 128], strides = [1, 1]} : vector<1x384xf32> to vector<1x128xf32>
    %194 = vector.extract_strided_slice %176 {offsets = [0, 256], sizes = [1, 128], strides = [1, 1]} : vector<1x384xf32> to vector<1x128xf32>
    %195 = arith.mulf %184, %194 : vector<1x128xf32>
    %196 = arith.addf %193, %195 : vector<1x128xf32>
    %197 = math.tanh %196 : vector<1x128xf32>
    %cst_90 = arith.constant 1.000000e+00 : f32
    %198 = vector.broadcast %cst_90 : f32 to vector<1x128xf32>
    %199 = arith.subf %198, %192 : vector<1x128xf32>
    %200 = arith.mulf %199, %197 : vector<1x128xf32>
    %201 = arith.mulf %192, %170 : vector<1x128xf32>
    %202 = arith.addf %200, %201 : vector<1x128xf32>
    %203 = arith.index_cast %c3_i32_85 : i32 to index
    %c0_91 = arith.constant 0 : index
    %204 = vector.load %arg8[%203, %c0_91] : memref<8x128xf32, #tpu.memory_space<vmem>>, vector<1x128xf32>
    tpu.vector_store %arg8[%203, %c0_91], %202 {strides = array<i32>} : memref<8x128xf32, #tpu.memory_space<vmem>>, vector<1x128xf32>,
    %c4_i32_92 = arith.constant 4 : i32
    %205 = arith.index_cast %c4_i32_92 : i32 to index
    %c0_93 = arith.constant 0 : index
    %206 = vector.load %arg11[%205, %c0_93] : memref<8x384xf32, #tpu.memory_space<vmem>>, vector<1x384xf32>
    %cst_94 = arith.constant dense<0.000000e+00> : vector<1x384xf32>
    %207 = tpu.matmul %202, %74, %cst_94 {dimension_numbers = #tpu.dot_dimension_numbers<[1], [0], [0], [1], [0, 0, 1, 1], [], []>} : vector<1x128xf32>, vector<128x384xf32>, vector<1x384xf32> -> vector<1x384xf32>
    %208 = arith.addf %207, %75 : vector<1x384xf32>
    %209 = vector.extract_strided_slice %206 {offsets = [0, 0], sizes = [1, 128], strides = [1, 1]} : vector<1x384xf32> to vector<1x128xf32>
    %210 = vector.extract_strided_slice %208 {offsets = [0, 0], sizes = [1, 128], strides = [1, 1]} : vector<1x384xf32> to vector<1x128xf32>
    %211 = arith.addf %209, %210 : vector<1x128xf32>
    %212 = arith.negf %211 : vector<1x128xf32>
    %213 = math.exp %212 : vector<1x128xf32>
    %cst_95 = arith.constant 1.000000e+00 : f32
    %214 = vector.broadcast %cst_95 : f32 to vector<1x128xf32>
    %215 = arith.addf %214, %213 : vector<1x128xf32>
    %216 = arith.divf %214, %215 : vector<1x128xf32>
    %217 = vector.extract_strided_slice %206 {offsets = [0, 128], sizes = [1, 128], strides = [1, 1]} : vector<1x384xf32> to vector<1x128xf32>
    %218 = vector.extract_strided_slice %208 {offsets = [0, 128], sizes = [1, 128], strides = [1, 1]} : vector<1x384xf32> to vector<1x128xf32>
    %219 = arith.addf %217, %218 : vector<1x128xf32>
    %220 = arith.negf %219 : vector<1x128xf32>
    %221 = math.exp %220 : vector<1x128xf32>
    %cst_96 = arith.constant 1.000000e+00 : f32
    %222 = vector.broadcast %cst_96 : f32 to vector<1x128xf32>
    %223 = arith.addf %222, %221 : vector<1x128xf32>
    %224 = arith.divf %222, %223 : vector<1x128xf32>
    %225 = vector.extract_strided_slice %206 {offsets = [0, 256], sizes = [1, 128], strides = [1, 1]} : vector<1x384xf32> to vector<1x128xf32>
    %226 = vector.extract_strided_slice %208 {offsets = [0, 256], sizes = [1, 128], strides = [1, 1]} : vector<1x384xf32> to vector<1x128xf32>
    %227 = arith.mulf %216, %226 : vector<1x128xf32>
    %228 = arith.addf %225, %227 : vector<1x128xf32>
    %229 = math.tanh %228 : vector<1x128xf32>
    %cst_97 = arith.constant 1.000000e+00 : f32
    %230 = vector.broadcast %cst_97 : f32 to vector<1x128xf32>
    %231 = arith.subf %230, %224 : vector<1x128xf32>
    %232 = arith.mulf %231, %229 : vector<1x128xf32>
    %233 = arith.mulf %224, %202 : vector<1x128xf32>
    %234 = arith.addf %232, %233 : vector<1x128xf32>
    %235 = arith.index_cast %c4_i32_92 : i32 to index
    %c0_98 = arith.constant 0 : index
    %236 = vector.load %arg8[%235, %c0_98] : memref<8x128xf32, #tpu.memory_space<vmem>>, vector<1x128xf32>
    tpu.vector_store %arg8[%235, %c0_98], %234 {strides = array<i32>} : memref<8x128xf32, #tpu.memory_space<vmem>>, vector<1x128xf32>,
    %c5_i32_99 = arith.constant 5 : i32
    %237 = arith.index_cast %c5_i32_99 : i32 to index
    %c0_100 = arith.constant 0 : index
    %238 = vector.load %arg11[%237, %c0_100] : memref<8x384xf32, #tpu.memory_space<vmem>>, vector<1x384xf32>
    %cst_101 = arith.constant dense<0.000000e+00> : vector<1x384xf32>
    %239 = tpu.matmul %234, %74, %cst_101 {dimension_numbers = #tpu.dot_dimension_numbers<[1], [0], [0], [1], [0, 0, 1, 1], [], []>} : vector<1x128xf32>, vector<128x384xf32>, vector<1x384xf32> -> vector<1x384xf32>
    %240 = arith.addf %239, %75 : vector<1x384xf32>
    %241 = vector.extract_strided_slice %238 {offsets = [0, 0], sizes = [1, 128], strides = [1, 1]} : vector<1x384xf32> to vector<1x128xf32>
    %242 = vector.extract_strided_slice %240 {offsets = [0, 0], sizes = [1, 128], strides = [1, 1]} : vector<1x384xf32> to vector<1x128xf32>
    %243 = arith.addf %241, %242 : vector<1x128xf32>
    %244 = arith.negf %243 : vector<1x128xf32>
    %245 = math.exp %244 : vector<1x128xf32>
    %cst_102 = arith.constant 1.000000e+00 : f32
    %246 = vector.broadcast %cst_102 : f32 to vector<1x128xf32>
    %247 = arith.addf %246, %245 : vector<1x128xf32>
    %248 = arith.divf %246, %247 : vector<1x128xf32>
    %249 = vector.extract_strided_slice %238 {offsets = [0, 128], sizes = [1, 128], strides = [1, 1]} : vector<1x384xf32> to vector<1x128xf32>
    %250 = vector.extract_strided_slice %240 {offsets = [0, 128], sizes = [1, 128], strides = [1, 1]} : vector<1x384xf32> to vector<1x128xf32>
    %251 = arith.addf %249, %250 : vector<1x128xf32>
    %252 = arith.negf %251 : vector<1x128xf32>
    %253 = math.exp %252 : vector<1x128xf32>
    %cst_103 = arith.constant 1.000000e+00 : f32
    %254 = vector.broadcast %cst_103 : f32 to vector<1x128xf32>
    %255 = arith.addf %254, %253 : vector<1x128xf32>
    %256 = arith.divf %254, %255 : vector<1x128xf32>
    %257 = vector.extract_strided_slice %238 {offsets = [0, 256], sizes = [1, 128], strides = [1, 1]} : vector<1x384xf32> to vector<1x128xf32>
    %258 = vector.extract_strided_slice %240 {offsets = [0, 256], sizes = [1, 128], strides = [1, 1]} : vector<1x384xf32> to vector<1x128xf32>
    %259 = arith.mulf %248, %258 : vector<1x128xf32>
    %260 = arith.addf %257, %259 : vector<1x128xf32>
    %261 = math.tanh %260 : vector<1x128xf32>
    %cst_104 = arith.constant 1.000000e+00 : f32
    %262 = vector.broadcast %cst_104 : f32 to vector<1x128xf32>
    %263 = arith.subf %262, %256 : vector<1x128xf32>
    %264 = arith.mulf %263, %261 : vector<1x128xf32>
    %265 = arith.mulf %256, %234 : vector<1x128xf32>
    %266 = arith.addf %264, %265 : vector<1x128xf32>
    %267 = arith.index_cast %c5_i32_99 : i32 to index
    %c0_105 = arith.constant 0 : index
    %268 = vector.load %arg8[%267, %c0_105] : memref<8x128xf32, #tpu.memory_space<vmem>>, vector<1x128xf32>
    tpu.vector_store %arg8[%267, %c0_105], %266 {strides = array<i32>} : memref<8x128xf32, #tpu.memory_space<vmem>>, vector<1x128xf32>,
    %c6_i32_106 = arith.constant 6 : i32
    %269 = arith.index_cast %c6_i32_106 : i32 to index
    %c0_107 = arith.constant 0 : index
    %270 = vector.load %arg11[%269, %c0_107] : memref<8x384xf32, #tpu.memory_space<vmem>>, vector<1x384xf32>
    %cst_108 = arith.constant dense<0.000000e+00> : vector<1x384xf32>
    %271 = tpu.matmul %266, %74, %cst_108 {dimension_numbers = #tpu.dot_dimension_numbers<[1], [0], [0], [1], [0, 0, 1, 1], [], []>} : vector<1x128xf32>, vector<128x384xf32>, vector<1x384xf32> -> vector<1x384xf32>
    %272 = arith.addf %271, %75 : vector<1x384xf32>
    %273 = vector.extract_strided_slice %270 {offsets = [0, 0], sizes = [1, 128], strides = [1, 1]} : vector<1x384xf32> to vector<1x128xf32>
    %274 = vector.extract_strided_slice %272 {offsets = [0, 0], sizes = [1, 128], strides = [1, 1]} : vector<1x384xf32> to vector<1x128xf32>
    %275 = arith.addf %273, %274 : vector<1x128xf32>
    %276 = arith.negf %275 : vector<1x128xf32>
    %277 = math.exp %276 : vector<1x128xf32>
    %cst_109 = arith.constant 1.000000e+00 : f32
    %278 = vector.broadcast %cst_109 : f32 to vector<1x128xf32>
    %279 = arith.addf %278, %277 : vector<1x128xf32>
    %280 = arith.divf %278, %279 : vector<1x128xf32>
    %281 = vector.extract_strided_slice %270 {offsets = [0, 128], sizes = [1, 128], strides = [1, 1]} : vector<1x384xf32> to vector<1x128xf32>
    %282 = vector.extract_strided_slice %272 {offsets = [0, 128], sizes = [1, 128], strides = [1, 1]} : vector<1x384xf32> to vector<1x128xf32>
    %283 = arith.addf %281, %282 : vector<1x128xf32>
    %284 = arith.negf %283 : vector<1x128xf32>
    %285 = math.exp %284 : vector<1x128xf32>
    %cst_110 = arith.constant 1.000000e+00 : f32
    %286 = vector.broadcast %cst_110 : f32 to vector<1x128xf32>
    %287 = arith.addf %286, %285 : vector<1x128xf32>
    %288 = arith.divf %286, %287 : vector<1x128xf32>
    %289 = vector.extract_strided_slice %270 {offsets = [0, 256], sizes = [1, 128], strides = [1, 1]} : vector<1x384xf32> to vector<1x128xf32>
    %290 = vector.extract_strided_slice %272 {offsets = [0, 256], sizes = [1, 128], strides = [1, 1]} : vector<1x384xf32> to vector<1x128xf32>
    %291 = arith.mulf %280, %290 : vector<1x128xf32>
    %292 = arith.addf %289, %291 : vector<1x128xf32>
    %293 = math.tanh %292 : vector<1x128xf32>
    %cst_111 = arith.constant 1.000000e+00 : f32
    %294 = vector.broadcast %cst_111 : f32 to vector<1x128xf32>
    %295 = arith.subf %294, %288 : vector<1x128xf32>
    %296 = arith.mulf %295, %293 : vector<1x128xf32>
    %297 = arith.mulf %288, %266 : vector<1x128xf32>
    %298 = arith.addf %296, %297 : vector<1x128xf32>
    %299 = arith.index_cast %c6_i32_106 : i32 to index
    %c0_112 = arith.constant 0 : index
    %300 = vector.load %arg8[%299, %c0_112] : memref<8x128xf32, #tpu.memory_space<vmem>>, vector<1x128xf32>
    tpu.vector_store %arg8[%299, %c0_112], %298 {strides = array<i32>} : memref<8x128xf32, #tpu.memory_space<vmem>>, vector<1x128xf32>,
    %c7_i32_113 = arith.constant 7 : i32
    %301 = arith.index_cast %c7_i32_113 : i32 to index
    %c0_114 = arith.constant 0 : index
    %302 = vector.load %arg11[%301, %c0_114] : memref<8x384xf32, #tpu.memory_space<vmem>>, vector<1x384xf32>
    %cst_115 = arith.constant dense<0.000000e+00> : vector<1x384xf32>
    %303 = tpu.matmul %298, %74, %cst_115 {dimension_numbers = #tpu.dot_dimension_numbers<[1], [0], [0], [1], [0, 0, 1, 1], [], []>} : vector<1x128xf32>, vector<128x384xf32>, vector<1x384xf32> -> vector<1x384xf32>
    %304 = arith.addf %303, %75 : vector<1x384xf32>
    %305 = vector.extract_strided_slice %302 {offsets = [0, 0], sizes = [1, 128], strides = [1, 1]} : vector<1x384xf32> to vector<1x128xf32>
    %306 = vector.extract_strided_slice %304 {offsets = [0, 0], sizes = [1, 128], strides = [1, 1]} : vector<1x384xf32> to vector<1x128xf32>
    %307 = arith.addf %305, %306 : vector<1x128xf32>
    %308 = arith.negf %307 : vector<1x128xf32>
    %309 = math.exp %308 : vector<1x128xf32>
    %cst_116 = arith.constant 1.000000e+00 : f32
    %310 = vector.broadcast %cst_116 : f32 to vector<1x128xf32>
    %311 = arith.addf %310, %309 : vector<1x128xf32>
    %312 = arith.divf %310, %311 : vector<1x128xf32>
    %313 = vector.extract_strided_slice %302 {offsets = [0, 128], sizes = [1, 128], strides = [1, 1]} : vector<1x384xf32> to vector<1x128xf32>
    %314 = vector.extract_strided_slice %304 {offsets = [0, 128], sizes = [1, 128], strides = [1, 1]} : vector<1x384xf32> to vector<1x128xf32>
    %315 = arith.addf %313, %314 : vector<1x128xf32>
    %316 = arith.negf %315 : vector<1x128xf32>
    %317 = math.exp %316 : vector<1x128xf32>
    %cst_117 = arith.constant 1.000000e+00 : f32
    %318 = vector.broadcast %cst_117 : f32 to vector<1x128xf32>
    %319 = arith.addf %318, %317 : vector<1x128xf32>
    %320 = arith.divf %318, %319 : vector<1x128xf32>
    %321 = vector.extract_strided_slice %302 {offsets = [0, 256], sizes = [1, 128], strides = [1, 1]} : vector<1x384xf32> to vector<1x128xf32>
    %322 = vector.extract_strided_slice %304 {offsets = [0, 256], sizes = [1, 128], strides = [1, 1]} : vector<1x384xf32> to vector<1x128xf32>
    %323 = arith.mulf %312, %322 : vector<1x128xf32>
    %324 = arith.addf %321, %323 : vector<1x128xf32>
    %325 = math.tanh %324 : vector<1x128xf32>
    %cst_118 = arith.constant 1.000000e+00 : f32
    %326 = vector.broadcast %cst_118 : f32 to vector<1x128xf32>
    %327 = arith.subf %326, %320 : vector<1x128xf32>
    %328 = arith.mulf %327, %325 : vector<1x128xf32>
    %329 = arith.mulf %320, %298 : vector<1x128xf32>
    %330 = arith.addf %328, %329 : vector<1x128xf32>
    %331 = arith.index_cast %c7_i32_113 : i32 to index
    %c0_119 = arith.constant 0 : index
    %332 = vector.load %arg8[%331, %c0_119] : memref<8x128xf32, #tpu.memory_space<vmem>>, vector<1x128xf32>
    tpu.vector_store %arg8[%331, %c0_119], %330 {strides = array<i32>} : memref<8x128xf32, #tpu.memory_space<vmem>>, vector<1x128xf32>,
    %c8_i32 = arith.constant 8 : i32
    %c0_120 = arith.constant 0 : index
    %c0_121 = arith.constant 0 : index
    %333 = vector.load %arg9[%c0_120, %c0_121] : memref<1x128xf32, #tpu.memory_space<vmem>>, vector<1x128xf32>
    tpu.vector_store %arg9[%c0_120, %c0_121], %330 {strides = array<i32>} : memref<1x128xf32, #tpu.memory_space<vmem>>, vector<1x128xf32>,
    return
  }
  func.func @transform_1(%arg0: i32, %arg1: memref<8xi32, #tpu.memory_space<smem>>) -> (i32, i32) {
    %c0_i32 = arith.constant 0 : i32
    %c0_i32_0 = arith.constant 0 : i32
    %c0_i32_1 = arith.constant 0 : i32
    return %c0_i32, %c0_i32_0 : i32, i32
  }
  func.func @transform_2(%arg0: i32, %arg1: memref<8xi32, #tpu.memory_space<smem>>) -> (i32, i32) {
    %c0_i32 = arith.constant 0 : i32
    %c0_i32_0 = arith.constant 0 : i32
    %c0_i32_1 = arith.constant 0 : i32
    return %c0_i32, %c0_i32_0 : i32, i32
  }
  func.func @transform_3(%arg0: i32, %arg1: memref<8xi32, #tpu.memory_space<smem>>) -> (i32, i32) {
    %c0_i32 = arith.constant 0 : i32
    %c0_i32_0 = arith.constant 0 : i32
    %c0_i32_1 = arith.constant 0 : i32
    return %c0_i32, %c0_i32_0 : i32, i32
  }
  func.func @transform_4(%arg0: i32, %arg1: memref<8xi32, #tpu.memory_space<smem>>) -> (i32, i32) {
    %c0_i32 = arith.constant 0 : i32
    %c0_i32_0 = arith.constant 0 : i32
    %c0_i32_1 = arith.constant 0 : i32
    return %c0_i32, %c0_i32_0 : i32, i32
  }
  func.func @transform_5(%arg0: i32, %arg1: memref<8xi32, #tpu.memory_space<smem>>) -> (i32, i32) {
    %c0_i32 = arith.constant 0 : i32
    %c0_i32_0 = arith.constant 0 : i32
    %c0_i32_1 = arith.constant 0 : i32
    return %c0_i32, %c0_i32_0 : i32, i32
  }
  func.func @transform_6(%arg0: i32, %arg1: memref<8xi32, #tpu.memory_space<smem>>) -> (i32, i32) {
    %c0_i32 = arith.constant 0 : i32
    %c0_i32_0 = arith.constant 0 : i32
    return %arg0, %c0_i32 : i32, i32
  }
}

</mosaic_0001>

<llo_original>
// kernel: tpu_custom_call.1
$region0: #{tpu_custom_call.1}
  #allocation0 [shape = 'u32[]', space=smem, size = 0x4, offset = 0x4, fixed_abs, tag = 'smem constant byte address 0x4 - core index']
  #allocation1 [shape = 'u32[144,128]{1,0:T(1,128)}', space=vmem, size = 0x12000, scoped, tag = 'internal scratch']
  #allocation2 [shape = 'f32[1,128]{1,0:T(1,128)}', space=vmem, size = 0x200, scoped, tag = 'scratch operand']
  #allocation3 [shape = 'f32[2,8,128]{2,1,0:T(8,128)}', space=vmem, size = 0x2000, scoped, tag = 'scratch operand']
  #allocation4 [shape = 'f32[8,384]{1,0:T(8,128)}', space=vmem, size = 0x3000, scoped, tag = 'scratch operand']
  #allocation5 [shape = 's32[16]{0}', space=sflag, size = 0x40, scoped, tag = 'scratch operand']
  #allocation6 [shape = 's32[1]{0}', space=sflag, size = 0x4, scoped, tag = 'scoped memory for tpu_custom_call.1']
  #allocation7 [shape = 'u8[512]{0}', space=smem, size = 0x200, scoped, tag = 'prefetched SMEM operand 0']
  #allocation14 [shape = 's32[]', space=sflag, size = 0x4, offset = 0, fixed_abs, tag = 'sflag constant byte address 0x0 - dummy sync flag']
  #allocation15 [shape = 's32[]', space=sflag, size = 0x4, offset = 0, fixed_abs, tag = 'sflag constant byte address 0x0 - dummy sync flag']
  #allocation16 [shape = 'u32[]', space=smem, size = 0x4, offset = 0x44, fixed_abs, tag = 'smem constant byte address 0x44 - assertion arg 0']
  #allocation17 [shape = 'u32[]', space=smem, size = 0x4, offset = 0x48, fixed_abs, tag = 'smem constant byte address 0x48 - assertion arg 1']
  #allocation18 [shape = 's32[]', space=sflag, size = 0x4, offset = 0, fixed_abs, tag = 'sflag constant byte address 0x0 - dummy sync flag']
  #allocation19 [shape = 's32[]', space=sflag, size = 0x4, offset = 0, fixed_abs, tag = 'sflag constant byte address 0x0 - dummy sync flag']
  #allocation20 [shape = 's32[]', space=sflag, size = 0x4, offset = 0, fixed_abs, tag = 'sflag constant byte address 0x0 - dummy sync flag']
  #allocation21 [shape = 's32[]', space=sflag, size = 0x4, offset = 0, fixed_abs, tag = 'sflag constant byte address 0x0 - dummy sync flag']
  #allocation22 [shape = 's32[]', space=sflag, size = 0x4, offset = 0, fixed_abs, tag = 'sflag constant byte address 0x0 - dummy sync flag']
  #allocation23 [shape = 's32[]', space=sflag, size = 0x4, offset = 0, fixed_abs, tag = 'sflag constant byte address 0x0 - dummy sync flag']
  #allocation24 [shape = 's32[]', space=sflag, size = 0x4, offset = 0, fixed_abs, tag = 'sflag constant byte address 0x0 - dummy sync flag']
  #allocation25 [shape = 's32[]', space=sflag, size = 0x4, offset = 0, fixed_abs, tag = 'sflag constant byte address 0x0 - dummy sync flag']
  #allocation26 [shape = 's32[]', space=sflag, size = 0x4, offset = 0, fixed_abs, tag = 'sflag constant byte address 0x0 - dummy sync flag']
  #allocation27 [shape = 's32[]', space=sflag, size = 0x4, offset = 0, fixed_abs, tag = 'sflag constant byte address 0x0 - dummy sync flag']
  #allocation28 [shape = 's32[]', space=sflag, size = 0x4, offset = 0, fixed_abs, tag = 'sflag constant byte address 0x0 - dummy sync flag']
  #allocation29 [shape = 's32[]', space=sflag, size = 0x4, offset = 0, fixed_abs, tag = 'sflag constant byte address 0x0 - dummy sync flag']
  #allocation30 [shape = 's32[]', space=sflag, size = 0x4, offset = 0, fixed_abs, tag = 'sflag constant byte address 0x0 - dummy sync flag']
  #allocation31 [shape = 's32[]', space=sflag, size = 0x4, offset = 0, fixed_abs, tag = 'sflag constant byte address 0x0 - dummy sync flag']
  #allocation32 [shape = 's32[]', space=sflag, size = 0x4, offset = 0, fixed_abs, tag = 'sflag constant byte address 0x0 - dummy sync flag']
  #allocation33 [shape = 's32[]', space=sflag, size = 0x4, offset = 0, fixed_abs, tag = 'sflag constant byte address 0x0 - dummy sync flag']
  #allocation34 [shape = 's32[]', space=sflag, size = 0x4, offset = 0, fixed_abs, tag = 'sflag constant byte address 0x0 - dummy sync flag']
  #allocation35 [shape = 's32[]', space=sflag, size = 0x4, offset = 0, fixed_abs, tag = 'sflag constant byte address 0x0 - dummy sync flag']
  #allocation36 [shape = 's32[]', space=sflag, size = 0x4, offset = 0, fixed_abs, tag = 'sflag constant byte address 0x0 - dummy sync flag']
  #allocation37 [shape = 's32[]', space=sflag, size = 0x4, offset = 0, fixed_abs, tag = 'sflag constant byte address 0x0 - dummy sync flag']
  #allocation38 [shape = 's32[]', space=sflag, size = 0x4, offset = 0, fixed_abs, tag = 'sflag constant byte address 0x0 - dummy sync flag']
  #allocation39 [shape = 's32[]', space=sflag, size = 0x4, offset = 0, fixed_abs, tag = 'sflag constant byte address 0x0 - dummy sync flag']
  #allocation40 [shape = 's32[]', space=sflag, size = 0x4, offset = 0, fixed_abs, tag = 'sflag constant byte address 0x0 - dummy sync flag']
  #allocation41 [shape = 's32[]', space=sflag, size = 0x4, offset = 0, fixed_abs, tag = 'sflag constant byte address 0x0 - dummy sync flag']
  #allocation42 [shape = 's32[]', space=sflag, size = 0x4, offset = 0, fixed_abs, tag = 'sflag constant byte address 0x0 - dummy sync flag']
  #allocation43 [shape = 's32[]', space=sflag, size = 0x4, offset = 0, fixed_abs, tag = 'sflag constant byte address 0x0 - dummy sync flag']
  #allocation44 [shape = 's32[]', space=sflag, size = 0x4, offset = 0, fixed_abs, tag = 'sflag constant byte address 0x0 - dummy sync flag']
  #allocation45 [shape = 's32[]', space=sflag, size = 0x4, offset = 0, fixed_abs, tag = 'sflag constant byte address 0x0 - dummy sync flag']
  #allocation46 [shape = 's32[]', space=sflag, size = 0x4, offset = 0, fixed_abs, tag = 'sflag constant byte address 0x0 - dummy sync flag']
  #allocation47 [shape = 's32[]', space=sflag, size = 0x4, offset = 0, fixed_abs, tag = 'sflag constant byte address 0x0 - dummy sync flag']
  %s0 = inlined_call_operand.hbm [shape: s32[8], index: 0, kind: input, shape index: {}]
  %s1 = inlined_call_operand.hbm [shape: f32[16,1,128], index: 1, kind: input, shape index: {}]
  %s2 = inlined_call_operand.vmem [shape: f32[1,128], index: 2, kind: input, shape index: {}]
  %s3 = inlined_call_operand.hbm [shape: f32[128,384], index: 3, kind: input, shape index: {}]
  %s4 = inlined_call_operand.hbm [shape: f32[128,384], index: 4, kind: input, shape index: {}]
  %s5 = inlined_call_operand.vmem [shape: f32[1,384], index: 5, kind: input, shape index: {}]
  %s6 = inlined_call_operand.vmem [shape: f32[1,384], index: 6, kind: input, shape index: {}]
  %s7 = inlined_call_operand.hbm [shape: f32[8,128], index: 7, kind: output, shape index: {}]
  %s8 = sld [smem:[#allocation0]]
  $region110: #{tpu_custom_call.1} parent=0
    _
  %s10 = ssub.s32 1, %s8
  %s11 = scalar_select 0, %s10, %s8
  %13 = dma.hbm_to_smem %s0, 16, [#allocation7], [#allocation6]
  %14 = dma.done [#allocation6], 16
  %15 = sfence
  $region1: #{tpu_custom_call.1} parent=0
    #allocation8 [shape = 'u8[196608]{0}', space=vmem, size = 0x30000, scoped, tag = 'input window, operand 3, single buffered']
    #allocation9 [shape = 's32[1]{0}', space=sflag, size = 0x4, scoped, tag = 'scoped memory for tpu_custom_call.1']
    #allocation10 [shape = 's32[1]{0}', space=sflag, size = 0x4, scoped, tag = 'scoped memory for tpu_custom_call.1']
    #allocation11 [shape = 'u8[196608]{0}', space=vmem, size = 0x30000, scoped, tag = 'input window, operand 4, single buffered']
    #allocation12 [shape = 's32[1]{0}', space=sflag, size = 0x4, scoped, tag = 'scoped memory for tpu_custom_call.1']
    #allocation13 [shape = 'u8[4096]{0}', space=vmem, size = 0x1000, scoped, tag = 'output window, operand 0, single buffered']
    %16 = vsyncpa [#allocation9], 0
    %17 = vsyncpa [#allocation12], 0
    %18 = vsyncpa [#allocation10], 0
    // Predicated region
    $region2: #{tpu_custom_call.1} parent=1 // pred_check
      _
    $region3: #{tpu_custom_call.1} parent=1 // pred_check_branch
      %20 = sbr.rel (0) target = $region5
    $region4: #{tpu_custom_call.1} parent=1 // pred_region
      _
    $region5: #{tpu_custom_call.1} parent=1 // pred_fallthru
      _
    // Predicated region
    $region6: #{tpu_custom_call.1} parent=1 // pred_check
      _
    $region7: #{tpu_custom_call.1} parent=1 // pred_check_branch
      %22 = sbr.rel (0) target = $region9
    $region8: #{tpu_custom_call.1} parent=1 // pred_region
      %s24 = ssub.s32 6144, 6144
      %25 = vsyncadd [#allocation9], %s24
      %s26 = sshll.u32 [#allocation8], 4
      %s27 = int_to_ptr.vmem [resolvable:$true] %s26
      %32 = dma.hbm_to_vmem [thread:$0]  %s3, 6144, %s27, [#allocation9], 384, 384, 24
    $region9: #{tpu_custom_call.1} parent=1 // pred_fallthru
      _
    // Predicated region
    $region10: #{tpu_custom_call.1} parent=1 // pred_check
      _
    $region11: #{tpu_custom_call.1} parent=1 // pred_check_branch
      %34 = sbr.rel (0) target = $region13
    $region12: #{tpu_custom_call.1} parent=1 // pred_region
      %s36 = ssub.s32 6144, 6144
      %37 = vsyncadd [#allocation12], %s36
      %s38 = sshll.u32 [#allocation11], 4
      %s39 = int_to_ptr.vmem [resolvable:$true] %s38
      %44 = dma.hbm_to_vmem [thread:$0]  %s4, 6144, %s39, [#allocation12], 384, 384, 24
    $region13: #{tpu_custom_call.1} parent=1 // pred_fallthru
      _
    // Predicated region
    $region14: #{tpu_custom_call.1} parent=1 // pred_check
      _
    $region15: #{tpu_custom_call.1} parent=1 // pred_check_branch
      %46 = sbr.rel (0) target = $region17
    $region16: #{tpu_custom_call.1} parent=1 // pred_region
      _
    $region17: #{tpu_custom_call.1} parent=1 // pred_fallthru
      _
    // Predicated region
    $region18: #{tpu_custom_call.1} parent=1 // pred_check
      _
    $region19: #{tpu_custom_call.1} parent=1 // pred_check_branch
      %48 = sbr.rel (0) target = $region21
    $region20: #{tpu_custom_call.1} parent=1 // pred_region
      _
    $region21: #{tpu_custom_call.1} parent=1 // pred_fallthru
      _
    // Predicated region
    $region22: #{tpu_custom_call.1} parent=1 // pred_check
      _
    $region23: #{tpu_custom_call.1} parent=1 // pred_check_branch
      %50 = sbr.rel (0) target = $region25
    $region24: #{tpu_custom_call.1} parent=1 // pred_region
      %51 = dma.done [#allocation9], 6144
    $region25: #{tpu_custom_call.1} parent=1 // pred_fallthru
      _
    // Predicated region
    $region26: #{tpu_custom_call.1} parent=1 // pred_check
      _
    $region27: #{tpu_custom_call.1} parent=1 // pred_check_branch
      %53 = sbr.rel (0) target = $region29
    $region28: #{tpu_custom_call.1} parent=1 // pred_region
      %54 = dma.done [#allocation12], 6144
    $region29: #{tpu_custom_call.1} parent=1 // pred_fallthru
      _
    %p55 = scmp.eq.s32.totalorder 0, 0
    // Predicated region
    $region30: #{tpu_custom_call.1} parent=1 // pred_check
      %p56 = pneg %p55
    $region31: #{tpu_custom_call.1} parent=1 // pred_check_branch
      %58 = sbr.rel (%p56) target = $region33
    $region32: #{tpu_custom_call.1} parent=1 // pred_region
      %v59 = vld [vmem:[%s2] sm:$0x1]
      %60 = vst [vmem:[#allocation2] sm:$0x1] %v59
      %s61 = sld [smem:[#allocation7]]
      %s62 = smul.addr %s61, 16
      %s63 = scalar_lea.hbm %s1, %s62
      // Predicated region
      $region34: #{tpu_custom_call.1} parent=32 // pred_check
        _
      $region35: #{tpu_custom_call.1} parent=32 // pred_check_branch
        %65 = sbr.rel target = $region37
      $region36: #{tpu_custom_call.1} parent=32 // pred_region
        %66 = sst [smem:[#allocation16]] [#allocation15]
        %67 = sst [smem:[#allocation17]] [#allocation14]
      $region37: #{tpu_custom_call.1} parent=32 // pred_fallthru
        _
      %69 = shalt.err (0)
      %s71 = sshll.u32 [#allocation3], 4
      %s72 = int_to_ptr.vmem [resolvable:$true] %s71
      %74 = dma.hbm_to_vmem [thread:$0]  %s63, 16, %s72, [#allocation5]
      %s75 = sld [smem:[#allocation7 + $0x1]]
      %s76 = smul.addr %s75, 16
      %s77 = scalar_lea.hbm %s1, %s76
      %s78 = scalar_lea.vmem [#allocation3], 1
      %s79 = scalar_lea.sflag [#allocation5], 1
      // Predicated region
      $region38: #{tpu_custom_call.1} parent=32 // pred_check
        _
      $region39: #{tpu_custom_call.1} parent=32 // pred_check_branch
        %81 = sbr.rel target = $region41
      $region40: #{tpu_custom_call.1} parent=32 // pred_region
        %82 = sst [smem:[#allocation16]] [#allocation19]
        %83 = sst [smem:[#allocation17]] [#allocation18]
      $region41: #{tpu_custom_call.1} parent=32 // pred_fallthru
        _
      %85 = shalt.err (0)
      %s87 = sshll.u32 %s78, 4
      %s88 = int_to_ptr.vmem [resolvable:$true] %s87
      %90 = dma.hbm_to_vmem [thread:$0]  %s77, 16, %s88, %s79
      %s91 = sld [smem:[#allocation7 + $0x2]]
      %s92 = smul.addr %s91, 16
      %s93 = scalar_lea.hbm %s1, %s92
      %s94 = scalar_lea.vmem [#allocation3], 2
      %s95 = scalar_lea.sflag [#allocation5], 2
      // Predicated region
      $region42: #{tpu_custom_call.1} parent=32 // pred_check
        _
      $region43: #{tpu_custom_call.1} parent=32 // pred_check_branch
        %97 = sbr.rel target = $region45
      $region44: #{tpu_custom_call.1} parent=32 // pred_region
        %98 = sst [smem:[#allocation16]] [#allocation21]
        %99 = sst [smem:[#allocation17]] [#allocation20]
      $region45: #{tpu_custom_call.1} parent=32 // pred_fallthru
        _
      %101 = shalt.err (0)
      %s103 = sshll.u32 %s94, 4
      %s104 = int_to_ptr.vmem [resolvable:$true] %s103
      %106 = dma.hbm_to_vmem [thread:$0]  %s93, 16, %s104, %s95
      %s107 = sld [smem:[#allocation7 + $0x3]]
      %s108 = smul.addr %s107, 16
      %s109 = scalar_lea.hbm %s1, %s108
      %s110 = scalar_lea.vmem [#allocation3], 3
      %s111 = scalar_lea.sflag [#allocation5], 3
      // Predicated region
      $region46: #{tpu_custom_call.1} parent=32 // pred_check
        _
      $region47: #{tpu_custom_call.1} parent=32 // pred_check_branch
        %113 = sbr.rel target = $region49
      $region48: #{tpu_custom_call.1} parent=32 // pred_region
        %114 = sst [smem:[#allocation16]] [#allocation23]
        %115 = sst [smem:[#allocation17]] [#allocation22]
      $region49: #{tpu_custom_call.1} parent=32 // pred_fallthru
        _
      %117 = shalt.err (0)
      %s119 = sshll.u32 %s110, 4
      %s120 = int_to_ptr.vmem [resolvable:$true] %s119
      %122 = dma.hbm_to_vmem [thread:$0]  %s109, 16, %s120, %s111
      %s123 = sld [smem:[#allocation7 + $0x4]]
      %s124 = smul.addr %s123, 16
      %s125 = scalar_lea.hbm %s1, %s124
      %s126 = scalar_lea.vmem [#allocation3], 4
      %s127 = scalar_lea.sflag [#allocation5], 4
      // Predicated region
      $region50: #{tpu_custom_call.1} parent=32 // pred_check
        _
      $region51: #{tpu_custom_call.1} parent=32 // pred_check_branch
        %129 = sbr.rel target = $region53
      $region52: #{tpu_custom_call.1} parent=32 // pred_region
        %130 = sst [smem:[#allocation16]] [#allocation25]
        %131 = sst [smem:[#allocation17]] [#allocation24]
      $region53: #{tpu_custom_call.1} parent=32 // pred_fallthru
        _
      %133 = shalt.err (0)
      %s135 = sshll.u32 %s126, 4
      %s136 = int_to_ptr.vmem [resolvable:$true] %s135
      %138 = dma.hbm_to_vmem [thread:$0]  %s125, 16, %s136, %s127
      %s139 = sld [smem:[#allocation7 + $0x5]]
      %s140 = smul.addr %s139, 16
      %s141 = scalar_lea.hbm %s1, %s140
      %s142 = scalar_lea.vmem [#allocation3], 5
      %s143 = scalar_lea.sflag [#allocation5], 5
      // Predicated region
      $region54: #{tpu_custom_call.1} parent=32 // pred_check
        _
      $region55: #{tpu_custom_call.1} parent=32 // pred_check_branch
        %145 = sbr.rel target = $region57
      $region56: #{tpu_custom_call.1} parent=32 // pred_region
        %146 = sst [smem:[#allocation16]] [#allocation27]
        %147 = sst [smem:[#allocation17]] [#allocation26]
      $region57: #{tpu_custom_call.1} parent=32 // pred_fallthru
        _
      %149 = shalt.err (0)
      %s151 = sshll.u32 %s142, 4
      %s152 = int_to_ptr.vmem [resolvable:$true] %s151
      %154 = dma.hbm_to_vmem [thread:$0]  %s141, 16, %s152, %s143
      %s155 = sld [smem:[#allocation7 + $0x6]]
      %s156 = smul.addr %s155, 16
      %s157 = scalar_lea.hbm %s1, %s156
      %s158 = scalar_lea.vmem [#allocation3], 6
      %s159 = scalar_lea.sflag [#allocation5], 6
      // Predicated region
      $region58: #{tpu_custom_call.1} parent=32 // pred_check
        _
      $region59: #{tpu_custom_call.1} parent=32 // pred_check_branch
        %161 = sbr.rel target = $region61
      $region60: #{tpu_custom_call.1} parent=32 // pred_region
        %162 = sst [smem:[#allocation16]] [#allocation29]
        %163 = sst [smem:[#allocation17]] [#allocation28]
      $region61: #{tpu_custom_call.1} parent=32 // pred_fallthru
        _
      %165 = shalt.err (0)
      %s167 = sshll.u32 %s158, 4
      %s168 = int_to_ptr.vmem [resolvable:$true] %s167
      %170 = dma.hbm_to_vmem [thread:$0]  %s157, 16, %s168, %s159
      %s171 = sld [smem:[#allocation7 + $0x7]]
      %s172 = smul.addr %s171, 16
      %s173 = scalar_lea.hbm %s1, %s172
      %s174 = scalar_lea.vmem [#allocation3], 7
      %s175 = scalar_lea.sflag [#allocation5], 7
      // Predicated region
      $region62: #{tpu_custom_call.1} parent=32 // pred_check
        _
      $region63: #{tpu_custom_call.1} parent=32 // pred_check_branch
        %177 = sbr.rel target = $region65
      $region64: #{tpu_custom_call.1} parent=32 // pred_region
        %178 = sst [smem:[#allocation16]] [#allocation31]
        %179 = sst [smem:[#allocation17]] [#allocation30]
      $region65: #{tpu_custom_call.1} parent=32 // pred_fallthru
        _
      %181 = shalt.err (0)
      %s183 = sshll.u32 %s174, 4
      %s184 = int_to_ptr.vmem [resolvable:$true] %s183
      %186 = dma.hbm_to_vmem [thread:$0]  %s173, 16, %s184, %s175
    $region33: #{tpu_custom_call.1} parent=1 // pred_fallthru
      _
    %s187 = ssub.s32 0, 0
    %s188 = ssub.s32 0, 0
    %p189 = scmp.ne.s32.totalorder 0, 0
    %p190 = scmp.lt.s32.totalorder 0, 0
    %p191 = pnand %p190, %p189
    %p192 = pneg %p191
    %s193 = sadd.s32 0, 2
    %s194 = scalar_select %p192, %s193, 0
    %s195 = sadd.s32 0, 1
    %p196 = scmp.lt.s32.totalorder %s195, 1
    // Predicated region
    $region66: #{tpu_custom_call.1} parent=1 // pred_check
      %p197 = pneg %p196
    $region67: #{tpu_custom_call.1} parent=1 // pred_check_branch
      %199 = sbr.rel (%p197) target = $region69
    $region68: #{tpu_custom_call.1} parent=1 // pred_region
      %s200 = ssub.s32 1, %s194
      %s201 = smul.u32 %s195, 8
      %s202 = sld [smem:[#allocation7 + %s201]]
      %s203 = smul.addr %s202, 16
      %s204 = scalar_lea.hbm %s1, %s203
      %s205 = smul.u32 %s200, 8
      %s206 = scalar_lea.vmem [#allocation3], %s205
      %s207 = scalar_lea.sflag [#allocation5], %s205
      // Predicated region
      $region70: #{tpu_custom_call.1} parent=68 // pred_check
        _
      $region71: #{tpu_custom_call.1} parent=68 // pred_check_branch
        %209 = sbr.rel target = $region73
      $region72: #{tpu_custom_call.1} parent=68 // pred_region
        %210 = sst [smem:[#allocation16]] [#allocation33]
        %211 = sst [smem:[#allocation17]] [#allocation32]
      $region73: #{tpu_custom_call.1} parent=68 // pred_fallthru
        _
      %213 = shalt.err (0)
      %s215 = sshll.u32 %s206, 4
      %s216 = int_to_ptr.vmem [resolvable:$true] %s215
      %218 = dma.hbm_to_vmem [thread:$0]  %s204, 16, %s216, %s207
      %s219 = sadd.s32 %s201, 1
      %s220 = sld [smem:[#allocation7 + %s219]]
      %s221 = smul.addr %s220, 16
      %s222 = scalar_lea.hbm %s1, %s221
      %s223 = sadd.s32 1, %s205
      %s224 = scalar_lea.vmem [#allocation3], %s223
      %s225 = scalar_lea.sflag [#allocation5], %s223
      // Predicated region
      $region74: #{tpu_custom_call.1} parent=68 // pred_check
        _
      $region75: #{tpu_custom_call.1} parent=68 // pred_check_branch
        %227 = sbr.rel target = $region77
      $region76: #{tpu_custom_call.1} parent=68 // pred_region
        %228 = sst [smem:[#allocation16]] [#allocation35]
        %229 = sst [smem:[#allocation17]] [#allocation34]
      $region77: #{tpu_custom_call.1} parent=68 // pred_fallthru
        _
      %231 = shalt.err (0)
      %s233 = sshll.u32 %s224, 4
      %s234 = int_to_ptr.vmem [resolvable:$true] %s233
      %236 = dma.hbm_to_vmem [thread:$0]  %s222, 16, %s234, %s225
      %s237 = sadd.s32 %s201, 2
      %s238 = sld [smem:[#allocation7 + %s237]]
      %s239 = smul.addr %s238, 16
      %s240 = scalar_lea.hbm %s1, %s239
      %s241 = sadd.s32 2, %s205
      %s242 = scalar_lea.vmem [#allocation3], %s241
      %s243 = scalar_lea.sflag [#allocation5], %s241
      // Predicated region
      $region78: #{tpu_custom_call.1} parent=68 // pred_check
        _
      $region79: #{tpu_custom_call.1} parent=68 // pred_check_branch
        %245 = sbr.rel target = $region81
      $region80: #{tpu_custom_call.1} parent=68 // pred_region
        %246 = sst [smem:[#allocation16]] [#allocation37]
        %247 = sst [smem:[#allocation17]] [#allocation36]
      $region81: #{tpu_custom_call.1} parent=68 // pred_fallthru
        _
      %249 = shalt.err (0)
      %s251 = sshll.u32 %s242, 4
      %s252 = int_to_ptr.vmem [resolvable:$true] %s251
      %254 = dma.hbm_to_vmem [thread:$0]  %s240, 16, %s252, %s243
      %s255 = sadd.s32 %s201, 3
      %s256 = sld [smem:[#allocation7 + %s255]]
      %s257 = smul.addr %s256, 16
      %s258 = scalar_lea.hbm %s1, %s257
      %s259 = sadd.s32 3, %s205
      %s260 = scalar_lea.vmem [#allocation3], %s259
      %s261 = scalar_lea.sflag [#allocation5], %s259
      // Predicated region
      $region82: #{tpu_custom_call.1} parent=68 // pred_check
        _
      $region83: #{tpu_custom_call.1} parent=68 // pred_check_branch
        %263 = sbr.rel target = $region85
      $region84: #{tpu_custom_call.1} parent=68 // pred_region
        %264 = sst [smem:[#allocation16]] [#allocation39]
        %265 = sst [smem:[#allocation17]] [#allocation38]
      $region85: #{tpu_custom_call.1} parent=68 // pred_fallthru
        _
      %267 = shalt.err (0)
      %s269 = sshll.u32 %s260, 4
      %s270 = int_to_ptr.vmem [resolvable:$true] %s269
      %272 = dma.hbm_to_vmem [thread:$0]  %s258, 16, %s270, %s261
      %s273 = sadd.s32 %s201, 4
      %s274 = sld [smem:[#allocation7 + %s273]]
      %s275 = smul.addr %s274, 16
      %s276 = scalar_lea.hbm %s1, %s275
      %s277 = sadd.s32 4, %s205
      %s278 = scalar_lea.vmem [#allocation3], %s277
      %s279 = scalar_lea.sflag [#allocation5], %s277
      // Predicated region
      $region86: #{tpu_custom_call.1} parent=68 // pred_check
        _
      $region87: #{tpu_custom_call.1} parent=68 // pred_check_branch
        %281 = sbr.rel target = $region89
      $region88: #{tpu_custom_call.1} parent=68 // pred_region
        %282 = sst [smem:[#allocation16]] [#allocation41]
        %283 = sst [smem:[#allocation17]] [#allocation40]
      $region89: #{tpu_custom_call.1} parent=68 // pred_fallthru
        _
      %285 = shalt.err (0)
      %s287 = sshll.u32 %s278, 4
      %s288 = int_to_ptr.vmem [resolvable:$true] %s287
      %290 = dma.hbm_to_vmem [thread:$0]  %s276, 16, %s288, %s279
      %s291 = sadd.s32 %s201, 5
      %s292 = sld [smem:[#allocation7 + %s291]]
      %s293 = smul.addr %s292, 16
      %s294 = scalar_lea.hbm %s1, %s293
      %s295 = sadd.s32 5, %s205
      %s296 = scalar_lea.vmem [#allocation3], %s295
      %s297 = scalar_lea.sflag [#allocation5], %s295
      // Predicated region
      $region90: #{tpu_custom_call.1} parent=68 // pred_check
        _
      $region91: #{tpu_custom_call.1} parent=68 // pred_check_branch
        %299 = sbr.rel target = $region93
      $region92: #{tpu_custom_call.1} parent=68 // pred_region
        %300 = sst [smem:[#allocation16]] [#allocation43]
        %301 = sst [smem:[#allocation17]] [#allocation42]
      $region93: #{tpu_custom_call.1} parent=68 // pred_fallthru
        _
      %303 = shalt.err (0)
      %s305 = sshll.u32 %s296, 4
      %s306 = int_to_ptr.vmem [resolvable:$true] %s305
      %308 = dma.hbm_to_vmem [thread:$0]  %s294, 16, %s306, %s297
      %s309 = sadd.s32 %s201, 6
      %s310 = sld [smem:[#allocation7 + %s309]]
      %s311 = smul.addr %s310, 16
      %s312 = scalar_lea.hbm %s1, %s311
      %s313 = sadd.s32 6, %s205
      %s314 = scalar_lea.vmem [#allocation3], %s313
      %s315 = scalar_lea.sflag [#allocation5], %s313
      // Predicated region
      $region94: #{tpu_custom_call.1} parent=68 // pred_check
        _
      $region95: #{tpu_custom_call.1} parent=68 // pred_check_branch
        %317 = sbr.rel target = $region97
      $region96: #{tpu_custom_call.1} parent=68 // pred_region
        %318 = sst [smem:[#allocation16]] [#allocation45]
        %319 = sst [smem:[#allocation17]] [#allocation44]
      $region97: #{tpu_custom_call.1} parent=68 // pred_fallthru
        _
      %321 = shalt.err (0)
      %s323 = sshll.u32 %s314, 4
      %s324 = int_to_ptr.vmem [resolvable:$true] %s323
      %326 = dma.hbm_to_vmem [thread:$0]  %s312, 16, %s324, %s315
      %s327 = sadd.s32 %s201, 7
      %s328 = sld [smem:[#allocation7 + %s327]]
      %s329 = smul.addr %s328, 16
      %s330 = scalar_lea.hbm %s1, %s329
      %s331 = sadd.s32 7, %s205
      %s332 = scalar_lea.vmem [#allocation3], %s331
      %s333 = scalar_lea.sflag [#allocation5], %s331
      // Predicated region
      $region98: #{tpu_custom_call.1} parent=68 // pred_check
        _
      $region99: #{tpu_custom_call.1} parent=68 // pred_check_branch
        %335 = sbr.rel target = $region101
      $region100: #{tpu_custom_call.1} parent=68 // pred_region
        %336 = sst [smem:[#allocation16]] [#allocation47]
        %337 = sst [smem:[#allocation17]] [#allocation46]
      $region101: #{tpu_custom_call.1} parent=68 // pred_fallthru
        _
      %339 = shalt.err (0)
      %s341 = sshll.u32 %s332, 4
      %s342 = int_to_ptr.vmem [resolvable:$true] %s341
      %344 = dma.hbm_to_vmem [thread:$0]  %s330, 16, %s342, %s333
    $region69: #{tpu_custom_call.1} parent=1 // pred_fallthru
      _
    %s345 = smul.u32 %s194, 8
    %s346 = scalar_lea.sflag [#allocation5], %s345
    %s347 = smul.u32 1, 1
    %s348 = sshll.u32 %s347, 4
    %349 = dma.done %s346, %s348
    %s350 = sadd.s32 1, %s345
    %s351 = scalar_lea.sflag [#allocation5], %s350
    %s352 = sshll.u32 %s347, 4
    %353 = dma.done %s351, %s352
    %s354 = sadd.s32 2, %s345
    %s355 = scalar_lea.sflag [#allocation5], %s354
    %s356 = sshll.u32 %s347, 4
    %357 = dma.done %s355, %s356
    %s358 = sadd.s32 3, %s345
    %s359 = scalar_lea.sflag [#allocation5], %s358
    %s360 = sshll.u32 %s347, 4
    %361 = dma.done %s359, %s360
    %s362 = sadd.s32 4, %s345
    %s363 = scalar_lea.sflag [#allocation5], %s362
    %s364 = sshll.u32 %s347, 4
    %365 = dma.done %s363, %s364
    %s366 = sadd.s32 5, %s345
    %s367 = scalar_lea.sflag [#allocation5], %s366
    %s368 = sshll.u32 %s347, 4
    %369 = dma.done %s367, %s368
    %s370 = sadd.s32 6, %s345
    %s371 = scalar_lea.sflag [#allocation5], %s370
    %s372 = sshll.u32 %s347, 4
    %373 = dma.done %s371, %s372
    %s374 = sadd.s32 7, %s345
    %s375 = scalar_lea.sflag [#allocation5], %s374
    %s376 = sshll.u32 %s347, 4
    %377 = dma.done %s375, %s376
    %s378 = scalar_lea.vmem [#allocation3], %s345
    %v379 = vld [vmem:[%s378] sm:$0xff]
    %v380 = vld [vmem:[#allocation8] sm:$0xff]
    %v381 = vld [vmem:[#allocation8 + $0x8] sm:$0xff]
    %v382 = vld [vmem:[#allocation8 + $0x10] sm:$0xff]
    %v383 = vld [vmem:[#allocation8 + $0x18] sm:$0xff]
    %v384 = vld [vmem:[#allocation8 + $0x20] sm:$0xff]
    %v385 = vld [vmem:[#allocation8 + $0x28] sm:$0xff]
    %v386 = vld [vmem:[#allocation8 + $0x30] sm:$0xff]
    %v387 = vld [vmem:[#allocation8 + $0x38] sm:$0xff]
    %v388 = vld [vmem:[#allocation8 + $0x40] sm:$0xff]
    %v389 = vld [vmem:[#allocation8 + $0x48] sm:$0xff]
    %v390 = vld [vmem:[#allocation8 + $0x50] sm:$0xff]
    %v391 = vld [vmem:[#allocation8 + $0x58] sm:$0xff]
    %v392 = vld [vmem:[#allocation8 + $0x60] sm:$0xff]
    %v393 = vld [vmem:[#allocation8 + $0x68] sm:$0xff]
    %v394 = vld [vmem:[#allocation8 + $0x70] sm:$0xff]
    %v395 = vld [vmem:[#allocation8 + $0x78] sm:$0xff]
    %v396 = vld [vmem:[#allocation8 + $0x80] sm:$0xff]
    %v397 = vld [vmem:[#allocation8 + $0x88] sm:$0xff]
    %v398 = vld [vmem:[#allocation8 + $0x90] sm:$0xff]
    %v399 = vld [vmem:[#allocation8 + $0x98] sm:$0xff]
    %v400 = vld [vmem:[#allocation8 + $0xa0] sm:$0xff]
    %v401 = vld [vmem:[#allocation8 + $0xa8] sm:$0xff]
    %v402 = vld [vmem:[#allocation8 + $0xb0] sm:$0xff]
    %v403 = vld [vmem:[#allocation8 + $0xb8] sm:$0xff]
    %v404 = vld [vmem:[#allocation8 + $0xc0] sm:$0xff]
    %v405 = vld [vmem:[#allocation8 + $0xc8] sm:$0xff]
    %v406 = vld [vmem:[#allocation8 + $0xd0] sm:$0xff]
    %v407 = vld [vmem:[#allocation8 + $0xd8] sm:$0xff]
    %v408 = vld [vmem:[#allocation8 + $0xe0] sm:$0xff]
    %v409 = vld [vmem:[#allocation8 + $0xe8] sm:$0xff]
    %v410 = vld [vmem:[#allocation8 + $0xf0] sm:$0xff]
    %v411 = vld [vmem:[#allocation8 + $0xf8] sm:$0xff]
    %v412 = vld [vmem:[#allocation8 + $0x100] sm:$0xff]
    %v413 = vld [vmem:[#allocation8 + $0x108] sm:$0xff]
    %v414 = vld [vmem:[#allocation8 + $0x110] sm:$0xff]
    %v415 = vld [vmem:[#allocation8 + $0x118] sm:$0xff]
    %v416 = vld [vmem:[#allocation8 + $0x120] sm:$0xff]
    %v417 = vld [vmem:[#allocation8 + $0x128] sm:$0xff]
    %v418 = vld [vmem:[#allocation8 + $0x130] sm:$0xff]
    %v419 = vld [vmem:[#allocation8 + $0x138] sm:$0xff]
    %v420 = vld [vmem:[#allocation8 + $0x140] sm:$0xff]
    %v421 = vld [vmem:[#allocation8 + $0x148] sm:$0xff]
    %v422 = vld [vmem:[#allocation8 + $0x150] sm:$0xff]
    %v423 = vld [vmem:[#allocation8 + $0x158] sm:$0xff]
    %v424 = vld [vmem:[#allocation8 + $0x160] sm:$0xff]
    %v425 = vld [vmem:[#allocation8 + $0x168] sm:$0xff]
    %v426 = vld [vmem:[#allocation8 + $0x170] sm:$0xff]
    %v427 = vld [vmem:[#allocation8 + $0x178] sm:$0xff]
    %v428 = vld [vmem:[%s5] sm:$0x7]
    %v430 = vlaneseq
    %v431 = vshrl.u32 %v430, 7
    %v432 = vsub.s32 0, %v431
    %v433 = vrot.slane %v428, %v432
    %v434 = vlaneseq
    %v435 = vshrl.u32 %v434, 7
    %v436 = vsub.s32 1, %v435
    %v437 = vrot.slane %v428, %v436
    %v438 = vlaneseq
    %v439 = vshrl.u32 %v438, 7
    %v440 = vsub.s32 2, %v439
    %v441 = vrot.slane %v428, %v440
    %445 = vmatprep.subr.mxu0 %v426
    %446 = vmatpush1.msra.mxu0 %v425
    %447 = vmatprep.subr.mxu0 %v423
    %448 = vmatpush1.msra.mxu0 %v422
    %449 = vmatprep.subr.mxu0 %v420
    %450 = vmatpush1.msra.mxu0 %v419
    %451 = vmatprep.subr.mxu0 %v417
    %452 = vmatpush1.msra.mxu0 %v416
    %453 = vmatprep.subr.mxu0 %v414
    %454 = vmatpush1.msra.mxu0 %v413
    %455 = vmatprep.subr.mxu0 %v411
    %456 = vmatpush1.msra.mxu0 %v410
    %457 = vmatprep.subr.mxu0 %v408
    %458 = vmatpush1.msra.mxu0 %v407
    %459 = vmatprep.subr.mxu0 %v405
    %460 = vmatpush1.msra.mxu0 %v404
    %461 = vmatprep.subr.mxu0 %v402
    %462 = vmatpush1.msra.mxu0 %v401
    %463 = vmatprep.subr.mxu0 %v399
    %464 = vmatpush1.msra.mxu0 %v398
    %465 = vmatprep.subr.mxu0 %v396
    %466 = vmatpush1.msra.mxu0 %v395
    %467 = vmatprep.subr.mxu0 %v393
    %468 = vmatpush1.msra.mxu0 %v392
    %469 = vmatprep.subr.mxu0 %v390
    %470 = vmatpush1.msra.mxu0 %v389
    %471 = vmatprep.subr.mxu0 %v387
    %472 = vmatpush1.msra.mxu0 %v386
    %473 = vmatprep.subr.mxu0 %v384
    %474 = vmatpush1.msra.mxu0 %v383
    %475 = vmatprep.subr.mxu0 %v381
    %476 = vmatpush1.msra.mxu0 %v380
    %477 = vmatprep.subr.mxu0 0.0
    %478 = vmatpush2.msra.mxu0 0.0
    %479 = vmatprep.subr.mxu0 0.0
    %480 = vmatpush2.msra.mxu0 0.0
    %481 = vmatprep.subr.mxu0 0.0
    %482 = vmatpush2.msra.mxu0 0.0
    %483 = vmatprep.subr.mxu0 0.0
    %484 = vmatpush2.msra.mxu0 0.0
    %485 = vmatprep.subr.mxu0 0.0
    %486 = vmatpush2.msra.mxu0 0.0
    %487 = vmatprep.subr.mxu0 0.0
    %488 = vmatpush2.msra.mxu0 0.0
    %489 = vmatprep.subr.mxu0 0.0
    %490 = vmatpush2.msra.mxu0 0.0
    %491 = vmatprep.subr.mxu0 0.0
    %492 = vmatpush2.msra.mxu0 0.0
    %493 = vmatprep.subr.mxu0 0.0
    %494 = vmatpush2.msra.mxu0 0.0
    %495 = vmatprep.subr.mxu0 0.0
    %496 = vmatpush2.msra.mxu0 0.0
    %497 = vmatprep.subr.mxu0 0.0
    %498 = vmatpush2.msra.mxu0 0.0
    %499 = vmatprep.subr.mxu0 0.0
    %500 = vmatpush2.msra.mxu0 0.0
    %501 = vmatprep.subr.mxu0 0.0
    %502 = vmatpush2.msra.mxu0 0.0
    %503 = vmatprep.subr.mxu0 0.0
    %504 = vmatpush2.msra.mxu0 0.0
    %505 = vmatprep.subr.mxu0 0.0
    %506 = vmatpush2.msra.mxu0 0.0
    %507 = vmatprep.subr.mxu0 0.0
    %508 = vmatpush2.msra.mxu0 0.0
    %509 = vmatprep.mubr.f32.mxu0 0.0
    %510 = vmatmul.mubr.f32.gmra.mxu0 %v379
    %v511 = vpop.f32.mrf.mxu0
    %v512 = vadd.f32 %v433, %v511
    %v513 = vpop.f32.mrf.mxu0
    %v514 = vadd.f32 %v437, %v513
    %515 = vdwg.mxu0
    %516 = vmatprep.subr.mxu0 0.0
    %517 = vmatpush1.msra.mxu0 %v427
    %518 = vmatprep.subr.mxu0 0.0
    %519 = vmatpush1.msra.mxu0 %v424
    %520 = vmatprep.subr.mxu0 0.0
    %521 = vmatpush1.msra.mxu0 %v421
    %522 = vmatprep.subr.mxu0 0.0
    %523 = vmatpush1.msra.mxu0 %v418
    %524 = vmatprep.subr.mxu0 0.0
    %525 = vmatpush1.msra.mxu0 %v415
    %526 = vmatprep.subr.mxu0 0.0
    %527 = vmatpush1.msra.mxu0 %v412
    %528 = vmatprep.subr.mxu0 0.0
    %529 = vmatpush1.msra.mxu0 %v409
    %530 = vmatprep.subr.mxu0 0.0
    %531 = vmatpush1.msra.mxu0 %v406
    %532 = vmatprep.subr.mxu0 0.0
    %533 = vmatpush1.msra.mxu0 %v403
    %534 = vmatprep.subr.mxu0 0.0
    %535 = vmatpush1.msra.mxu0 %v400
    %536 = vmatprep.subr.mxu0 0.0
    %537 = vmatpush1.msra.mxu0 %v397
    %538 = vmatprep.subr.mxu0 0.0
    %539 = vmatpush1.msra.mxu0 %v394
    %540 = vmatprep.subr.mxu0 0.0
    %541 = vmatpush1.msra.mxu0 %v391
    %542 = vmatprep.subr.mxu0 0.0
    %543 = vmatpush1.msra.mxu0 %v388
    %544 = vmatprep.subr.mxu0 0.0
    %545 = vmatpush1.msra.mxu0 %v385
    %546 = vmatprep.subr.mxu0 0.0
    %547 = vmatpush1.msra.mxu0 %v382
    %548 = vmatprep.subr.mxu0 0.0
    %549 = vmatpush2.msra.mxu0 0.0
    %550 = vmatprep.subr.mxu0 0.0
    %551 = vmatpush2.msra.mxu0 0.0
    %552 = vmatprep.subr.mxu0 0.0
    %553 = vmatpush2.msra.mxu0 0.0
    %554 = vmatprep.subr.mxu0 0.0
    %555 = vmatpush2.msra.mxu0 0.0
    %556 = vmatprep.subr.mxu0 0.0
    %557 = vmatpush2.msra.mxu0 0.0
    %558 = vmatprep.subr.mxu0 0.0
    %559 = vmatpush2.msra.mxu0 0.0
    %560 = vmatprep.subr.mxu0 0.0
    %561 = vmatpush2.msra.mxu0 0.0
    %562 = vmatprep.subr.mxu0 0.0
    %563 = vmatpush2.msra.mxu0 0.0
    %564 = vmatprep.subr.mxu0 0.0
    %565 = vmatpush2.msra.mxu0 0.0
    %566 = vmatprep.subr.mxu0 0.0
    %567 = vmatpush2.msra.mxu0 0.0
    %568 = vmatprep.subr.mxu0 0.0
    %569 = vmatpush2.msra.mxu0 0.0
    %570 = vmatprep.subr.mxu0 0.0
    %571 = vmatpush2.msra.mxu0 0.0
    %572 = vmatprep.subr.mxu0 0.0
    %573 = vmatpush2.msra.mxu0 0.0
    %574 = vmatprep.subr.mxu0 0.0
    %575 = vmatpush2.msra.mxu0 0.0
    %576 = vmatprep.subr.mxu0 0.0
    %577 = vmatpush2.msra.mxu0 0.0
    %578 = vmatprep.subr.mxu0 0.0
    %579 = vmatpush2.msra.mxu0 0.0
    %580 = vmatprep.mubr.f32.mxu0 0.0
    %581 = vmatmul.mubr.f32.gmra.mxu0 %v379
    %v582 = vpop.f32.mrf.mxu0
    %v583 = vadd.f32 %v441, %v582
    %v584 = vpop.f32.mrf.mxu0
    %585 = vdwg.mxu0
    %586 = vst [vmem:[#allocation4] sm:$0xff] %v512
    %587 = vst [vmem:[#allocation4 + $0x8] sm:$0xff] %v514
    %588 = vst [vmem:[#allocation4 + $0x10] sm:$0xff] %v583
    %v589 = vld [vmem:[#allocation11] sm:$0xff]
    %v590 = vld [vmem:[#allocation11 + $0x8] sm:$0xff]
    %v591 = vld [vmem:[#allocation11 + $0x10] sm:$0xff]
    %v592 = vld [vmem:[#allocation11 + $0x18] sm:$0xff]
    %v593 = vld [vmem:[#allocation11 + $0x20] sm:$0xff]
    %v594 = vld [vmem:[#allocation11 + $0x28] sm:$0xff]
    %v595 = vld [vmem:[#allocation11 + $0x30] sm:$0xff]
    %v596 = vld [vmem:[#allocation11 + $0x38] sm:$0xff]
    %v597 = vld [vmem:[#allocation11 + $0x40] sm:$0xff]
    %v598 = vld [vmem:[#allocation11 + $0x48] sm:$0xff]
    %v599 = vld [vmem:[#allocation11 + $0x50] sm:$0xff]
    %v600 = vld [vmem:[#allocation11 + $0x58] sm:$0xff]
    %v601 = vld [vmem:[#allocation11 + $0x60] sm:$0xff]
    %v602 = vld [vmem:[#allocation11 + $0x68] sm:$0xff]
    %v603 = vld [vmem:[#allocation11 + $0x70] sm:$0xff]
    %v604 = vld [vmem:[#allocation11 + $0x78] sm:$0xff]
    %v605 = vld [vmem:[#allocation11 + $0x80] sm:$0xff]
    %v606 = vld [vmem:[#allocation11 + $0x88] sm:$0xff]
    %v607 = vld [vmem:[#allocation11 + $0x90] sm:$0xff]
    %v608 = vld [vmem:[#allocation11 + $0x98] sm:$0xff]
    %v609 = vld [vmem:[#allocation11 + $0xa0] sm:$0xff]
    %v610 = vld [vmem:[#allocation11 + $0xa8] sm:$0xff]
    %v611 = vld [vmem:[#allocation11 + $0xb0] sm:$0xff]
    %v612 = vld [vmem:[#allocation11 + $0xb8] sm:$0xff]
    %v613 = vld [vmem:[#allocation11 + $0xc0] sm:$0xff]
    %v614 = vld [vmem:[#allocation11 + $0xc8] sm:$0xff]
    %v615 = vld [vmem:[#allocation11 + $0xd0] sm:$0xff]
    %v616 = vld [vmem:[#allocation11 + $0xd8] sm:$0xff]
    %v617 = vld [vmem:[#allocation11 + $0xe0] sm:$0xff]
    %v618 = vld [vmem:[#allocation11 + $0xe8] sm:$0xff]
    %v619 = vld [vmem:[#allocation11 + $0xf0] sm:$0xff]
    %v620 = vld [vmem:[#allocation11 + $0xf8] sm:$0xff]
    %v621 = vld [vmem:[#allocation11 + $0x100] sm:$0xff]
    %v622 = vld [vmem:[#allocation11 + $0x108] sm:$0xff]
    %v623 = vld [vmem:[#allocation11 + $0x110] sm:$0xff]
    %v624 = vld [vmem:[#allocation11 + $0x118] sm:$0xff]
    %v625 = vld [vmem:[#allocation11 + $0x120] sm:$0xff]
    %v626 = vld [vmem:[#allocation11 + $0x128] sm:$0xff]
    %v627 = vld [vmem:[#allocation11 + $0x130] sm:$0xff]
    %v628 = vld [vmem:[#allocation11 + $0x138] sm:$0xff]
    %v629 = vld [vmem:[#allocation11 + $0x140] sm:$0xff]
    %v630 = vld [vmem:[#allocation11 + $0x148] sm:$0xff]
    %v631 = vld [vmem:[#allocation11 + $0x150] sm:$0xff]
    %v632 = vld [vmem:[#allocation11 + $0x158] sm:$0xff]
    %v633 = vld [vmem:[#allocation11 + $0x160] sm:$0xff]
    %v634 = vld [vmem:[#allocation11 + $0x168] sm:$0xff]
    %v635 = vld [vmem:[#allocation11 + $0x170] sm:$0xff]
    %v636 = vld [vmem:[#allocation11 + $0x178] sm:$0xff]
    %v637 = vld [vmem:[%s6] sm:$0x7]
    %v638 = vld [vmem:[#allocation2] sm:$0x1]
    %v639 = vld [vmem:[#allocation4] ss:$8 sm:$0x7]
    %v641 = vlaneseq
    %v642 = vshrl.u32 %v641, 7
    %v643 = vsub.s32 0, %v642
    %v644 = vrot.slane %v637, %v643
    %v645 = vlaneseq
    %v646 = vshrl.u32 %v645, 7
    %v647 = vsub.s32 1, %v646
    %v648 = vrot.slane %v637, %v647
    %v649 = vlaneseq
    %v650 = vshrl.u32 %v649, 7
    %v651 = vsub.s32 2, %v650
    %v652 = vrot.slane %v637, %v651
    %656 = vmatprep.subr.mxu0 %v635
    %657 = vmatpush1.msra.mxu0 %v634
    %658 = vmatprep.subr.mxu0 %v632
    %659 = vmatpush1.msra.mxu0 %v631
    %660 = vmatprep.subr.mxu0 %v629
    %661 = vmatpush1.msra.mxu0 %v628
    %662 = vmatprep.subr.mxu0 %v626
    %663 = vmatpush1.msra.mxu0 %v625
    %664 = vmatprep.subr.mxu0 %v623
    %665 = vmatpush1.msra.mxu0 %v622
    %666 = vmatprep.subr.mxu0 %v620
    %667 = vmatpush1.msra.mxu0 %v619
    %668 = vmatprep.subr.mxu0 %v617
    %669 = vmatpush1.msra.mxu0 %v616
    %670 = vmatprep.subr.mxu0 %v614
    %671 = vmatpush1.msra.mxu0 %v613
    %672 = vmatprep.subr.mxu0 %v611
    %673 = vmatpush1.msra.mxu0 %v610
    %674 = vmatprep.subr.mxu0 %v608
    %675 = vmatpush1.msra.mxu0 %v607
    %676 = vmatprep.subr.mxu0 %v605
    %677 = vmatpush1.msra.mxu0 %v604
    %678 = vmatprep.subr.mxu0 %v602
    %679 = vmatpush1.msra.mxu0 %v601
    %680 = vmatprep.subr.mxu0 %v599
    %681 = vmatpush1.msra.mxu0 %v598
    %682 = vmatprep.subr.mxu0 %v596
    %683 = vmatpush1.msra.mxu0 %v595
    %684 = vmatprep.subr.mxu0 %v593
    %685 = vmatpush1.msra.mxu0 %v592
    %686 = vmatprep.subr.mxu0 %v590
    %687 = vmatpush1.msra.mxu0 %v589
    %688 = vmatprep.subr.mxu0 0.0
    %689 = vmatpush2.msra.mxu0 0.0
    %690 = vmatprep.subr.mxu0 0.0
    %691 = vmatpush2.msra.mxu0 0.0
    %692 = vmatprep.subr.mxu0 0.0
    %693 = vmatpush2.msra.mxu0 0.0
    %694 = vmatprep.subr.mxu0 0.0
    %695 = vmatpush2.msra.mxu0 0.0
    %696 = vmatprep.subr.mxu0 0.0
    %697 = vmatpush2.msra.mxu0 0.0
    %698 = vmatprep.subr.mxu0 0.0
    %699 = vmatpush2.msra.mxu0 0.0
    %700 = vmatprep.subr.mxu0 0.0
    %701 = vmatpush2.msra.mxu0 0.0
    %702 = vmatprep.subr.mxu0 0.0
    %703 = vmatpush2.msra.mxu0 0.0
    %704 = vmatprep.subr.mxu0 0.0
    %705 = vmatpush2.msra.mxu0 0.0
    %706 = vmatprep.subr.mxu0 0.0
    %707 = vmatpush2.msra.mxu0 0.0
    %708 = vmatprep.subr.mxu0 0.0
    %709 = vmatpush2.msra.mxu0 0.0
    %710 = vmatprep.subr.mxu0 0.0
    %711 = vmatpush2.msra.mxu0 0.0
    %712 = vmatprep.subr.mxu0 0.0
    %713 = vmatpush2.msra.mxu0 0.0
    %714 = vmatprep.subr.mxu0 0.0
    %715 = vmatpush2.msra.mxu0 0.0
    %716 = vmatprep.subr.mxu0 0.0
    %717 = vmatpush2.msra.mxu0 0.0
    %718 = vmatprep.subr.mxu0 0.0
    %719 = vmatpush2.msra.mxu0 0.0
    %720 = vmatprep.mubr.f32.mxu0 0.0
    %721 = vmatmul.mubr.f32.gmra.mxu0 %v638
    %v722 = vpop.f32.mrf.mxu0
    %v723 = vadd.f32 %v644, %v722
    %v724 = vpop.f32.mrf.mxu0
    %v725 = vadd.f32 %v648, %v724
    %726 = vdwg.mxu0
    %727 = vmatprep.subr.mxu0 0.0
    %728 = vmatpush1.msra.mxu0 %v636
    %729 = vmatprep.subr.mxu0 0.0
    %730 = vmatpush1.msra.mxu0 %v633
    %731 = vmatprep.subr.mxu0 0.0
    %732 = vmatpush1.msra.mxu0 %v630
    %733 = vmatprep.subr.mxu0 0.0
    %734 = vmatpush1.msra.mxu0 %v627
    %735 = vmatprep.subr.mxu0 0.0
    %736 = vmatpush1.msra.mxu0 %v624
    %737 = vmatprep.subr.mxu0 0.0
    %738 = vmatpush1.msra.mxu0 %v621
    %739 = vmatprep.subr.mxu0 0.0
    %740 = vmatpush1.msra.mxu0 %v618
    %741 = vmatprep.subr.mxu0 0.0
    %742 = vmatpush1.msra.mxu0 %v615
    %743 = vmatprep.subr.mxu0 0.0
    %744 = vmatpush1.msra.mxu0 %v612
    %745 = vmatprep.subr.mxu0 0.0
    %746 = vmatpush1.msra.mxu0 %v609
    %747 = vmatprep.subr.mxu0 0.0
    %748 = vmatpush1.msra.mxu0 %v606
    %749 = vmatprep.subr.mxu0 0.0
    %750 = vmatpush1.msra.mxu0 %v603
    %751 = vmatprep.subr.mxu0 0.0
    %752 = vmatpush1.msra.mxu0 %v600
    %753 = vmatprep.subr.mxu0 0.0
    %754 = vmatpush1.msra.mxu0 %v597
    %755 = vmatprep.subr.mxu0 0.0
    %756 = vmatpush1.msra.mxu0 %v594
    %757 = vmatprep.subr.mxu0 0.0
    %758 = vmatpush1.msra.mxu0 %v591
    %759 = vmatprep.subr.mxu0 0.0
    %760 = vmatpush2.msra.mxu0 0.0
    %761 = vmatprep.subr.mxu0 0.0
    %762 = vmatpush2.msra.mxu0 0.0
    %763 = vmatprep.subr.mxu0 0.0
    %764 = vmatpush2.msra.mxu0 0.0
    %765 = vmatprep.subr.mxu0 0.0
    %766 = vmatpush2.msra.mxu0 0.0
    %767 = vmatprep.subr.mxu0 0.0
    %768 = vmatpush2.msra.mxu0 0.0
    %769 = vmatprep.subr.mxu0 0.0
    %770 = vmatpush2.msra.mxu0 0.0
    %771 = vmatprep.subr.mxu0 0.0
    %772 = vmatpush2.msra.mxu0 0.0
    %773 = vmatprep.subr.mxu0 0.0
    %774 = vmatpush2.msra.mxu0 0.0
    %775 = vmatprep.subr.mxu0 0.0
    %776 = vmatpush2.msra.mxu0 0.0
    %777 = vmatprep.subr.mxu0 0.0
    %778 = vmatpush2.msra.mxu0 0.0
    %779 = vmatprep.subr.mxu0 0.0
    %780 = vmatpush2.msra.mxu0 0.0
    %781 = vmatprep.subr.mxu0 0.0
    %782 = vmatpush2.msra.mxu0 0.0
    %783 = vmatprep.subr.mxu0 0.0
    %784 = vmatpush2.msra.mxu0 0.0
    %785 = vmatprep.subr.mxu0 0.0
    %786 = vmatpush2.msra.mxu0 0.0
    %787 = vmatprep.subr.mxu0 0.0
    %788 = vmatpush2.msra.mxu0 0.0
    %789 = vmatprep.subr.mxu0 0.0
    %790 = vmatpush2.msra.mxu0 0.0
    %791 = vmatprep.mubr.f32.mxu0 0.0
    %792 = vmatmul.mubr.f32.gmra.mxu0 %v638
    %v793 = vpop.f32.mrf.mxu0
    %v794 = vadd.f32 %v652, %v793
    %v795 = vpop.f32.mrf.mxu0
    %796 = vdwg.mxu0
    %v797 = vadd.f32 %v639, %v723
    %v798 = vxor.u32 %v797, 2147483648
    %v799 = vmul.f32 %v798, 1.442695
    %v800 = vpow.pop %v799
    %v801 = vadd.f32 %v800, 1.0
    %v802 = vrcp.pop %v801
    %v803 = vmul.f32 1.0, %v802
    %v805 = vrot.slane %v639, 1
    %v807 = vadd.f32 %v805, %v725
    %v808 = vxor.u32 %v807, 2147483648
    %v809 = vmul.f32 %v808, 1.442695
    %v810 = vpow.pop %v809
    %v811 = vadd.f32 %v810, 1.0
    %v812 = vrcp.pop %v811
    %v813 = vmul.f32 1.0, %v812
    %v814 = vmul.f32 %v803, %v794
    %v815 = vrot.slane %v639, 2
    %v817 = vadd.f32 %v815, %v814
    %v818 = vtanh.pop %v817
    %v819 = vsub.f32 1.0, %v813
    %v820 = vmul.f32 %v819, %v818
    %v821 = vmul.f32 %v813, %v638
    %v822 = vadd.f32 %v820, %v821
    %823 = vst [vmem:[#allocation13] sm:$0x1] %v822
    %s824 = scalar_lea.vmem [#allocation4], 1
    %v825 = vld [vmem:[%s824] ss:$8 sm:$0x7]
    %826 = vmatprep.subr.mxu0 %v635
    %827 = vmatpush1.msra.mxu0 %v634
    %828 = vmatprep.subr.mxu0 %v632
    %829 = vmatpush1.msra.mxu0 %v631
    %830 = vmatprep.subr.mxu0 %v629
    %831 = vmatpush1.msra.mxu0 %v628
    %832 = vmatprep.subr.mxu0 %v626
    %833 = vmatpush1.msra.mxu0 %v625
    %834 = vmatprep.subr.mxu0 %v623
    %835 = vmatpush1.msra.mxu0 %v622
    %836 = vmatprep.subr.mxu0 %v620
    %837 = vmatpush1.msra.mxu0 %v619
    %838 = vmatprep.subr.mxu0 %v617
    %839 = vmatpush1.msra.mxu0 %v616
    %840 = vmatprep.subr.mxu0 %v614
    %841 = vmatpush1.msra.mxu0 %v613
    %842 = vmatprep.subr.mxu0 %v611
    %843 = vmatpush1.msra.mxu0 %v610
    %844 = vmatprep.subr.mxu0 %v608
    %845 = vmatpush1.msra.mxu0 %v607
    %846 = vmatprep.subr.mxu0 %v605
    %847 = vmatpush1.msra.mxu0 %v604
    %848 = vmatprep.subr.mxu0 %v602
    %849 = vmatpush1.msra.mxu0 %v601
    %850 = vmatprep.subr.mxu0 %v599
    %851 = vmatpush1.msra.mxu0 %v598
    %852 = vmatprep.subr.mxu0 %v596
    %853 = vmatpush1.msra.mxu0 %v595
    %854 = vmatprep.subr.mxu0 %v593
    %855 = vmatpush1.msra.mxu0 %v592
    %856 = vmatprep.subr.mxu0 %v590
    %857 = vmatpush1.msra.mxu0 %v589
    %858 = vmatprep.subr.mxu0 0.0
    %859 = vmatpush2.msra.mxu0 0.0
    %860 = vmatprep.subr.mxu0 0.0
    %861 = vmatpush2.msra.mxu0 0.0
    %862 = vmatprep.subr.mxu0 0.0
    %863 = vmatpush2.msra.mxu0 0.0
    %864 = vmatprep.subr.mxu0 0.0
    %865 = vmatpush2.msra.mxu0 0.0
    %866 = vmatprep.subr.mxu0 0.0
    %867 = vmatpush2.msra.mxu0 0.0
    %868 = vmatprep.subr.mxu0 0.0
    %869 = vmatpush2.msra.mxu0 0.0
    %870 = vmatprep.subr.mxu0 0.0
    %871 = vmatpush2.msra.mxu0 0.0
    %872 = vmatprep.subr.mxu0 0.0
    %873 = vmatpush2.msra.mxu0 0.0
    %874 = vmatprep.subr.mxu0 0.0
    %875 = vmatpush2.msra.mxu0 0.0
    %876 = vmatprep.subr.mxu0 0.0
    %877 = vmatpush2.msra.mxu0 0.0
    %878 = vmatprep.subr.mxu0 0.0
    %879 = vmatpush2.msra.mxu0 0.0
    %880 = vmatprep.subr.mxu0 0.0
    %881 = vmatpush2.msra.mxu0 0.0
    %882 = vmatprep.subr.mxu0 0.0
    %883 = vmatpush2.msra.mxu0 0.0
    %884 = vmatprep.subr.mxu0 0.0
    %885 = vmatpush2.msra.mxu0 0.0
    %886 = vmatprep.subr.mxu0 0.0
    %887 = vmatpush2.msra.mxu0 0.0
    %888 = vmatprep.subr.mxu0 0.0
    %889 = vmatpush2.msra.mxu0 0.0
    %890 = vmatprep.mubr.f32.mxu0 0.0
    %891 = vmatmul.mubr.f32.gmra.mxu0 %v822
    %v892 = vpop.f32.mrf.mxu0
    %v893 = vadd.f32 %v644, %v892
    %v894 = vpop.f32.mrf.mxu0
    %v895 = vadd.f32 %v648, %v894
    %896 = vdwg.mxu0
    %897 = vmatprep.subr.mxu0 0.0
    %898 = vmatpush1.msra.mxu0 %v636
    %899 = vmatprep.subr.mxu0 0.0
    %900 = vmatpush1.msra.mxu0 %v633
    %901 = vmatprep.subr.mxu0 0.0
    %902 = vmatpush1.msra.mxu0 %v630
    %903 = vmatprep.subr.mxu0 0.0
    %904 = vmatpush1.msra.mxu0 %v627
    %905 = vmatprep.subr.mxu0 0.0
    %906 = vmatpush1.msra.mxu0 %v624
    %907 = vmatprep.subr.mxu0 0.0
    %908 = vmatpush1.msra.mxu0 %v621
    %909 = vmatprep.subr.mxu0 0.0
    %910 = vmatpush1.msra.mxu0 %v618
    %911 = vmatprep.subr.mxu0 0.0
    %912 = vmatpush1.msra.mxu0 %v615
    %913 = vmatprep.subr.mxu0 0.0
    %914 = vmatpush1.msra.mxu0 %v612
    %915 = vmatprep.subr.mxu0 0.0
    %916 = vmatpush1.msra.mxu0 %v609
    %917 = vmatprep.subr.mxu0 0.0
    %918 = vmatpush1.msra.mxu0 %v606
    %919 = vmatprep.subr.mxu0 0.0
    %920 = vmatpush1.msra.mxu0 %v603
    %921 = vmatprep.subr.mxu0 0.0
    %922 = vmatpush1.msra.mxu0 %v600
    %923 = vmatprep.subr.mxu0 0.0
    %924 = vmatpush1.msra.mxu0 %v597
    %925 = vmatprep.subr.mxu0 0.0
    %926 = vmatpush1.msra.mxu0 %v594
    %927 = vmatprep.subr.mxu0 0.0
    %928 = vmatpush1.msra.mxu0 %v591
    %929 = vmatprep.subr.mxu0 0.0
    %930 = vmatpush2.msra.mxu0 0.0
    %931 = vmatprep.subr.mxu0 0.0
    %932 = vmatpush2.msra.mxu0 0.0
    %933 = vmatprep.subr.mxu0 0.0
    %934 = vmatpush2.msra.mxu0 0.0
    %935 = vmatprep.subr.mxu0 0.0
    %936 = vmatpush2.msra.mxu0 0.0
    %937 = vmatprep.subr.mxu0 0.0
    %938 = vmatpush2.msra.mxu0 0.0
    %939 = vmatprep.subr.mxu0 0.0
    %940 = vmatpush2.msra.mxu0 0.0
    %941 = vmatprep.subr.mxu0 0.0
    %942 = vmatpush2.msra.mxu0 0.0
    %943 = vmatprep.subr.mxu0 0.0
    %944 = vmatpush2.msra.mxu0 0.0
    %945 = vmatprep.subr.mxu0 0.0
    %946 = vmatpush2.msra.mxu0 0.0
    %947 = vmatprep.subr.mxu0 0.0
    %948 = vmatpush2.msra.mxu0 0.0
    %949 = vmatprep.subr.mxu0 0.0
    %950 = vmatpush2.msra.mxu0 0.0
    %951 = vmatprep.subr.mxu0 0.0
    %952 = vmatpush2.msra.mxu0 0.0
    %953 = vmatprep.subr.mxu0 0.0
    %954 = vmatpush2.msra.mxu0 0.0
    %955 = vmatprep.subr.mxu0 0.0
    %956 = vmatpush2.msra.mxu0 0.0
    %957 = vmatprep.subr.mxu0 0.0
    %958 = vmatpush2.msra.mxu0 0.0
    %959 = vmatprep.subr.mxu0 0.0
    %960 = vmatpush2.msra.mxu0 0.0
    %961 = vmatprep.mubr.f32.mxu0 0.0
    %962 = vmatmul.mubr.f32.gmra.mxu0 %v822
    %v963 = vpop.f32.mrf.mxu0
    %v964 = vadd.f32 %v652, %v963
    %v965 = vpop.f32.mrf.mxu0
    %966 = vdwg.mxu0
    %v967 = vadd.f32 %v825, %v893
    %v968 = vxor.u32 %v967, 2147483648
    %v969 = vmul.f32 %v968, 1.442695
    %v970 = vpow.pop %v969
    %v971 = vadd.f32 %v970, 1.0
    %v972 = vrcp.pop %v971
    %v973 = vmul.f32 1.0, %v972
    %v975 = vrot.slane %v825, 1
    %v977 = vadd.f32 %v975, %v895
    %v978 = vxor.u32 %v977, 2147483648
    %v979 = vmul.f32 %v978, 1.442695
    %v980 = vpow.pop %v979
    %v981 = vadd.f32 %v980, 1.0
    %v982 = vrcp.pop %v981
    %v983 = vmul.f32 1.0, %v982
    %v984 = vmul.f32 %v973, %v964
    %v985 = vrot.slane %v825, 2
    %v987 = vadd.f32 %v985, %v984
    %v988 = vtanh.pop %v987
    %v989 = vsub.f32 1.0, %v983
    %v990 = vmul.f32 %v989, %v988
    %v991 = vmul.f32 %v983, %v822
    %v992 = vadd.f32 %v990, %v991
    %993 = vst [vmem:[#allocation13 + $0x1] sm:$0x1] %v992
    %s994 = scalar_lea.vmem [#allocation4], 2
    %v995 = vld [vmem:[%s994] ss:$8 sm:$0x7]
    %996 = vmatprep.subr.mxu0 %v635
    %997 = vmatpush1.msra.mxu0 %v634
    %998 = vmatprep.subr.mxu0 %v632
    %999 = vmatpush1.msra.mxu0 %v631
    %1000 = vmatprep.subr.mxu0 %v629
    %1001 = vmatpush1.msra.mxu0 %v628
    %1002 = vmatprep.subr.mxu0 %v626
    %1003 = vmatpush1.msra.mxu0 %v625
    %1004 = vmatprep.subr.mxu0 %v623
    %1005 = vmatpush1.msra.mxu0 %v622
    %1006 = vmatprep.subr.mxu0 %v620
    %1007 = vmatpush1.msra.mxu0 %v619
    %1008 = vmatprep.subr.mxu0 %v617
    %1009 = vmatpush1.msra.mxu0 %v616
    %1010 = vmatprep.subr.mxu0 %v614
    %1011 = vmatpush1.msra.mxu0 %v613
    %1012 = vmatprep.subr.mxu0 %v611
    %1013 = vmatpush1.msra.mxu0 %v610
    %1014 = vmatprep.subr.mxu0 %v608
    %1015 = vmatpush1.msra.mxu0 %v607
    %1016 = vmatprep.subr.mxu0 %v605
    %1017 = vmatpush1.msra.mxu0 %v604
    %1018 = vmatprep.subr.mxu0 %v602
    %1019 = vmatpush1.msra.mxu0 %v601
    %1020 = vmatprep.subr.mxu0 %v599
    %1021 = vmatpush1.msra.mxu0 %v598
    %1022 = vmatprep.subr.mxu0 %v596
    %1023 = vmatpush1.msra.mxu0 %v595
    %1024 = vmatprep.subr.mxu0 %v593
    %1025 = vmatpush1.msra.mxu0 %v592
    %1026 = vmatprep.subr.mxu0 %v590
    %1027 = vmatpush1.msra.mxu0 %v589
    %1028 = vmatprep.subr.mxu0 0.0
    %1029 = vmatpush2.msra.mxu0 0.0
    %1030 = vmatprep.subr.mxu0 0.0
    %1031 = vmatpush2.msra.mxu0 0.0
    %1032 = vmatprep.subr.mxu0 0.0
    %1033 = vmatpush2.msra.mxu0 0.0
    %1034 = vmatprep.subr.mxu0 0.0
    %1035 = vmatpush2.msra.mxu0 0.0
    %1036 = vmatprep.subr.mxu0 0.0
    %1037 = vmatpush2.msra.mxu0 0.0
    %1038 = vmatprep.subr.mxu0 0.0
    %1039 = vmatpush2.msra.mxu0 0.0
    %1040 = vmatprep.subr.mxu0 0.0
    %1041 = vmatpush2.msra.mxu0 0.0
    %1042 = vmatprep.subr.mxu0 0.0
    %1043 = vmatpush2.msra.mxu0 0.0
    %1044 = vmatprep.subr.mxu0 0.0
    %1045 = vmatpush2.msra.mxu0 0.0
    %1046 = vmatprep.subr.mxu0 0.0
    %1047 = vmatpush2.msra.mxu0 0.0
    %1048 = vmatprep.subr.mxu0 0.0
    %1049 = vmatpush2.msra.mxu0 0.0
    %1050 = vmatprep.subr.mxu0 0.0
    %1051 = vmatpush2.msra.mxu0 0.0
    %1052 = vmatprep.subr.mxu0 0.0
    %1053 = vmatpush2.msra.mxu0 0.0
    %1054 = vmatprep.subr.mxu0 0.0
    %1055 = vmatpush2.msra.mxu0 0.0
    %1056 = vmatprep.subr.mxu0 0.0
    %1057 = vmatpush2.msra.mxu0 0.0
    %1058 = vmatprep.subr.mxu0 0.0
    %1059 = vmatpush2.msra.mxu0 0.0
    %1060 = vmatprep.mubr.f32.mxu0 0.0
    %1061 = vmatmul.mubr.f32.gmra.mxu0 %v992
    %v1062 = vpop.f32.mrf.mxu0
    %v1063 = vadd.f32 %v644, %v1062
    %v1064 = vpop.f32.mrf.mxu0
    %v1065 = vadd.f32 %v648, %v1064
    %1066 = vdwg.mxu0
    %1067 = vmatprep.subr.mxu0 0.0
    %1068 = vmatpush1.msra.mxu0 %v636
    %1069 = vmatprep.subr.mxu0 0.0
    %1070 = vmatpush1.msra.mxu0 %v633
    %1071 = vmatprep.subr.mxu0 0.0
    %1072 = vmatpush1.msra.mxu0 %v630
    %1073 = vmatprep.subr.mxu0 0.0
    %1074 = vmatpush1.msra.mxu0 %v627
    %1075 = vmatprep.subr.mxu0 0.0
    %1076 = vmatpush1.msra.mxu0 %v624
    %1077 = vmatprep.subr.mxu0 0.0
    %1078 = vmatpush1.msra.mxu0 %v621
    %1079 = vmatprep.subr.mxu0 0.0
    %1080 = vmatpush1.msra.mxu0 %v618
    %1081 = vmatprep.subr.mxu0 0.0
    %1082 = vmatpush1.msra.mxu0 %v615
    %1083 = vmatprep.subr.mxu0 0.0
    %1084 = vmatpush1.msra.mxu0 %v612
    %1085 = vmatprep.subr.mxu0 0.0
    %1086 = vmatpush1.msra.mxu0 %v609
    %1087 = vmatprep.subr.mxu0 0.0
    %1088 = vmatpush1.msra.mxu0 %v606
    %1089 = vmatprep.subr.mxu0 0.0
    %1090 = vmatpush1.msra.mxu0 %v603
    %1091 = vmatprep.subr.mxu0 0.0
    %1092 = vmatpush1.msra.mxu0 %v600
    %1093 = vmatprep.subr.mxu0 0.0
    %1094 = vmatpush1.msra.mxu0 %v597
    %1095 = vmatprep.subr.mxu0 0.0
    %1096 = vmatpush1.msra.mxu0 %v594
    %1097 = vmatprep.subr.mxu0 0.0
    %1098 = vmatpush1.msra.mxu0 %v591
    %1099 = vmatprep.subr.mxu0 0.0
    %1100 = vmatpush2.msra.mxu0 0.0
    %1101 = vmatprep.subr.mxu0 0.0
    %1102 = vmatpush2.msra.mxu0 0.0
    %1103 = vmatprep.subr.mxu0 0.0
    %1104 = vmatpush2.msra.mxu0 0.0
    %1105 = vmatprep.subr.mxu0 0.0
    %1106 = vmatpush2.msra.mxu0 0.0
    %1107 = vmatprep.subr.mxu0 0.0
    %1108 = vmatpush2.msra.mxu0 0.0
    %1109 = vmatprep.subr.mxu0 0.0
    %1110 = vmatpush2.msra.mxu0 0.0
    %1111 = vmatprep.subr.mxu0 0.0
    %1112 = vmatpush2.msra.mxu0 0.0
    %1113 = vmatprep.subr.mxu0 0.0
    %1114 = vmatpush2.msra.mxu0 0.0
    %1115 = vmatprep.subr.mxu0 0.0
    %1116 = vmatpush2.msra.mxu0 0.0
    %1117 = vmatprep.subr.mxu0 0.0
    %1118 = vmatpush2.msra.mxu0 0.0
    %1119 = vmatprep.subr.mxu0 0.0
    %1120 = vmatpush2.msra.mxu0 0.0
    %1121 = vmatprep.subr.mxu0 0.0
    %1122 = vmatpush2.msra.mxu0 0.0
    %1123 = vmatprep.subr.mxu0 0.0
    %1124 = vmatpush2.msra.mxu0 0.0
    %1125 = vmatprep.subr.mxu0 0.0
    %1126 = vmatpush2.msra.mxu0 0.0
    %1127 = vmatprep.subr.mxu0 0.0
    %1128 = vmatpush2.msra.mxu0 0.0
    %1129 = vmatprep.subr.mxu0 0.0
    %1130 = vmatpush2.msra.mxu0 0.0
    %1131 = vmatprep.mubr.f32.mxu0 0.0
    %1132 = vmatmul.mubr.f32.gmra.mxu0 %v992
    %v1133 = vpop.f32.mrf.mxu0
    %v1134 = vadd.f32 %v652, %v1133
    %v1135 = vpop.f32.mrf.mxu0
    %1136 = vdwg.mxu0
    %v1137 = vadd.f32 %v995, %v1063
    %v1138 = vxor.u32 %v1137, 2147483648
    %v1139 = vmul.f32 %v1138, 1.442695
    %v1140 = vpow.pop %v1139
    %v1141 = vadd.f32 %v1140, 1.0
    %v1142 = vrcp.pop %v1141
    %v1143 = vmul.f32 1.0, %v1142
    %v1145 = vrot.slane %v995, 1
    %v1147 = vadd.f32 %v1145, %v1065
    %v1148 = vxor.u32 %v1147, 2147483648
    %v1149 = vmul.f32 %v1148, 1.442695
    %v1150 = vpow.pop %v1149
    %v1151 = vadd.f32 %v1150, 1.0
    %v1152 = vrcp.pop %v1151
    %v1153 = vmul.f32 1.0, %v1152
    %v1154 = vmul.f32 %v1143, %v1134
    %v1155 = vrot.slane %v995, 2
    %v1157 = vadd.f32 %v1155, %v1154
    %v1158 = vtanh.pop %v1157
    %v1159 = vsub.f32 1.0, %v1153
    %v1160 = vmul.f32 %v1159, %v1158
    %v1161 = vmul.f32 %v1153, %v992
    %v1162 = vadd.f32 %v1160, %v1161
    %1163 = vst [vmem:[#allocation13 + $0x2] sm:$0x1] %v1162
    %s1164 = scalar_lea.vmem [#allocation4], 3
    %v1165 = vld [vmem:[%s1164] ss:$8 sm:$0x7]
    %1166 = vmatprep.subr.mxu0 %v635
    %1167 = vmatpush1.msra.mxu0 %v634
    %1168 = vmatprep.subr.mxu0 %v632
    %1169 = vmatpush1.msra.mxu0 %v631
    %1170 = vmatprep.subr.mxu0 %v629
    %1171 = vmatpush1.msra.mxu0 %v628
    %1172 = vmatprep.subr.mxu0 %v626
    %1173 = vmatpush1.msra.mxu0 %v625
    %1174 = vmatprep.subr.mxu0 %v623
    %1175 = vmatpush1.msra.mxu0 %v622
    %1176 = vmatprep.subr.mxu0 %v620
    %1177 = vmatpush1.msra.mxu0 %v619
    %1178 = vmatprep.subr.mxu0 %v617
    %1179 = vmatpush1.msra.mxu0 %v616
    %1180 = vmatprep.subr.mxu0 %v614
    %1181 = vmatpush1.msra.mxu0 %v613
    %1182 = vmatprep.subr.mxu0 %v611
    %1183 = vmatpush1.msra.mxu0 %v610
    %1184 = vmatprep.subr.mxu0 %v608
    %1185 = vmatpush1.msra.mxu0 %v607
    %1186 = vmatprep.subr.mxu0 %v605
    %1187 = vmatpush1.msra.mxu0 %v604
    %1188 = vmatprep.subr.mxu0 %v602
    %1189 = vmatpush1.msra.mxu0 %v601
    %1190 = vmatprep.subr.mxu0 %v599
    %1191 = vmatpush1.msra.mxu0 %v598
    %1192 = vmatprep.subr.mxu0 %v596
    %1193 = vmatpush1.msra.mxu0 %v595
    %1194 = vmatprep.subr.mxu0 %v593
    %1195 = vmatpush1.msra.mxu0 %v592
    %1196 = vmatprep.subr.mxu0 %v590
    %1197 = vmatpush1.msra.mxu0 %v589
    %1198 = vmatprep.subr.mxu0 0.0
    %1199 = vmatpush2.msra.mxu0 0.0
    %1200 = vmatprep.subr.mxu0 0.0
    %1201 = vmatpush2.msra.mxu0 0.0
    %1202 = vmatprep.subr.mxu0 0.0
    %1203 = vmatpush2.msra.mxu0 0.0
    %1204 = vmatprep.subr.mxu0 0.0
    %1205 = vmatpush2.msra.mxu0 0.0
    %1206 = vmatprep.subr.mxu0 0.0
    %1207 = vmatpush2.msra.mxu0 0.0
    %1208 = vmatprep.subr.mxu0 0.0
    %1209 = vmatpush2.msra.mxu0 0.0
    %1210 = vmatprep.subr.mxu0 0.0
    %1211 = vmatpush2.msra.mxu0 0.0
    %1212 = vmatprep.subr.mxu0 0.0
    %1213 = vmatpush2.msra.mxu0 0.0
    %1214 = vmatprep.subr.mxu0 0.0
    %1215 = vmatpush2.msra.mxu0 0.0
    %1216 = vmatprep.subr.mxu0 0.0
    %1217 = vmatpush2.msra.mxu0 0.0
    %1218 = vmatprep.subr.mxu0 0.0
    %1219 = vmatpush2.msra.mxu0 0.0
    %1220 = vmatprep.subr.mxu0 0.0
    %1221 = vmatpush2.msra.mxu0 0.0
    %1222 = vmatprep.subr.mxu0 0.0
    %1223 = vmatpush2.msra.mxu0 0.0
    %1224 = vmatprep.subr.mxu0 0.0
    %1225 = vmatpush2.msra.mxu0 0.0
    %1226 = vmatprep.subr.mxu0 0.0
    %1227 = vmatpush2.msra.mxu0 0.0
    %1228 = vmatprep.subr.mxu0 0.0
    %1229 = vmatpush2.msra.mxu0 0.0
    %1230 = vmatprep.mubr.f32.mxu0 0.0
    %1231 = vmatmul.mubr.f32.gmra.mxu0 %v1162
    %v1232 = vpop.f32.mrf.mxu0
    %v1233 = vadd.f32 %v644, %v1232
    %v1234 = vpop.f32.mrf.mxu0
    %v1235 = vadd.f32 %v648, %v1234
    %1236 = vdwg.mxu0
    %1237 = vmatprep.subr.mxu0 0.0
    %1238 = vmatpush1.msra.mxu0 %v636
    %1239 = vmatprep.subr.mxu0 0.0
    %1240 = vmatpush1.msra.mxu0 %v633
    %1241 = vmatprep.subr.mxu0 0.0
    %1242 = vmatpush1.msra.mxu0 %v630
    %1243 = vmatprep.subr.mxu0 0.0
    %1244 = vmatpush1.msra.mxu0 %v627
    %1245 = vmatprep.subr.mxu0 0.0
    %1246 = vmatpush1.msra.mxu0 %v624
    %1247 = vmatprep.subr.mxu0 0.0
    %1248 = vmatpush1.msra.mxu0 %v621
    %1249 = vmatprep.subr.mxu0 0.0
    %1250 = vmatpush1.msra.mxu0 %v618
    %1251 = vmatprep.subr.mxu0 0.0
    %1252 = vmatpush1.msra.mxu0 %v615
    %1253 = vmatprep.subr.mxu0 0.0
    %1254 = vmatpush1.msra.mxu0 %v612
    %1255 = vmatprep.subr.mxu0 0.0
    %1256 = vmatpush1.msra.mxu0 %v609
    %1257 = vmatprep.subr.mxu0 0.0
    %1258 = vmatpush1.msra.mxu0 %v606
    %1259 = vmatprep.subr.mxu0 0.0
    %1260 = vmatpush1.msra.mxu0 %v603
    %1261 = vmatprep.subr.mxu0 0.0
    %1262 = vmatpush1.msra.mxu0 %v600
    %1263 = vmatprep.subr.mxu0 0.0
    %1264 = vmatpush1.msra.mxu0 %v597
    %1265 = vmatprep.subr.mxu0 0.0
    %1266 = vmatpush1.msra.mxu0 %v594
    %1267 = vmatprep.subr.mxu0 0.0
    %1268 = vmatpush1.msra.mxu0 %v591
    %1269 = vmatprep.subr.mxu0 0.0
    %1270 = vmatpush2.msra.mxu0 0.0
    %1271 = vmatprep.subr.mxu0 0.0
    %1272 = vmatpush2.msra.mxu0 0.0
    %1273 = vmatprep.subr.mxu0 0.0
    %1274 = vmatpush2.msra.mxu0 0.0
    %1275 = vmatprep.subr.mxu0 0.0
    %1276 = vmatpush2.msra.mxu0 0.0
    %1277 = vmatprep.subr.mxu0 0.0
    %1278 = vmatpush2.msra.mxu0 0.0
    %1279 = vmatprep.subr.mxu0 0.0
    %1280 = vmatpush2.msra.mxu0 0.0
    %1281 = vmatprep.subr.mxu0 0.0
    %1282 = vmatpush2.msra.mxu0 0.0
    %1283 = vmatprep.subr.mxu0 0.0
    %1284 = vmatpush2.msra.mxu0 0.0
    %1285 = vmatprep.subr.mxu0 0.0
    %1286 = vmatpush2.msra.mxu0 0.0
    %1287 = vmatprep.subr.mxu0 0.0
    %1288 = vmatpush2.msra.mxu0 0.0
    %1289 = vmatprep.subr.mxu0 0.0
    %1290 = vmatpush2.msra.mxu0 0.0
    %1291 = vmatprep.subr.mxu0 0.0
    %1292 = vmatpush2.msra.mxu0 0.0
    %1293 = vmatprep.subr.mxu0 0.0
    %1294 = vmatpush2.msra.mxu0 0.0
    %1295 = vmatprep.subr.mxu0 0.0
    %1296 = vmatpush2.msra.mxu0 0.0
    %1297 = vmatprep.subr.mxu0 0.0
    %1298 = vmatpush2.msra.mxu0 0.0
    %1299 = vmatprep.subr.mxu0 0.0
    %1300 = vmatpush2.msra.mxu0 0.0
    %1301 = vmatprep.mubr.f32.mxu0 0.0
    %1302 = vmatmul.mubr.f32.gmra.mxu0 %v1162
    %v1303 = vpop.f32.mrf.mxu0
    %v1304 = vadd.f32 %v652, %v1303
    %v1305 = vpop.f32.mrf.mxu0
    %1306 = vdwg.mxu0
    %v1307 = vadd.f32 %v1165, %v1233
    %v1308 = vxor.u32 %v1307, 2147483648
    %v1309 = vmul.f32 %v1308, 1.442695
    %v1310 = vpow.pop %v1309
    %v1311 = vadd.f32 %v1310, 1.0
    %v1312 = vrcp.pop %v1311
    %v1313 = vmul.f32 1.0, %v1312
    %v1315 = vrot.slane %v1165, 1
    %v1317 = vadd.f32 %v1315, %v1235
    %v1318 = vxor.u32 %v1317, 2147483648
    %v1319 = vmul.f32 %v1318, 1.442695
    %v1320 = vpow.pop %v1319
    %v1321 = vadd.f32 %v1320, 1.0
    %v1322 = vrcp.pop %v1321
    %v1323 = vmul.f32 1.0, %v1322
    %v1324 = vmul.f32 %v1313, %v1304
    %v1325 = vrot.slane %v1165, 2
    %v1327 = vadd.f32 %v1325, %v1324
    %v1328 = vtanh.pop %v1327
    %v1329 = vsub.f32 1.0, %v1323
    %v1330 = vmul.f32 %v1329, %v1328
    %v1331 = vmul.f32 %v1323, %v1162
    %v1332 = vadd.f32 %v1330, %v1331
    %1333 = vst [vmem:[#allocation13 + $0x3] sm:$0x1] %v1332
    %s1334 = scalar_lea.vmem [#allocation4], 4
    %v1335 = vld [vmem:[%s1334] ss:$8 sm:$0x7]
    %1336 = vmatprep.subr.mxu0 %v635
    %1337 = vmatpush1.msra.mxu0 %v634
    %1338 = vmatprep.subr.mxu0 %v632
    %1339 = vmatpush1.msra.mxu0 %v631
    %1340 = vmatprep.subr.mxu0 %v629
    %1341 = vmatpush1.msra.mxu0 %v628
    %1342 = vmatprep.subr.mxu0 %v626
    %1343 = vmatpush1.msra.mxu0 %v625
    %1344 = vmatprep.subr.mxu0 %v623
    %1345 = vmatpush1.msra.mxu0 %v622
    %1346 = vmatprep.subr.mxu0 %v620
    %1347 = vmatpush1.msra.mxu0 %v619
    %1348 = vmatprep.subr.mxu0 %v617
    %1349 = vmatpush1.msra.mxu0 %v616
    %1350 = vmatprep.subr.mxu0 %v614
    %1351 = vmatpush1.msra.mxu0 %v613
    %1352 = vmatprep.subr.mxu0 %v611
    %1353 = vmatpush1.msra.mxu0 %v610
    %1354 = vmatprep.subr.mxu0 %v608
    %1355 = vmatpush1.msra.mxu0 %v607
    %1356 = vmatprep.subr.mxu0 %v605
    %1357 = vmatpush1.msra.mxu0 %v604
    %1358 = vmatprep.subr.mxu0 %v602
    %1359 = vmatpush1.msra.mxu0 %v601
    %1360 = vmatprep.subr.mxu0 %v599
    %1361 = vmatpush1.msra.mxu0 %v598
    %1362 = vmatprep.subr.mxu0 %v596
    %1363 = vmatpush1.msra.mxu0 %v595
    %1364 = vmatprep.subr.mxu0 %v593
    %1365 = vmatpush1.msra.mxu0 %v592
    %1366 = vmatprep.subr.mxu0 %v590
    %1367 = vmatpush1.msra.mxu0 %v589
    %1368 = vmatprep.subr.mxu0 0.0
    %1369 = vmatpush2.msra.mxu0 0.0
    %1370 = vmatprep.subr.mxu0 0.0
    %1371 = vmatpush2.msra.mxu0 0.0
    %1372 = vmatprep.subr.mxu0 0.0
    %1373 = vmatpush2.msra.mxu0 0.0
    %1374 = vmatprep.subr.mxu0 0.0
    %1375 = vmatpush2.msra.mxu0 0.0
    %1376 = vmatprep.subr.mxu0 0.0
    %1377 = vmatpush2.msra.mxu0 0.0
    %1378 = vmatprep.subr.mxu0 0.0
    %1379 = vmatpush2.msra.mxu0 0.0
    %1380 = vmatprep.subr.mxu0 0.0
    %1381 = vmatpush2.msra.mxu0 0.0
    %1382 = vmatprep.subr.mxu0 0.0
    %1383 = vmatpush2.msra.mxu0 0.0
    %1384 = vmatprep.subr.mxu0 0.0
    %1385 = vmatpush2.msra.mxu0 0.0
    %1386 = vmatprep.subr.mxu0 0.0
    %1387 = vmatpush2.msra.mxu0 0.0
    %1388 = vmatprep.subr.mxu0 0.0
    %1389 = vmatpush2.msra.mxu0 0.0
    %1390 = vmatprep.subr.mxu0 0.0
    %1391 = vmatpush2.msra.mxu0 0.0
    %1392 = vmatprep.subr.mxu0 0.0
    %1393 = vmatpush2.msra.mxu0 0.0
    %1394 = vmatprep.subr.mxu0 0.0
    %1395 = vmatpush2.msra.mxu0 0.0
    %1396 = vmatprep.subr.mxu0 0.0
    %1397 = vmatpush2.msra.mxu0 0.0
    %1398 = vmatprep.subr.mxu0 0.0
    %1399 = vmatpush2.msra.mxu0 0.0
    %1400 = vmatprep.mubr.f32.mxu0 0.0
    %1401 = vmatmul.mubr.f32.gmra.mxu0 %v1332
    %v1402 = vpop.f32.mrf.mxu0
    %v1403 = vadd.f32 %v644, %v1402
    %v1404 = vpop.f32.mrf.mxu0
    %v1405 = vadd.f32 %v648, %v1404
    %1406 = vdwg.mxu0
    %1407 = vmatprep.subr.mxu0 0.0
    %1408 = vmatpush1.msra.mxu0 %v636
    %1409 = vmatprep.subr.mxu0 0.0
    %1410 = vmatpush1.msra.mxu0 %v633
    %1411 = vmatprep.subr.mxu0 0.0
    %1412 = vmatpush1.msra.mxu0 %v630
    %1413 = vmatprep.subr.mxu0 0.0
    %1414 = vmatpush1.msra.mxu0 %v627
    %1415 = vmatprep.subr.mxu0 0.0
    %1416 = vmatpush1.msra.mxu0 %v624
    %1417 = vmatprep.subr.mxu0 0.0
    %1418 = vmatpush1.msra.mxu0 %v621
    %1419 = vmatprep.subr.mxu0 0.0
    %1420 = vmatpush1.msra.mxu0 %v618
    %1421 = vmatprep.subr.mxu0 0.0
    %1422 = vmatpush1.msra.mxu0 %v615
    %1423 = vmatprep.subr.mxu0 0.0
    %1424 = vmatpush1.msra.mxu0 %v612
    %1425 = vmatprep.subr.mxu0 0.0
    %1426 = vmatpush1.msra.mxu0 %v609
    %1427 = vmatprep.subr.mxu0 0.0
    %1428 = vmatpush1.msra.mxu0 %v606
    %1429 = vmatprep.subr.mxu0 0.0
    %1430 = vmatpush1.msra.mxu0 %v603
    %1431 = vmatprep.subr.mxu0 0.0
    %1432 = vmatpush1.msra.mxu0 %v600
    %1433 = vmatprep.subr.mxu0 0.0
    %1434 = vmatpush1.msra.mxu0 %v597
    %1435 = vmatprep.subr.mxu0 0.0
    %1436 = vmatpush1.msra.mxu0 %v594
    %1437 = vmatprep.subr.mxu0 0.0
    %1438 = vmatpush1.msra.mxu0 %v591
    %1439 = vmatprep.subr.mxu0 0.0
    %1440 = vmatpush2.msra.mxu0 0.0
    %1441 = vmatprep.subr.mxu0 0.0
    %1442 = vmatpush2.msra.mxu0 0.0
    %1443 = vmatprep.subr.mxu0 0.0
    %1444 = vmatpush2.msra.mxu0 0.0
    %1445 = vmatprep.subr.mxu0 0.0
    %1446 = vmatpush2.msra.mxu0 0.0
    %1447 = vmatprep.subr.mxu0 0.0
    %1448 = vmatpush2.msra.mxu0 0.0
    %1449 = vmatprep.subr.mxu0 0.0
    %1450 = vmatpush2.msra.mxu0 0.0
    %1451 = vmatprep.subr.mxu0 0.0
    %1452 = vmatpush2.msra.mxu0 0.0
    %1453 = vmatprep.subr.mxu0 0.0
    %1454 = vmatpush2.msra.mxu0 0.0
    %1455 = vmatprep.subr.mxu0 0.0
    %1456 = vmatpush2.msra.mxu0 0.0
    %1457 = vmatprep.subr.mxu0 0.0
    %1458 = vmatpush2.msra.mxu0 0.0
    %1459 = vmatprep.subr.mxu0 0.0
    %1460 = vmatpush2.msra.mxu0 0.0
    %1461 = vmatprep.subr.mxu0 0.0
    %1462 = vmatpush2.msra.mxu0 0.0
    %1463 = vmatprep.subr.mxu0 0.0
    %1464 = vmatpush2.msra.mxu0 0.0
    %1465 = vmatprep.subr.mxu0 0.0
    %1466 = vmatpush2.msra.mxu0 0.0
    %1467 = vmatprep.subr.mxu0 0.0
    %1468 = vmatpush2.msra.mxu0 0.0
    %1469 = vmatprep.subr.mxu0 0.0
    %1470 = vmatpush2.msra.mxu0 0.0
    %1471 = vmatprep.mubr.f32.mxu0 0.0
    %1472 = vmatmul.mubr.f32.gmra.mxu0 %v1332
    %v1473 = vpop.f32.mrf.mxu0
    %v1474 = vadd.f32 %v652, %v1473
    %v1475 = vpop.f32.mrf.mxu0
    %1476 = vdwg.mxu0
    %v1477 = vadd.f32 %v1335, %v1403
    %v1478 = vxor.u32 %v1477, 2147483648
    %v1479 = vmul.f32 %v1478, 1.442695
    %v1480 = vpow.pop %v1479
    %v1481 = vadd.f32 %v1480, 1.0
    %v1482 = vrcp.pop %v1481
    %v1483 = vmul.f32 1.0, %v1482
    %v1485 = vrot.slane %v1335, 1
    %v1487 = vadd.f32 %v1485, %v1405
    %v1488 = vxor.u32 %v1487, 2147483648
    %v1489 = vmul.f32 %v1488, 1.442695
    %v1490 = vpow.pop %v1489
    %v1491 = vadd.f32 %v1490, 1.0
    %v1492 = vrcp.pop %v1491
    %v1493 = vmul.f32 1.0, %v1492
    %v1494 = vmul.f32 %v1483, %v1474
    %v1495 = vrot.slane %v1335, 2
    %v1497 = vadd.f32 %v1495, %v1494
    %v1498 = vtanh.pop %v1497
    %v1499 = vsub.f32 1.0, %v1493
    %v1500 = vmul.f32 %v1499, %v1498
    %v1501 = vmul.f32 %v1493, %v1332
    %v1502 = vadd.f32 %v1500, %v1501
    %1503 = vst [vmem:[#allocation13 + $0x4] sm:$0x1] %v1502
    %s1504 = scalar_lea.vmem [#allocation4], 5
    %v1505 = vld [vmem:[%s1504] ss:$8 sm:$0x7]
    %1506 = vmatprep.subr.mxu0 %v635
    %1507 = vmatpush1.msra.mxu0 %v634
    %1508 = vmatprep.subr.mxu0 %v632
    %1509 = vmatpush1.msra.mxu0 %v631
    %1510 = vmatprep.subr.mxu0 %v629
    %1511 = vmatpush1.msra.mxu0 %v628
    %1512 = vmatprep.subr.mxu0 %v626
    %1513 = vmatpush1.msra.mxu0 %v625
    %1514 = vmatprep.subr.mxu0 %v623
    %1515 = vmatpush1.msra.mxu0 %v622
    %1516 = vmatprep.subr.mxu0 %v620
    %1517 = vmatpush1.msra.mxu0 %v619
    %1518 = vmatprep.subr.mxu0 %v617
    %1519 = vmatpush1.msra.mxu0 %v616
    %1520 = vmatprep.subr.mxu0 %v614
    %1521 = vmatpush1.msra.mxu0 %v613
    %1522 = vmatprep.subr.mxu0 %v611
    %1523 = vmatpush1.msra.mxu0 %v610
    %1524 = vmatprep.subr.mxu0 %v608
    %1525 = vmatpush1.msra.mxu0 %v607
    %1526 = vmatprep.subr.mxu0 %v605
    %1527 = vmatpush1.msra.mxu0 %v604
    %1528 = vmatprep.subr.mxu0 %v602
    %1529 = vmatpush1.msra.mxu0 %v601
    %1530 = vmatprep.subr.mxu0 %v599
    %1531 = vmatpush1.msra.mxu0 %v598
    %1532 = vmatprep.subr.mxu0 %v596
    %1533 = vmatpush1.msra.mxu0 %v595
    %1534 = vmatprep.subr.mxu0 %v593
    %1535 = vmatpush1.msra.mxu0 %v592
    %1536 = vmatprep.subr.mxu0 %v590
    %1537 = vmatpush1.msra.mxu0 %v589
    %1538 = vmatprep.subr.mxu0 0.0
    %1539 = vmatpush2.msra.mxu0 0.0
    %1540 = vmatprep.subr.mxu0 0.0
    %1541 = vmatpush2.msra.mxu0 0.0
    %1542 = vmatprep.subr.mxu0 0.0
    %1543 = vmatpush2.msra.mxu0 0.0
    %1544 = vmatprep.subr.mxu0 0.0
    %1545 = vmatpush2.msra.mxu0 0.0
    %1546 = vmatprep.subr.mxu0 0.0
    %1547 = vmatpush2.msra.mxu0 0.0
    %1548 = vmatprep.subr.mxu0 0.0
    %1549 = vmatpush2.msra.mxu0 0.0
    %1550 = vmatprep.subr.mxu0 0.0
    %1551 = vmatpush2.msra.mxu0 0.0
    %1552 = vmatprep.subr.mxu0 0.0
    %1553 = vmatpush2.msra.mxu0 0.0
    %1554 = vmatprep.subr.mxu0 0.0
    %1555 = vmatpush2.msra.mxu0 0.0
    %1556 = vmatprep.subr.mxu0 0.0
    %1557 = vmatpush2.msra.mxu0 0.0
    %1558 = vmatprep.subr.mxu0 0.0
    %1559 = vmatpush2.msra.mxu0 0.0
    %1560 = vmatprep.subr.mxu0 0.0
    %1561 = vmatpush2.msra.mxu0 0.0
    %1562 = vmatprep.subr.mxu0 0.0
    %1563 = vmatpush2.msra.mxu0 0.0
    %1564 = vmatprep.subr.mxu0 0.0
    %1565 = vmatpush2.msra.mxu0 0.0
    %1566 = vmatprep.subr.mxu0 0.0
    %1567 = vmatpush2.msra.mxu0 0.0
    %1568 = vmatprep.subr.mxu0 0.0
    %1569 = vmatpush2.msra.mxu0 0.0
    %1570 = vmatprep.mubr.f32.mxu0 0.0
    %1571 = vmatmul.mubr.f32.gmra.mxu0 %v1502
    %v1572 = vpop.f32.mrf.mxu0
    %v1573 = vadd.f32 %v644, %v1572
    %v1574 = vpop.f32.mrf.mxu0
    %v1575 = vadd.f32 %v648, %v1574
    %1576 = vdwg.mxu0
    %1577 = vmatprep.subr.mxu0 0.0
    %1578 = vmatpush1.msra.mxu0 %v636
    %1579 = vmatprep.subr.mxu0 0.0
    %1580 = vmatpush1.msra.mxu0 %v633
    %1581 = vmatprep.subr.mxu0 0.0
    %1582 = vmatpush1.msra.mxu0 %v630
    %1583 = vmatprep.subr.mxu0 0.0
    %1584 = vmatpush1.msra.mxu0 %v627
    %1585 = vmatprep.subr.mxu0 0.0
    %1586 = vmatpush1.msra.mxu0 %v624
    %1587 = vmatprep.subr.mxu0 0.0
    %1588 = vmatpush1.msra.mxu0 %v621
    %1589 = vmatprep.subr.mxu0 0.0
    %1590 = vmatpush1.msra.mxu0 %v618
    %1591 = vmatprep.subr.mxu0 0.0
    %1592 = vmatpush1.msra.mxu0 %v615
    %1593 = vmatprep.subr.mxu0 0.0
    %1594 = vmatpush1.msra.mxu0 %v612
    %1595 = vmatprep.subr.mxu0 0.0
    %1596 = vmatpush1.msra.mxu0 %v609
    %1597 = vmatprep.subr.mxu0 0.0
    %1598 = vmatpush1.msra.mxu0 %v606
    %1599 = vmatprep.subr.mxu0 0.0
    %1600 = vmatpush1.msra.mxu0 %v603
    %1601 = vmatprep.subr.mxu0 0.0
    %1602 = vmatpush1.msra.mxu0 %v600
    %1603 = vmatprep.subr.mxu0 0.0
    %1604 = vmatpush1.msra.mxu0 %v597
    %1605 = vmatprep.subr.mxu0 0.0
    %1606 = vmatpush1.msra.mxu0 %v594
    %1607 = vmatprep.subr.mxu0 0.0
    %1608 = vmatpush1.msra.mxu0 %v591
    %1609 = vmatprep.subr.mxu0 0.0
    %1610 = vmatpush2.msra.mxu0 0.0
    %1611 = vmatprep.subr.mxu0 0.0
    %1612 = vmatpush2.msra.mxu0 0.0
    %1613 = vmatprep.subr.mxu0 0.0
    %1614 = vmatpush2.msra.mxu0 0.0
    %1615 = vmatprep.subr.mxu0 0.0
    %1616 = vmatpush2.msra.mxu0 0.0
    %1617 = vmatprep.subr.mxu0 0.0
    %1618 = vmatpush2.msra.mxu0 0.0
    %1619 = vmatprep.subr.mxu0 0.0
    %1620 = vmatpush2.msra.mxu0 0.0
    %1621 = vmatprep.subr.mxu0 0.0
    %1622 = vmatpush2.msra.mxu0 0.0
    %1623 = vmatprep.subr.mxu0 0.0
    %1624 = vmatpush2.msra.mxu0 0.0
    %1625 = vmatprep.subr.mxu0 0.0
    %1626 = vmatpush2.msra.mxu0 0.0
    %1627 = vmatprep.subr.mxu0 0.0
    %1628 = vmatpush2.msra.mxu0 0.0
    %1629 = vmatprep.subr.mxu0 0.0
    %1630 = vmatpush2.msra.mxu0 0.0
    %1631 = vmatprep.subr.mxu0 0.0
    %1632 = vmatpush2.msra.mxu0 0.0
    %1633 = vmatprep.subr.mxu0 0.0
    %1634 = vmatpush2.msra.mxu0 0.0
    %1635 = vmatprep.subr.mxu0 0.0
    %1636 = vmatpush2.msra.mxu0 0.0
    %1637 = vmatprep.subr.mxu0 0.0
    %1638 = vmatpush2.msra.mxu0 0.0
    %1639 = vmatprep.subr.mxu0 0.0
    %1640 = vmatpush2.msra.mxu0 0.0
    %1641 = vmatprep.mubr.f32.mxu0 0.0
    %1642 = vmatmul.mubr.f32.gmra.mxu0 %v1502
    %v1643 = vpop.f32.mrf.mxu0
    %v1644 = vadd.f32 %v652, %v1643
    %v1645 = vpop.f32.mrf.mxu0
    %1646 = vdwg.mxu0
    %v1647 = vadd.f32 %v1505, %v1573
    %v1648 = vxor.u32 %v1647, 2147483648
    %v1649 = vmul.f32 %v1648, 1.442695
    %v1650 = vpow.pop %v1649
    %v1651 = vadd.f32 %v1650, 1.0
    %v1652 = vrcp.pop %v1651
    %v1653 = vmul.f32 1.0, %v1652
    %v1655 = vrot.slane %v1505, 1
    %v1657 = vadd.f32 %v1655, %v1575
    %v1658 = vxor.u32 %v1657, 2147483648
    %v1659 = vmul.f32 %v1658, 1.442695
    %v1660 = vpow.pop %v1659
    %v1661 = vadd.f32 %v1660, 1.0
    %v1662 = vrcp.pop %v1661
    %v1663 = vmul.f32 1.0, %v1662
    %v1664 = vmul.f32 %v1653, %v1644
    %v1665 = vrot.slane %v1505, 2
    %v1667 = vadd.f32 %v1665, %v1664
    %v1668 = vtanh.pop %v1667
    %v1669 = vsub.f32 1.0, %v1663
    %v1670 = vmul.f32 %v1669, %v1668
    %v1671 = vmul.f32 %v1663, %v1502
    %v1672 = vadd.f32 %v1670, %v1671
    %1673 = vst [vmem:[#allocation13 + $0x5] sm:$0x1] %v1672
    %s1674 = scalar_lea.vmem [#allocation4], 6
    %v1675 = vld [vmem:[%s1674] ss:$8 sm:$0x7]
    %1676 = vmatprep.subr.mxu0 %v635
    %1677 = vmatpush1.msra.mxu0 %v634
    %1678 = vmatprep.subr.mxu0 %v632
    %1679 = vmatpush1.msra.mxu0 %v631
    %1680 = vmatprep.subr.mxu0 %v629
    %1681 = vmatpush1.msra.mxu0 %v628
    %1682 = vmatprep.subr.mxu0 %v626
    %1683 = vmatpush1.msra.mxu0 %v625
    %1684 = vmatprep.subr.mxu0 %v623
    %1685 = vmatpush1.msra.mxu0 %v622
    %1686 = vmatprep.subr.mxu0 %v620
    %1687 = vmatpush1.msra.mxu0 %v619
    %1688 = vmatprep.subr.mxu0 %v617
    %1689 = vmatpush1.msra.mxu0 %v616
    %1690 = vmatprep.subr.mxu0 %v614
    %1691 = vmatpush1.msra.mxu0 %v613
    %1692 = vmatprep.subr.mxu0 %v611
    %1693 = vmatpush1.msra.mxu0 %v610
    %1694 = vmatprep.subr.mxu0 %v608
    %1695 = vmatpush1.msra.mxu0 %v607
    %1696 = vmatprep.subr.mxu0 %v605
    %1697 = vmatpush1.msra.mxu0 %v604
    %1698 = vmatprep.subr.mxu0 %v602
    %1699 = vmatpush1.msra.mxu0 %v601
    %1700 = vmatprep.subr.mxu0 %v599
    %1701 = vmatpush1.msra.mxu0 %v598
    %1702 = vmatprep.subr.mxu0 %v596
    %1703 = vmatpush1.msra.mxu0 %v595
    %1704 = vmatprep.subr.mxu0 %v593
    %1705 = vmatpush1.msra.mxu0 %v592
    %1706 = vmatprep.subr.mxu0 %v590
    %1707 = vmatpush1.msra.mxu0 %v589
    %1708 = vmatprep.subr.mxu0 0.0
    %1709 = vmatpush2.msra.mxu0 0.0
    %1710 = vmatprep.subr.mxu0 0.0
    %1711 = vmatpush2.msra.mxu0 0.0
    %1712 = vmatprep.subr.mxu0 0.0
    %1713 = vmatpush2.msra.mxu0 0.0
    %1714 = vmatprep.subr.mxu0 0.0
    %1715 = vmatpush2.msra.mxu0 0.0
    %1716 = vmatprep.subr.mxu0 0.0
    %1717 = vmatpush2.msra.mxu0 0.0
    %1718 = vmatprep.subr.mxu0 0.0
    %1719 = vmatpush2.msra.mxu0 0.0
    %1720 = vmatprep.subr.mxu0 0.0
    %1721 = vmatpush2.msra.mxu0 0.0
    %1722 = vmatprep.subr.mxu0 0.0
    %1723 = vmatpush2.msra.mxu0 0.0
    %1724 = vmatprep.subr.mxu0 0.0
    %1725 = vmatpush2.msra.mxu0 0.0
    %1726 = vmatprep.subr.mxu0 0.0
    %1727 = vmatpush2.msra.mxu0 0.0
    %1728 = vmatprep.subr.mxu0 0.0
    %1729 = vmatpush2.msra.mxu0 0.0
    %1730 = vmatprep.subr.mxu0 0.0
    %1731 = vmatpush2.msra.mxu0 0.0
    %1732 = vmatprep.subr.mxu0 0.0
    %1733 = vmatpush2.msra.mxu0 0.0
    %1734 = vmatprep.subr.mxu0 0.0
    %1735 = vmatpush2.msra.mxu0 0.0
    %1736 = vmatprep.subr.mxu0 0.0
    %1737 = vmatpush2.msra.mxu0 0.0
    %1738 = vmatprep.subr.mxu0 0.0
    %1739 = vmatpush2.msra.mxu0 0.0
    %1740 = vmatprep.mubr.f32.mxu0 0.0
    %1741 = vmatmul.mubr.f32.gmra.mxu0 %v1672
    %v1742 = vpop.f32.mrf.mxu0
    %v1743 = vadd.f32 %v644, %v1742
    %v1744 = vpop.f32.mrf.mxu0
    %v1745 = vadd.f32 %v648, %v1744
    %1746 = vdwg.mxu0
    %1747 = vmatprep.subr.mxu0 0.0
    %1748 = vmatpush1.msra.mxu0 %v636
    %1749 = vmatprep.subr.mxu0 0.0
    %1750 = vmatpush1.msra.mxu0 %v633
    %1751 = vmatprep.subr.mxu0 0.0
    %1752 = vmatpush1.msra.mxu0 %v630
    %1753 = vmatprep.subr.mxu0 0.0
    %1754 = vmatpush1.msra.mxu0 %v627
    %1755 = vmatprep.subr.mxu0 0.0
    %1756 = vmatpush1.msra.mxu0 %v624
    %1757 = vmatprep.subr.mxu0 0.0
    %1758 = vmatpush1.msra.mxu0 %v621
    %1759 = vmatprep.subr.mxu0 0.0
    %1760 = vmatpush1.msra.mxu0 %v618
    %1761 = vmatprep.subr.mxu0 0.0
    %1762 = vmatpush1.msra.mxu0 %v615
    %1763 = vmatprep.subr.mxu0 0.0
    %1764 = vmatpush1.msra.mxu0 %v612
    %1765 = vmatprep.subr.mxu0 0.0
    %1766 = vmatpush1.msra.mxu0 %v609
    %1767 = vmatprep.subr.mxu0 0.0
    %1768 = vmatpush1.msra.mxu0 %v606
    %1769 = vmatprep.subr.mxu0 0.0
    %1770 = vmatpush1.msra.mxu0 %v603
    %1771 = vmatprep.subr.mxu0 0.0
    %1772 = vmatpush1.msra.mxu0 %v600
    %1773 = vmatprep.subr.mxu0 0.0
    %1774 = vmatpush1.msra.mxu0 %v597
    %1775 = vmatprep.subr.mxu0 0.0
    %1776 = vmatpush1.msra.mxu0 %v594
    %1777 = vmatprep.subr.mxu0 0.0
    %1778 = vmatpush1.msra.mxu0 %v591
    %1779 = vmatprep.subr.mxu0 0.0
    %1780 = vmatpush2.msra.mxu0 0.0
    %1781 = vmatprep.subr.mxu0 0.0
    %1782 = vmatpush2.msra.mxu0 0.0
    %1783 = vmatprep.subr.mxu0 0.0
    %1784 = vmatpush2.msra.mxu0 0.0
    %1785 = vmatprep.subr.mxu0 0.0
    %1786 = vmatpush2.msra.mxu0 0.0
    %1787 = vmatprep.subr.mxu0 0.0
    %1788 = vmatpush2.msra.mxu0 0.0
    %1789 = vmatprep.subr.mxu0 0.0
    %1790 = vmatpush2.msra.mxu0 0.0
    %1791 = vmatprep.subr.mxu0 0.0
    %1792 = vmatpush2.msra.mxu0 0.0
    %1793 = vmatprep.subr.mxu0 0.0
    %1794 = vmatpush2.msra.mxu0 0.0
    %1795 = vmatprep.subr.mxu0 0.0
    %1796 = vmatpush2.msra.mxu0 0.0
    %1797 = vmatprep.subr.mxu0 0.0
    %1798 = vmatpush2.msra.mxu0 0.0
    %1799 = vmatprep.subr.mxu0 0.0
    %1800 = vmatpush2.msra.mxu0 0.0
    %1801 = vmatprep.subr.mxu0 0.0
    %1802 = vmatpush2.msra.mxu0 0.0
    %1803 = vmatprep.subr.mxu0 0.0
    %1804 = vmatpush2.msra.mxu0 0.0
    %1805 = vmatprep.subr.mxu0 0.0
    %1806 = vmatpush2.msra.mxu0 0.0
    %1807 = vmatprep.subr.mxu0 0.0
    %1808 = vmatpush2.msra.mxu0 0.0
    %1809 = vmatprep.subr.mxu0 0.0
    %1810 = vmatpush2.msra.mxu0 0.0
    %1811 = vmatprep.mubr.f32.mxu0 0.0
    %1812 = vmatmul.mubr.f32.gmra.mxu0 %v1672
    %v1813 = vpop.f32.mrf.mxu0
    %v1814 = vadd.f32 %v652, %v1813
    %v1815 = vpop.f32.mrf.mxu0
    %1816 = vdwg.mxu0
    %v1817 = vadd.f32 %v1675, %v1743
    %v1818 = vxor.u32 %v1817, 2147483648
    %v1819 = vmul.f32 %v1818, 1.442695
    %v1820 = vpow.pop %v1819
    %v1821 = vadd.f32 %v1820, 1.0
    %v1822 = vrcp.pop %v1821
    %v1823 = vmul.f32 1.0, %v1822
    %v1825 = vrot.slane %v1675, 1
    %v1827 = vadd.f32 %v1825, %v1745
    %v1828 = vxor.u32 %v1827, 2147483648
    %v1829 = vmul.f32 %v1828, 1.442695
    %v1830 = vpow.pop %v1829
    %v1831 = vadd.f32 %v1830, 1.0
    %v1832 = vrcp.pop %v1831
    %v1833 = vmul.f32 1.0, %v1832
    %v1834 = vmul.f32 %v1823, %v1814
    %v1835 = vrot.slane %v1675, 2
    %v1837 = vadd.f32 %v1835, %v1834
    %v1838 = vtanh.pop %v1837
    %v1839 = vsub.f32 1.0, %v1833
    %v1840 = vmul.f32 %v1839, %v1838
    %v1841 = vmul.f32 %v1833, %v1672
    %v1842 = vadd.f32 %v1840, %v1841
    %1843 = vst [vmem:[#allocation13 + $0x6] sm:$0x1] %v1842
    %s1844 = scalar_lea.vmem [#allocation4], 7
    %v1845 = vld [vmem:[%s1844] ss:$8 sm:$0x7]
    %1846 = vmatprep.subr.mxu0 %v635
    %1847 = vmatpush1.msra.mxu0 %v634
    %1848 = vmatprep.subr.mxu0 %v632
    %1849 = vmatpush1.msra.mxu0 %v631
    %1850 = vmatprep.subr.mxu0 %v629
    %1851 = vmatpush1.msra.mxu0 %v628
    %1852 = vmatprep.subr.mxu0 %v626
    %1853 = vmatpush1.msra.mxu0 %v625
    %1854 = vmatprep.subr.mxu0 %v623
    %1855 = vmatpush1.msra.mxu0 %v622
    %1856 = vmatprep.subr.mxu0 %v620
    %1857 = vmatpush1.msra.mxu0 %v619
    %1858 = vmatprep.subr.mxu0 %v617
    %1859 = vmatpush1.msra.mxu0 %v616
    %1860 = vmatprep.subr.mxu0 %v614
    %1861 = vmatpush1.msra.mxu0 %v613
    %1862 = vmatprep.subr.mxu0 %v611
    %1863 = vmatpush1.msra.mxu0 %v610
    %1864 = vmatprep.subr.mxu0 %v608
    %1865 = vmatpush1.msra.mxu0 %v607
    %1866 = vmatprep.subr.mxu0 %v605
    %1867 = vmatpush1.msra.mxu0 %v604
    %1868 = vmatprep.subr.mxu0 %v602
    %1869 = vmatpush1.msra.mxu0 %v601
    %1870 = vmatprep.subr.mxu0 %v599
    %1871 = vmatpush1.msra.mxu0 %v598
    %1872 = vmatprep.subr.mxu0 %v596
    %1873 = vmatpush1.msra.mxu0 %v595
    %1874 = vmatprep.subr.mxu0 %v593
    %1875 = vmatpush1.msra.mxu0 %v592
    %1876 = vmatprep.subr.mxu0 %v590
    %1877 = vmatpush1.msra.mxu0 %v589
    %1878 = vmatprep.subr.mxu0 0.0
    %1879 = vmatpush2.msra.mxu0 0.0
    %1880 = vmatprep.subr.mxu0 0.0
    %1881 = vmatpush2.msra.mxu0 0.0
    %1882 = vmatprep.subr.mxu0 0.0
    %1883 = vmatpush2.msra.mxu0 0.0
    %1884 = vmatprep.subr.mxu0 0.0
    %1885 = vmatpush2.msra.mxu0 0.0
    %1886 = vmatprep.subr.mxu0 0.0
    %1887 = vmatpush2.msra.mxu0 0.0
    %1888 = vmatprep.subr.mxu0 0.0
    %1889 = vmatpush2.msra.mxu0 0.0
    %1890 = vmatprep.subr.mxu0 0.0
    %1891 = vmatpush2.msra.mxu0 0.0
    %1892 = vmatprep.subr.mxu0 0.0
    %1893 = vmatpush2.msra.mxu0 0.0
    %1894 = vmatprep.subr.mxu0 0.0
    %1895 = vmatpush2.msra.mxu0 0.0
    %1896 = vmatprep.subr.mxu0 0.0
    %1897 = vmatpush2.msra.mxu0 0.0
    %1898 = vmatprep.subr.mxu0 0.0
    %1899 = vmatpush2.msra.mxu0 0.0
    %1900 = vmatprep.subr.mxu0 0.0
    %1901 = vmatpush2.msra.mxu0 0.0
    %1902 = vmatprep.subr.mxu0 0.0
    %1903 = vmatpush2.msra.mxu0 0.0
    %1904 = vmatprep.subr.mxu0 0.0
    %1905 = vmatpush2.msra.mxu0 0.0
    %1906 = vmatprep.subr.mxu0 0.0
    %1907 = vmatpush2.msra.mxu0 0.0
    %1908 = vmatprep.subr.mxu0 0.0
    %1909 = vmatpush2.msra.mxu0 0.0
    %1910 = vmatprep.mubr.f32.mxu0 0.0
    %1911 = vmatmul.mubr.f32.gmra.mxu0 %v1842
    %v1912 = vpop.f32.mrf.mxu0
    %v1913 = vadd.f32 %v644, %v1912
    %v1914 = vpop.f32.mrf.mxu0
    %v1915 = vadd.f32 %v648, %v1914
    %1916 = vdwg.mxu0
    %1917 = vmatprep.subr.mxu0 0.0
    %1918 = vmatpush1.msra.mxu0 %v636
    %1919 = vmatprep.subr.mxu0 0.0
    %1920 = vmatpush1.msra.mxu0 %v633
    %1921 = vmatprep.subr.mxu0 0.0
    %1922 = vmatpush1.msra.mxu0 %v630
    %1923 = vmatprep.subr.mxu0 0.0
    %1924 = vmatpush1.msra.mxu0 %v627
    %1925 = vmatprep.subr.mxu0 0.0
    %1926 = vmatpush1.msra.mxu0 %v624
    %1927 = vmatprep.subr.mxu0 0.0
    %1928 = vmatpush1.msra.mxu0 %v621
    %1929 = vmatprep.subr.mxu0 0.0
    %1930 = vmatpush1.msra.mxu0 %v618
    %1931 = vmatprep.subr.mxu0 0.0
    %1932 = vmatpush1.msra.mxu0 %v615
    %1933 = vmatprep.subr.mxu0 0.0
    %1934 = vmatpush1.msra.mxu0 %v612
    %1935 = vmatprep.subr.mxu0 0.0
    %1936 = vmatpush1.msra.mxu0 %v609
    %1937 = vmatprep.subr.mxu0 0.0
    %1938 = vmatpush1.msra.mxu0 %v606
    %1939 = vmatprep.subr.mxu0 0.0
    %1940 = vmatpush1.msra.mxu0 %v603
    %1941 = vmatprep.subr.mxu0 0.0
    %1942 = vmatpush1.msra.mxu0 %v600
    %1943 = vmatprep.subr.mxu0 0.0
    %1944 = vmatpush1.msra.mxu0 %v597
    %1945 = vmatprep.subr.mxu0 0.0
    %1946 = vmatpush1.msra.mxu0 %v594
    %1947 = vmatprep.subr.mxu0 0.0
    %1948 = vmatpush1.msra.mxu0 %v591
    %1949 = vmatprep.subr.mxu0 0.0
    %1950 = vmatpush2.msra.mxu0 0.0
    %1951 = vmatprep.subr.mxu0 0.0
    %1952 = vmatpush2.msra.mxu0 0.0
    %1953 = vmatprep.subr.mxu0 0.0
    %1954 = vmatpush2.msra.mxu0 0.0
    %1955 = vmatprep.subr.mxu0 0.0
    %1956 = vmatpush2.msra.mxu0 0.0
    %1957 = vmatprep.subr.mxu0 0.0
    %1958 = vmatpush2.msra.mxu0 0.0
    %1959 = vmatprep.subr.mxu0 0.0
    %1960 = vmatpush2.msra.mxu0 0.0
    %1961 = vmatprep.subr.mxu0 0.0
    %1962 = vmatpush2.msra.mxu0 0.0
    %1963 = vmatprep.subr.mxu0 0.0
    %1964 = vmatpush2.msra.mxu0 0.0
    %1965 = vmatprep.subr.mxu0 0.0
    %1966 = vmatpush2.msra.mxu0 0.0
    %1967 = vmatprep.subr.mxu0 0.0
    %1968 = vmatpush2.msra.mxu0 0.0
    %1969 = vmatprep.subr.mxu0 0.0
    %1970 = vmatpush2.msra.mxu0 0.0
    %1971 = vmatprep.subr.mxu0 0.0
    %1972 = vmatpush2.msra.mxu0 0.0
    %1973 = vmatprep.subr.mxu0 0.0
    %1974 = vmatpush2.msra.mxu0 0.0
    %1975 = vmatprep.subr.mxu0 0.0
    %1976 = vmatpush2.msra.mxu0 0.0
    %1977 = vmatprep.subr.mxu0 0.0
    %1978 = vmatpush2.msra.mxu0 0.0
    %1979 = vmatprep.subr.mxu0 0.0
    %1980 = vmatpush2.msra.mxu0 0.0
    %1981 = vmatprep.mubr.f32.mxu0 0.0
    %1982 = vmatmul.mubr.f32.gmra.mxu0 %v1842
    %v1983 = vpop.f32.mrf.mxu0
    %v1984 = vadd.f32 %v652, %v1983
    %v1985 = vpop.f32.mrf.mxu0
    %1986 = vdwg.mxu0
    %v1987 = vadd.f32 %v1845, %v1913
    %v1988 = vxor.u32 %v1987, 2147483648
    %v1989 = vmul.f32 %v1988, 1.442695
    %v1990 = vpow.pop %v1989
    %v1991 = vadd.f32 %v1990, 1.0
    %v1992 = vrcp.pop %v1991
    %v1993 = vmul.f32 1.0, %v1992
    %v1995 = vrot.slane %v1845, 1
    %v1997 = vadd.f32 %v1995, %v1915
    %v1998 = vxor.u32 %v1997, 2147483648
    %v1999 = vmul.f32 %v1998, 1.442695
    %v2000 = vpow.pop %v1999
    %v2001 = vadd.f32 %v2000, 1.0
    %v2002 = vrcp.pop %v2001
    %v2003 = vmul.f32 1.0, %v2002
    %v2004 = vmul.f32 %v1993, %v1984
    %v2005 = vrot.slane %v1845, 2
    %v2007 = vadd.f32 %v2005, %v2004
    %v2008 = vtanh.pop %v2007
    %v2009 = vsub.f32 1.0, %v2003
    %v2010 = vmul.f32 %v2009, %v2008
    %v2011 = vmul.f32 %v2003, %v1842
    %v2012 = vadd.f32 %v2010, %v2011
    %2013 = vst [vmem:[#allocation13 + $0x7] sm:$0x1] %v2012
    %2014 = vst [vmem:[#allocation2] sm:$0x1] %v2012
    // Predicated region
    $region102: #{tpu_custom_call.1} parent=1 // pred_check
      _
    $region103: #{tpu_custom_call.1} parent=1 // pred_check_branch
      %2016 = sbr.rel (0) target = $region105
    $region104: #{tpu_custom_call.1} parent=1 // pred_region
      %s2018 = ssub.s32 128, 128
      %2019 = vsyncadd [#allocation10], %s2018
      %s2021 = sshll.u32 [#allocation13], 4
      %s2022 = int_to_ptr.vmem [resolvable:$true] %s2021
      %2024 = dma.vmem_to_hbm [thread:$0]  %s2022, 128, %s7, [#allocation10]
    $region105: #{tpu_custom_call.1} parent=1 // pred_fallthru
      _
    // Predicated region
    $region106: #{tpu_custom_call.1} parent=1 // pred_check
      _
    $region107: #{tpu_custom_call.1} parent=1 // pred_check_branch
      %2026 = sbr.rel (0) target = $region109
    $region108: #{tpu_custom_call.1} parent=1 // pred_region
      %2027 = dma.done [#allocation10], 128
    $region109: #{tpu_custom_call.1} parent=1 // pred_fallthru
      _
    %2028 = vsyncpa [#allocation9], 1
    %2029 = vsyncpa [#allocation12], 1
    %2030 = vsyncpa [#allocation10], 1
  %2031 = vsyncmov [#allocation5]
  %s2032 = vpop.sfrf %2031
  %p2033 = scmp.eq.s32.totalorder %s2032, 0
  %p2034 = pneg %p2033
  %2036 = shalt.err (%p2034)
  %s2037 = scalar_lea.sflag [#allocation5], 1
  %2038 = vsyncmov %s2037
  %s2039 = vpop.sfrf %2038
  %p2040 = scmp.eq.s32.totalorder %s2039, 0
  %p2041 = pneg %p2040
  %2043 = shalt.err (%p2041)
  %s2044 = scalar_lea.sflag [#allocation5], 2
  %2045 = vsyncmov %s2044
  %s2046 = vpop.sfrf %2045
  %p2047 = scmp.eq.s32.totalorder %s2046, 0
  %p2048 = pneg %p2047
  %2050 = shalt.err (%p2048)
  %s2051 = scalar_lea.sflag [#allocation5], 3
  %2052 = vsyncmov %s2051
  %s2053 = vpop.sfrf %2052
  %p2054 = scmp.eq.s32.totalorder %s2053, 0
  %p2055 = pneg %p2054
  %2057 = shalt.err (%p2055)
  %s2058 = scalar_lea.sflag [#allocation5], 4
  %2059 = vsyncmov %s2058
  %s2060 = vpop.sfrf %2059
  %p2061 = scmp.eq.s32.totalorder %s2060, 0
  %p2062 = pneg %p2061
  %2064 = shalt.err (%p2062)
  %s2065 = scalar_lea.sflag [#allocation5], 5
  %2066 = vsyncmov %s2065
  %s2067 = vpop.sfrf %2066
  %p2068 = scmp.eq.s32.totalorder %s2067, 0
  %p2069 = pneg %p2068
  %2071 = shalt.err (%p2069)
  %s2072 = scalar_lea.sflag [#allocation5], 6
  %2073 = vsyncmov %s2072
  %s2074 = vpop.sfrf %2073
  %p2075 = scmp.eq.s32.totalorder %s2074, 0
  %p2076 = pneg %p2075
  %2078 = shalt.err (%p2076)
  %s2079 = scalar_lea.sflag [#allocation5], 7
  %2080 = vsyncmov %s2079
  %s2081 = vpop.sfrf %2080
  %p2082 = scmp.eq.s32.totalorder %s2081, 0
  %p2083 = pneg %p2082
  %2085 = shalt.err (%p2083)
  %s2086 = scalar_lea.sflag [#allocation5], 8
  %2087 = vsyncmov %s2086
  %s2088 = vpop.sfrf %2087
  %p2089 = scmp.eq.s32.totalorder %s2088, 0
  %p2090 = pneg %p2089
  %2092 = shalt.err (%p2090)
  %s2093 = scalar_lea.sflag [#allocation5], 9
  %2094 = vsyncmov %s2093
  %s2095 = vpop.sfrf %2094
  %p2096 = scmp.eq.s32.totalorder %s2095, 0
  %p2097 = pneg %p2096
  %2099 = shalt.err (%p2097)
  %s2100 = scalar_lea.sflag [#allocation5], 10
  %2101 = vsyncmov %s2100
  %s2102 = vpop.sfrf %2101
  %p2103 = scmp.eq.s32.totalorder %s2102, 0
  %p2104 = pneg %p2103
  %2106 = shalt.err (%p2104)
  %s2107 = scalar_lea.sflag [#allocation5], 11
  %2108 = vsyncmov %s2107
  %s2109 = vpop.sfrf %2108
  %p2110 = scmp.eq.s32.totalorder %s2109, 0
  %p2111 = pneg %p2110
  %2113 = shalt.err (%p2111)
  %s2114 = scalar_lea.sflag [#allocation5], 12
  %2115 = vsyncmov %s2114
  %s2116 = vpop.sfrf %2115
  %p2117 = scmp.eq.s32.totalorder %s2116, 0
  %p2118 = pneg %p2117
  %2120 = shalt.err (%p2118)
  %s2121 = scalar_lea.sflag [#allocation5], 13
  %2122 = vsyncmov %s2121
  %s2123 = vpop.sfrf %2122
  %p2124 = scmp.eq.s32.totalorder %s2123, 0
  %p2125 = pneg %p2124
  %2127 = shalt.err (%p2125)
  %s2128 = scalar_lea.sflag [#allocation5], 14
  %2129 = vsyncmov %s2128
  %s2130 = vpop.sfrf %2129
  %p2131 = scmp.eq.s32.totalorder %s2130, 0
  %p2132 = pneg %p2131
  %2134 = shalt.err (%p2132)
  %s2135 = scalar_lea.sflag [#allocation5], 15
  %2136 = vsyncmov %s2135
  %s2137 = vpop.sfrf %2136
  %p2138 = scmp.eq.s32.totalorder %s2137, 0
  %p2139 = pneg %p2138
  %2141 = shalt.err (%p2139)

</llo_original>
